<compile_context>
chip_gen: v7x
topology: tpu7x:2x2x1
jax: 0.10.0
libtpu: 0.0.40
codegen_flags: <defaults>
</compile_context>

<pallas_src>
import functools
import math

import jax
import jax.numpy as jnp
from jax import lax
from jax.experimental import pallas as pl
from jax.experimental.pallas import tpu as pltpu

BN_EPS = 1e-5


# --------------------------------------------------------------------------
# Fused BottleNeck kernel (one grid step == one batch image)
# --------------------------------------------------------------------------

def _bottleneck_body(x_ref, w1_ref, b1_ref, w2_ref, b2_ref, w3_ref, b3_ref,
                     ws_ref, bs_ref, o_ref, *, H, W, Ho, Wo, stride):
    Cin = x_ref.shape[-1]
    Cmid = w1_ref.shape[-1]
    Cout = w3_ref.shape[-1]

    x = x_ref[0]                                      # (H, W, Cin) bf16
    x2d = x.reshape(H * W, Cin)

    # ---- conv1 (1x1) + folded BN + ReLU   (Dropout = identity in eval mode) ----
    h = jnp.dot(x2d, w1_ref[...], preferred_element_type=jnp.float32)
    h = jnp.maximum(h + b1_ref[...], 0.0)
    h3 = h.reshape(H, W, Cmid).astype(jnp.bfloat16)

    # ---- zero-pad (padding=1) conv1's output entirely in VMEM (never hits HBM) ----
    zc = jnp.zeros((H, 1, Cmid), jnp.bfloat16)
    zr = jnp.zeros((1, W + 2, Cmid), jnp.bfloat16)
    hp = jnp.concatenate([zr, jnp.concatenate([zc, h3, zc], axis=1), zr],
                         axis=0)                      # (H+2, W+2, Cmid)

    # ---- conv2 (3x3, stride, pad=1) + folded BN + ReLU: 9 shifted VMEM dots ----
    acc = jnp.zeros((Ho * Wo, Cmid), jnp.float32)
    for kh in range(3):
        for kw in range(3):
            if stride == 1:
                win = hp[kh:kh + Ho, kw:kw + Wo, :]
            else:
                # TODO(synk): strided path assumes H, W divisible by stride.
                blk = hp[kh:kh + stride * Ho, kw:kw + stride * Wo, :]
                win = blk.reshape(Ho, stride, Wo, stride, Cmid)[:, 0, :, 0, :]
            acc = acc + jnp.dot(win.reshape(Ho * Wo, Cmid),
                                w2_ref[kh * 3 + kw],
                                preferred_element_type=jnp.float32)
    h2 = jnp.maximum(acc + b2_ref[...], 0.0).astype(jnp.bfloat16)

    # ---- conv3 (1x1) + folded BN, fused with shortcut add and the final ReLU ----
    y = jnp.dot(h2, w3_ref[...], preferred_element_type=jnp.float32) + b3_ref[...]
    if ws_ref is not None:                            # projection shortcut (1x1, stride)
        if stride == 1:
            xs = x2d
        else:
            xs = (x.reshape(Ho, stride, Wo, stride, Cin)[:, 0, :, 0, :]
                  .reshape(Ho * Wo, Cin))
        y = y + jnp.dot(xs, ws_ref[...],
                        preferred_element_type=jnp.float32) + bs_ref[...]
    else:                                             # identity shortcut
        y = y + x2d.astype(jnp.float32)
    o_ref[0] = jnp.maximum(y, 0.0).reshape(Ho, Wo, Cout).astype(o_ref.dtype)


def _kernel_proj(x_ref, w1_ref, b1_ref, w2_ref, b2_ref, w3_ref, b3_ref,
                 ws_ref, bs_ref, o_ref, *, H, W, Ho, Wo, stride):
    _bottleneck_body(x_ref, w1_ref, b1_ref, w2_ref, b2_ref, w3_ref, b3_ref,
                     ws_ref, bs_ref, o_ref, H=H, W=W, Ho=Ho, Wo=Wo, stride=stride)


def _kernel_identity(x_ref, w1_ref, b1_ref, w2_ref, b2_ref, w3_ref, b3_ref,
                     o_ref, *, H, W, Ho, Wo, stride):
    _bottleneck_body(x_ref, w1_ref, b1_ref, w2_ref, b2_ref, w3_ref, b3_ref,
                     None, None, o_ref, H=H, W=W, Ho=Ho, Wo=Wo, stride=stride)


# --------------------------------------------------------------------------
# Wrapper: layout glue + pallas_call setup
# --------------------------------------------------------------------------

def bottleneck_forward(x_nchw, params, *, stride=1):
    """x_nchw: (N, Cin, H, W) float32 (PyTorch layout) -> (N, 4*output_dim, Ho, Wo) f32."""
    x = jnp.transpose(x_nchw, (0, 2, 3, 1)).astype(jnp.bfloat16)   # NHWC bf16
    N, H, W, Cin = x.shape
    w1, b1 = params["conv1"]
    w2, b2 = params["conv2"]
    w3, b3 = params["conv3"]
    Cmid, Cout = w1.shape[1], w3.shape[1]
    Ho = (H + 2 - 3) // stride + 1
    Wo = (W + 2 - 3) // stride + 1
    has_proj = "shortcut" in params
    if stride != 1:
        # TODO(synk): in-kernel strided windows assume H, W divisible by stride.
        assert H % stride == 0 and W % stride == 0

    args = [x, w1, b1, w2, b2, w3, b3]
    in_specs = [
        pl.BlockSpec((1, H, W, Cin), lambda n: (n, 0, 0, 0)),
        pl.BlockSpec((Cin, Cmid), lambda n: (0, 0)),
        pl.BlockSpec((1, Cmid), lambda n: (0, 0)),
        pl.BlockSpec((9, Cmid, Cmid), lambda n: (0, 0, 0)),
        pl.BlockSpec((1, Cmid), lambda n: (0, 0)),
        pl.BlockSpec((Cmid, Cout), lambda n: (0, 0)),
        pl.BlockSpec((1, Cout), lambda n: (0, 0)),
    ]
    if has_proj:
        ws, bs = params["shortcut"]
        args += [ws, bs]
        in_specs += [pl.BlockSpec((Cin, Cout), lambda n: (0, 0)),
                     pl.BlockSpec((1, Cout), lambda n: (0, 0))]
        kernel = _kernel_proj
    else:
        kernel = _kernel_identity
    kernel = functools.partial(kernel, H=H, W=W, Ho=Ho, Wo=Wo, stride=stride)

    # Rough per-step VMEM footprint (double-buffered I/O blocks + weights + temporaries).
    io_bytes = 2 * (H * W * Cin * 2 + Ho * Wo * Cout * 4)
    wgt_bytes = (Cin * Cmid + 9 * Cmid * Cmid + Cmid * Cout
                 + (Cin * Cout if has_proj else 0)) * 2
    bias_bytes = (Cmid * 2 + Cout * (2 if has_proj else 1)) * 4
    tmp_bytes = ((H + 2) * (W + 2) * Cmid * 2 + H * W * Cmid * 4
                 + Ho * Wo * Cmid * 4 + Ho * Wo * Cout * 4)
    bytes_per_step = io_bytes + wgt_bytes + bias_bytes + tmp_bytes
    if bytes_per_step > 32 * 1024 * 1024:
        # TODO(synk): add a spatial-row grid axis (with halo) for images that do not
        #             fit VMEM as a whole (v7x has only 64 MiB physical VMEM).
        raise NotImplementedError("image too large for single-block fused kernel")

    flops = 2 * N * (H * W * Cin * Cmid
                     + 9 * Ho * Wo * Cmid * Cmid
                     + Ho * Wo * Cmid * Cout
                     + (Ho * Wo * Cin * Cout if has_proj else 0))
    bytes_accessed = (x.size * 2 + N * Ho * Wo * Cout * 4
                      + sum(int(a.size) * a.dtype.itemsize for a in args[1:]))

    out = pl.pallas_call(
        kernel,
        out_shape=jax.ShapeDtypeStruct((N, Ho, Wo, Cout), jnp.float32),
        grid=(N,),
        in_specs=in_specs,
        out_specs=pl.BlockSpec((1, Ho, Wo, Cout), lambda n: (n, 0, 0, 0)),
        compiler_params=pltpu.CompilerParams(
            dimension_semantics=("parallel",),
            vmem_limit_bytes=int(min(max(4 * bytes_per_step, 32 << 20), 64 << 20))),
        cost_estimate=pl.CostEstimate(flops=int(flops), transcendentals=0,
                                      bytes_accessed=int(bytes_accessed)),
    )(*args)
    return jnp.transpose(out, (0, 3, 1, 2)).astype(jnp.float32)   # NHWC -> NCHW


# --------------------------------------------------------------------------
# Parameters: Conv (bias=False) + inference BatchNorm folded into (bf16 W, f32 b)
# --------------------------------------------------------------------------

def _make_conv_bn(key, w_shape):
    kw_, kg, kb, km, kv = jax.random.split(key, 5)
    cout = w_shape[-1]
    fan_in = math.prod(w_shape[:-1])
    w = jax.random.normal(kw_, w_shape, jnp.float32) * (2.0 / fan_in) ** 0.5
    gamma = 1.0 + 0.1 * jax.random.normal(kg, (cout,), jnp.float32)
    beta = 0.05 * jax.random.normal(kb, (cout,), jnp.float32)
    run_mean = 0.1 * jax.random.normal(km, (cout,), jnp.float32)
    run_var = 1.0 + 0.1 * jax.random.uniform(kv, (cout,), jnp.float32)
    scale = gamma / jnp.sqrt(run_var + BN_EPS)
    bias = beta - scale * run_mean
    w_folded = (w * scale).reshape(fan_in, cout).astype(jnp.bfloat16)
    return w_folded, bias.reshape(1, cout)


def make_bottleneck_params(key, input_dim, output_dim, stride=1, rate=4):
    expanded = output_dim * rate
    k1, k2, k3, k4 = jax.random.split(key, 4)
    w2, b2 = _make_conv_bn(k2, (3, 3, output_dim, output_dim))     # 3x3, tap-major
    params = {
        "conv1": _make_conv_bn(k1, (input_dim, output_dim)),       # 1x1
        "conv2": (w2.reshape(9, output_dim, output_dim), b2),      # (tap, Cin, Cout)
        "conv3": _make_conv_bn(k3, (output_dim, expanded)),        # 1x1
    }
    if stride != 1 or input_dim != expanded:
        params["shortcut"] = _make_conv_bn(k4, (input_dim, expanded))  # 1x1, stride s
    return params


# --------------------------------------------------------------------------
# Pure-XLA f32 reference (for a loose numerical check of the fused kernel)
# --------------------------------------------------------------------------

def _reference_forward(x_nchw, params, *, stride=1):
    x = jnp.transpose(x_nchw, (0, 2, 3, 1)).astype(jnp.float32)
    w1, b1 = params["conv1"]
    w2, b2 = params["conv2"]
    w3, b3 = params["conv3"]
    Cmid = w1.shape[1]
    hi = lax.Precision.HIGHEST
    h = jax.nn.relu(jnp.einsum("nhwc,cd->nhwd", x, w1.astype(jnp.float32),
                               precision=hi) + b1)
    w2f = w2.astype(jnp.float32).reshape(3, 3, Cmid, Cmid)
    h2 = lax.conv_general_dilated(h, w2f, (stride, stride), ((1, 1), (1, 1)),
                                  dimension_numbers=("NHWC", "HWIO", "NHWC"),
                                  precision=hi)
    h2 = jax.nn.relu(h2 + b2)
    y = jnp.einsum("nhwc,cd->nhwd", h2, w3.astype(jnp.float32), precision=hi) + b3
    if "shortcut" in params:
        ws, bs = params["shortcut"]
        xs = x[:, ::stride, ::stride, :]
        y = y + jnp.einsum("nhwc,cd->nhwd", xs, ws.astype(jnp.float32),
                           precision=hi) + bs
    else:
        y = y + x
    return jnp.transpose(jax.nn.relu(y), (0, 3, 1, 2))


# --------------------------------------------------------------------------

if __name__ == "__main__":
    key = jax.random.PRNGKey(0)
    k_x, k_p = jax.random.split(key)

    # Small TPU-friendly BottleNeck config: input_dim=64, output_dim=32 (expanded 128),
    # stride=1, batch=2, 16x16 spatial -> projection shortcut path is exercised and the
    # batch grid gives 2 parallel tiles (both TensorCores busy on v7x).
    batch, input_dim, H, W = 2, 64, 16, 16
    output_dim, stride = 32, 1

    x = jax.random.normal(k_x, (batch, input_dim, H, W), jnp.float32)  # NCHW like torch
    params = make_bottleneck_params(k_p, input_dim, output_dim, stride)

    fwd = jax.jit(functools.partial(bottleneck_forward, stride=stride))
    out = jax.block_until_ready(fwd(x, params))

    assert out.shape == (batch, output_dim * 4, H, W), out.shape
    assert out.dtype == jnp.float32
    assert bool(jnp.all(jnp.isfinite(out)))

    # Loose check vs. an f32 XLA reference (kernel uses bf16 activations/weights).
    ref = _reference_forward(x, params, stride=stride)
    err = float(jnp.max(jnp.abs(out - ref)))
    tol = 0.05 * (float(jnp.max(jnp.abs(ref))) + 1.0)
    assert err < tol, (err, tol)

    print("KERNEL_OK")
</pallas_src>

<mosaic_0001>
module attributes {stable_mosaic.version = 11 : i64} {
  func.func @_kernel_proj(%arg0: i32, %arg1: memref<1x16x16x64xbf16, #tpu.memory_space<vmem>>, %arg2: memref<64x32xbf16, #tpu.memory_space<vmem>>, %arg3: memref<1x32xf32, #tpu.memory_space<vmem>>, %arg4: memref<9x32x32xbf16, #tpu.memory_space<vmem>>, %arg5: memref<1x32xf32, #tpu.memory_space<vmem>>, %arg6: memref<32x128xbf16, #tpu.memory_space<vmem>>, %arg7: memref<1x128xf32, #tpu.memory_space<vmem>>, %arg8: memref<64x128xbf16, #tpu.memory_space<vmem>>, %arg9: memref<1x128xf32, #tpu.memory_space<vmem>>, %arg10: memref<1x16x16x128xf32, #tpu.memory_space<vmem>>) attributes {dimension_semantics = [#tpu.dimension_semantics<parallel>], iteration_bounds = array<i64: 2>, scalar_prefetch = 0 : i64, scratch_operands = 0 : i64, tpu.core_type = #tpu.core_type<tc>, window_params = [{transform_indices = @transform_0, window_bounds = array<i64: 1, 16, 16, 64>}, {pipeline_mode = #tpu.pipeline_mode<synchronous>, transform_indices = @transform_1, window_bounds = array<i64: 64, 32>}, {pipeline_mode = #tpu.pipeline_mode<synchronous>, transform_indices = @transform_2, window_bounds = array<i64: 1, 32>}, {pipeline_mode = #tpu.pipeline_mode<synchronous>, transform_indices = @transform_3, window_bounds = array<i64: 9, 32, 32>}, {pipeline_mode = #tpu.pipeline_mode<synchronous>, transform_indices = @transform_4, window_bounds = array<i64: 1, 32>}, {pipeline_mode = #tpu.pipeline_mode<synchronous>, transform_indices = @transform_5, window_bounds = array<i64: 32, 128>}, {pipeline_mode = #tpu.pipeline_mode<synchronous>, transform_indices = @transform_6, window_bounds = array<i64: 1, 128>}, {pipeline_mode = #tpu.pipeline_mode<synchronous>, transform_indices = @transform_7, window_bounds = array<i64: 64, 128>}, {pipeline_mode = #tpu.pipeline_mode<synchronous>, transform_indices = @transform_8, window_bounds = array<i64: 1, 128>}, {transform_indices = @transform_9, window_bounds = array<i64: 1, 16, 16, 128>}]} {
    %c0 = arith.constant 0 : index
    %c0_0 = arith.constant 0 : index
    %c0_1 = arith.constant 0 : index
    %c0_2 = arith.constant 0 : index
    %0 = vector.load %arg1[%c0, %c0_0, %c0_1, %c0_2] : memref<1x16x16x64xbf16, #tpu.memory_space<vmem>>, vector<1x16x16x64xbf16>
    %1 = vector.shape_cast %0 : vector<1x16x16x64xbf16> to vector<16x16x64xbf16>
    %2 = vector.shape_cast %1 : vector<16x16x64xbf16> to vector<256x64xbf16>
    %c0_3 = arith.constant 0 : index
    %c0_4 = arith.constant 0 : index
    %3 = vector.load %arg2[%c0_3, %c0_4] : memref<64x32xbf16, #tpu.memory_space<vmem>>, vector<64x32xbf16>
    %cst = arith.constant dense<0.000000e+00> : vector<256x32xf32>
    %4 = tpu.matmul %2, %3, %cst {dimension_numbers = #tpu.dot_dimension_numbers<[1], [0], [0], [1], [0, 0, 1, 1], [], []>} : vector<256x64xbf16>, vector<64x32xbf16>, vector<256x32xf32> -> vector<256x32xf32>
    %c0_5 = arith.constant 0 : index
    %c0_6 = arith.constant 0 : index
    %5 = vector.load %arg3[%c0_5, %c0_6] : memref<1x32xf32, #tpu.memory_space<vmem>>, vector<1x32xf32>
    %6 = vector.broadcast %5 : vector<1x32xf32> to vector<256x32xf32>
    %7 = arith.addf %4, %6 : vector<256x32xf32>
    %cst_7 = arith.constant 0.000000e+00 : f32
    %8 = vector.broadcast %cst_7 : f32 to vector<256x32xf32>
    %9 = arith.maximumf %7, %8 : vector<256x32xf32>
    %10 = vector.shape_cast %9 : vector<256x32xf32> to vector<16x16x32xf32>
    %11 = arith.truncf %10 : vector<16x16x32xf32> to vector<16x16x32xbf16>
    %cst_8 = arith.constant 0.000000e+00 : bf16
    %12 = vector.broadcast %cst_8 : bf16 to vector<16x1x32xbf16>
    %cst_9 = arith.constant 0.000000e+00 : bf16
    %13 = vector.broadcast %cst_9 : bf16 to vector<1x18x32xbf16>
    %14 = tpu.concatenate %12, %11, %12 in 1 : vector<16x1x32xbf16>, vector<16x16x32xbf16>, vector<16x1x32xbf16> -> vector<16x18x32xbf16>
    %15 = tpu.concatenate %13, %14, %13 in 0 : vector<1x18x32xbf16>, vector<16x18x32xbf16>, vector<1x18x32xbf16> -> vector<18x18x32xbf16>
    %cst_10 = arith.constant 0.000000e+00 : f32
    %16 = vector.broadcast %cst_10 : f32 to vector<256x32xf32>
    %17 = vector.extract_strided_slice %15 {offsets = [0, 0, 0], sizes = [16, 16, 32], strides = [1, 1, 1]} : vector<18x18x32xbf16> to vector<16x16x32xbf16>
    %18 = vector.shape_cast %17 : vector<16x16x32xbf16> to vector<256x32xbf16>
    %c0_11 = arith.constant 0 : index
    %c0_12 = arith.constant 0 : index
    %c0_13 = arith.constant 0 : index
    %19 = vector.load %arg4[%c0_11, %c0_12, %c0_13] : memref<9x32x32xbf16, #tpu.memory_space<vmem>>, vector<1x32x32xbf16>
    %20 = vector.shape_cast %19 : vector<1x32x32xbf16> to vector<32x32xbf16>
    %cst_14 = arith.constant dense<0.000000e+00> : vector<256x32xf32>
    %21 = tpu.matmul %18, %20, %cst_14 {dimension_numbers = #tpu.dot_dimension_numbers<[1], [0], [0], [1], [0, 0, 1, 1], [], []>} : vector<256x32xbf16>, vector<32x32xbf16>, vector<256x32xf32> -> vector<256x32xf32>
    %22 = arith.addf %16, %21 : vector<256x32xf32>
    %23 = vector.extract_strided_slice %15 {offsets = [0, 1, 0], sizes = [16, 16, 32], strides = [1, 1, 1]} : vector<18x18x32xbf16> to vector<16x16x32xbf16>
    %24 = vector.shape_cast %23 : vector<16x16x32xbf16> to vector<256x32xbf16>
    %c1 = arith.constant 1 : index
    %c0_15 = arith.constant 0 : index
    %c0_16 = arith.constant 0 : index
    %25 = vector.load %arg4[%c1, %c0_15, %c0_16] : memref<9x32x32xbf16, #tpu.memory_space<vmem>>, vector<1x32x32xbf16>
    %26 = vector.shape_cast %25 : vector<1x32x32xbf16> to vector<32x32xbf16>
    %cst_17 = arith.constant dense<0.000000e+00> : vector<256x32xf32>
    %27 = tpu.matmul %24, %26, %cst_17 {dimension_numbers = #tpu.dot_dimension_numbers<[1], [0], [0], [1], [0, 0, 1, 1], [], []>} : vector<256x32xbf16>, vector<32x32xbf16>, vector<256x32xf32> -> vector<256x32xf32>
    %28 = arith.addf %22, %27 : vector<256x32xf32>
    %29 = vector.extract_strided_slice %15 {offsets = [0, 2, 0], sizes = [16, 16, 32], strides = [1, 1, 1]} : vector<18x18x32xbf16> to vector<16x16x32xbf16>
    %30 = vector.shape_cast %29 : vector<16x16x32xbf16> to vector<256x32xbf16>
    %c2 = arith.constant 2 : index
    %c0_18 = arith.constant 0 : index
    %c0_19 = arith.constant 0 : index
    %31 = vector.load %arg4[%c2, %c0_18, %c0_19] : memref<9x32x32xbf16, #tpu.memory_space<vmem>>, vector<1x32x32xbf16>
    %32 = vector.shape_cast %31 : vector<1x32x32xbf16> to vector<32x32xbf16>
    %cst_20 = arith.constant dense<0.000000e+00> : vector<256x32xf32>
    %33 = tpu.matmul %30, %32, %cst_20 {dimension_numbers = #tpu.dot_dimension_numbers<[1], [0], [0], [1], [0, 0, 1, 1], [], []>} : vector<256x32xbf16>, vector<32x32xbf16>, vector<256x32xf32> -> vector<256x32xf32>
    %34 = arith.addf %28, %33 : vector<256x32xf32>
    %35 = vector.extract_strided_slice %15 {offsets = [1, 0, 0], sizes = [16, 16, 32], strides = [1, 1, 1]} : vector<18x18x32xbf16> to vector<16x16x32xbf16>
    %36 = vector.shape_cast %35 : vector<16x16x32xbf16> to vector<256x32xbf16>
    %c3 = arith.constant 3 : index
    %c0_21 = arith.constant 0 : index
    %c0_22 = arith.constant 0 : index
    %37 = vector.load %arg4[%c3, %c0_21, %c0_22] : memref<9x32x32xbf16, #tpu.memory_space<vmem>>, vector<1x32x32xbf16>
    %38 = vector.shape_cast %37 : vector<1x32x32xbf16> to vector<32x32xbf16>
    %cst_23 = arith.constant dense<0.000000e+00> : vector<256x32xf32>
    %39 = tpu.matmul %36, %38, %cst_23 {dimension_numbers = #tpu.dot_dimension_numbers<[1], [0], [0], [1], [0, 0, 1, 1], [], []>} : vector<256x32xbf16>, vector<32x32xbf16>, vector<256x32xf32> -> vector<256x32xf32>
    %40 = arith.addf %34, %39 : vector<256x32xf32>
    %41 = vector.extract_strided_slice %15 {offsets = [1, 1, 0], sizes = [16, 16, 32], strides = [1, 1, 1]} : vector<18x18x32xbf16> to vector<16x16x32xbf16>
    %42 = vector.shape_cast %41 : vector<16x16x32xbf16> to vector<256x32xbf16>
    %c4 = arith.constant 4 : index
    %c0_24 = arith.constant 0 : index
    %c0_25 = arith.constant 0 : index
    %43 = vector.load %arg4[%c4, %c0_24, %c0_25] : memref<9x32x32xbf16, #tpu.memory_space<vmem>>, vector<1x32x32xbf16>
    %44 = vector.shape_cast %43 : vector<1x32x32xbf16> to vector<32x32xbf16>
    %cst_26 = arith.constant dense<0.000000e+00> : vector<256x32xf32>
    %45 = tpu.matmul %42, %44, %cst_26 {dimension_numbers = #tpu.dot_dimension_numbers<[1], [0], [0], [1], [0, 0, 1, 1], [], []>} : vector<256x32xbf16>, vector<32x32xbf16>, vector<256x32xf32> -> vector<256x32xf32>
    %46 = arith.addf %40, %45 : vector<256x32xf32>
    %47 = vector.extract_strided_slice %15 {offsets = [1, 2, 0], sizes = [16, 16, 32], strides = [1, 1, 1]} : vector<18x18x32xbf16> to vector<16x16x32xbf16>
    %48 = vector.shape_cast %47 : vector<16x16x32xbf16> to vector<256x32xbf16>
    %c5 = arith.constant 5 : index
    %c0_27 = arith.constant 0 : index
    %c0_28 = arith.constant 0 : index
    %49 = vector.load %arg4[%c5, %c0_27, %c0_28] : memref<9x32x32xbf16, #tpu.memory_space<vmem>>, vector<1x32x32xbf16>
    %50 = vector.shape_cast %49 : vector<1x32x32xbf16> to vector<32x32xbf16>
    %cst_29 = arith.constant dense<0.000000e+00> : vector<256x32xf32>
    %51 = tpu.matmul %48, %50, %cst_29 {dimension_numbers = #tpu.dot_dimension_numbers<[1], [0], [0], [1], [0, 0, 1, 1], [], []>} : vector<256x32xbf16>, vector<32x32xbf16>, vector<256x32xf32> -> vector<256x32xf32>
    %52 = arith.addf %46, %51 : vector<256x32xf32>
    %53 = vector.extract_strided_slice %15 {offsets = [2, 0, 0], sizes = [16, 16, 32], strides = [1, 1, 1]} : vector<18x18x32xbf16> to vector<16x16x32xbf16>
    %54 = vector.shape_cast %53 : vector<16x16x32xbf16> to vector<256x32xbf16>
    %c6 = arith.constant 6 : index
    %c0_30 = arith.constant 0 : index
    %c0_31 = arith.constant 0 : index
    %55 = vector.load %arg4[%c6, %c0_30, %c0_31] : memref<9x32x32xbf16, #tpu.memory_space<vmem>>, vector<1x32x32xbf16>
    %56 = vector.shape_cast %55 : vector<1x32x32xbf16> to vector<32x32xbf16>
    %cst_32 = arith.constant dense<0.000000e+00> : vector<256x32xf32>
    %57 = tpu.matmul %54, %56, %cst_32 {dimension_numbers = #tpu.dot_dimension_numbers<[1], [0], [0], [1], [0, 0, 1, 1], [], []>} : vector<256x32xbf16>, vector<32x32xbf16>, vector<256x32xf32> -> vector<256x32xf32>
    %58 = arith.addf %52, %57 : vector<256x32xf32>
    %59 = vector.extract_strided_slice %15 {offsets = [2, 1, 0], sizes = [16, 16, 32], strides = [1, 1, 1]} : vector<18x18x32xbf16> to vector<16x16x32xbf16>
    %60 = vector.shape_cast %59 : vector<16x16x32xbf16> to vector<256x32xbf16>
    %c7 = arith.constant 7 : index
    %c0_33 = arith.constant 0 : index
    %c0_34 = arith.constant 0 : index
    %61 = vector.load %arg4[%c7, %c0_33, %c0_34] : memref<9x32x32xbf16, #tpu.memory_space<vmem>>, vector<1x32x32xbf16>
    %62 = vector.shape_cast %61 : vector<1x32x32xbf16> to vector<32x32xbf16>
    %cst_35 = arith.constant dense<0.000000e+00> : vector<256x32xf32>
    %63 = tpu.matmul %60, %62, %cst_35 {dimension_numbers = #tpu.dot_dimension_numbers<[1], [0], [0], [1], [0, 0, 1, 1], [], []>} : vector<256x32xbf16>, vector<32x32xbf16>, vector<256x32xf32> -> vector<256x32xf32>
    %64 = arith.addf %58, %63 : vector<256x32xf32>
    %65 = vector.extract_strided_slice %15 {offsets = [2, 2, 0], sizes = [16, 16, 32], strides = [1, 1, 1]} : vector<18x18x32xbf16> to vector<16x16x32xbf16>
    %66 = vector.shape_cast %65 : vector<16x16x32xbf16> to vector<256x32xbf16>
    %c8 = arith.constant 8 : index
    %c0_36 = arith.constant 0 : index
    %c0_37 = arith.constant 0 : index
    %67 = vector.load %arg4[%c8, %c0_36, %c0_37] : memref<9x32x32xbf16, #tpu.memory_space<vmem>>, vector<1x32x32xbf16>
    %68 = vector.shape_cast %67 : vector<1x32x32xbf16> to vector<32x32xbf16>
    %cst_38 = arith.constant dense<0.000000e+00> : vector<256x32xf32>
    %69 = tpu.matmul %66, %68, %cst_38 {dimension_numbers = #tpu.dot_dimension_numbers<[1], [0], [0], [1], [0, 0, 1, 1], [], []>} : vector<256x32xbf16>, vector<32x32xbf16>, vector<256x32xf32> -> vector<256x32xf32>
    %70 = arith.addf %64, %69 : vector<256x32xf32>
    %c0_39 = arith.constant 0 : index
    %c0_40 = arith.constant 0 : index
    %71 = vector.load %arg5[%c0_39, %c0_40] : memref<1x32xf32, #tpu.memory_space<vmem>>, vector<1x32xf32>
    %72 = vector.broadcast %71 : vector<1x32xf32> to vector<256x32xf32>
    %73 = arith.addf %70, %72 : vector<256x32xf32>
    %cst_41 = arith.constant 0.000000e+00 : f32
    %74 = vector.broadcast %cst_41 : f32 to vector<256x32xf32>
    %75 = arith.maximumf %73, %74 : vector<256x32xf32>
    %76 = arith.truncf %75 : vector<256x32xf32> to vector<256x32xbf16>
    %c0_42 = arith.constant 0 : index
    %c0_43 = arith.constant 0 : index
    %77 = vector.load %arg6[%c0_42, %c0_43] : memref<32x128xbf16, #tpu.memory_space<vmem>>, vector<32x128xbf16>
    %cst_44 = arith.constant dense<0.000000e+00> : vector<256x128xf32>
    %78 = tpu.matmul %76, %77, %cst_44 {dimension_numbers = #tpu.dot_dimension_numbers<[1], [0], [0], [1], [0, 0, 1, 1], [], []>} : vector<256x32xbf16>, vector<32x128xbf16>, vector<256x128xf32> -> vector<256x128xf32>
    %c0_45 = arith.constant 0 : index
    %c0_46 = arith.constant 0 : index
    %79 = vector.load %arg7[%c0_45, %c0_46] : memref<1x128xf32, #tpu.memory_space<vmem>>, vector<1x128xf32>
    %80 = vector.broadcast %79 : vector<1x128xf32> to vector<256x128xf32>
    %81 = arith.addf %78, %80 : vector<256x128xf32>
    %c0_47 = arith.constant 0 : index
    %c0_48 = arith.constant 0 : index
    %82 = vector.load %arg8[%c0_47, %c0_48] : memref<64x128xbf16, #tpu.memory_space<vmem>>, vector<64x128xbf16>
    %cst_49 = arith.constant dense<0.000000e+00> : vector<256x128xf32>
    %83 = tpu.matmul %2, %82, %cst_49 {dimension_numbers = #tpu.dot_dimension_numbers<[1], [0], [0], [1], [0, 0, 1, 1], [], []>} : vector<256x64xbf16>, vector<64x128xbf16>, vector<256x128xf32> -> vector<256x128xf32>
    %84 = arith.addf %81, %83 : vector<256x128xf32>
    %c0_50 = arith.constant 0 : index
    %c0_51 = arith.constant 0 : index
    %85 = vector.load %arg9[%c0_50, %c0_51] : memref<1x128xf32, #tpu.memory_space<vmem>>, vector<1x128xf32>
    %86 = vector.broadcast %85 : vector<1x128xf32> to vector<256x128xf32>
    %87 = arith.addf %84, %86 : vector<256x128xf32>
    %cst_52 = arith.constant 0.000000e+00 : f32
    %88 = vector.broadcast %cst_52 : f32 to vector<256x128xf32>
    %89 = arith.maximumf %87, %88 : vector<256x128xf32>
    %90 = vector.shape_cast %89 : vector<256x128xf32> to vector<16x16x128xf32>
    %c0_53 = arith.constant 0 : index
    %c0_54 = arith.constant 0 : index
    %c0_55 = arith.constant 0 : index
    %c0_56 = arith.constant 0 : index
    %91 = vector.load %arg10[%c0_53, %c0_54, %c0_55, %c0_56] : memref<1x16x16x128xf32, #tpu.memory_space<vmem>>, vector<1x16x16x128xf32>
    %92 = vector.shape_cast %91 : vector<1x16x16x128xf32> to vector<16x16x128xf32>
    %93 = vector.shape_cast %90 : vector<16x16x128xf32> to vector<1x16x16x128xf32>
    tpu.vector_store %arg10[%c0_53, %c0_54, %c0_55, %c0_56], %93 {strides = array<i32>} : memref<1x16x16x128xf32, #tpu.memory_space<vmem>>, vector<1x16x16x128xf32>,
    return
  }
  func.func @transform_0(%arg0: i32) -> (i32, i32, i32, i32) {
    %c0_i32 = arith.constant 0 : i32
    %c0_i32_0 = arith.constant 0 : i32
    %c0_i32_1 = arith.constant 0 : i32
    %c0_i32_2 = arith.constant 0 : i32
    return %arg0, %c0_i32, %c0_i32_0, %c0_i32_1 : i32, i32, i32, i32
  }
  func.func @transform_1(%arg0: i32) -> (i32, i32) {
    %c0_i32 = arith.constant 0 : i32
    %c0_i32_0 = arith.constant 0 : i32
    %c0_i32_1 = arith.constant 0 : i32
    return %c0_i32, %c0_i32_0 : i32, i32
  }
  func.func @transform_2(%arg0: i32) -> (i32, i32) {
    %c0_i32 = arith.constant 0 : i32
    %c0_i32_0 = arith.constant 0 : i32
    %c0_i32_1 = arith.constant 0 : i32
    return %c0_i32, %c0_i32_0 : i32, i32
  }
  func.func @transform_3(%arg0: i32) -> (i32, i32, i32) {
    %c0_i32 = arith.constant 0 : i32
    %c0_i32_0 = arith.constant 0 : i32
    %c0_i32_1 = arith.constant 0 : i32
    %c0_i32_2 = arith.constant 0 : i32
    return %c0_i32, %c0_i32_0, %c0_i32_1 : i32, i32, i32
  }
  func.func @transform_4(%arg0: i32) -> (i32, i32) {
    %c0_i32 = arith.constant 0 : i32
    %c0_i32_0 = arith.constant 0 : i32
    %c0_i32_1 = arith.constant 0 : i32
    return %c0_i32, %c0_i32_0 : i32, i32
  }
  func.func @transform_5(%arg0: i32) -> (i32, i32) {
    %c0_i32 = arith.constant 0 : i32
    %c0_i32_0 = arith.constant 0 : i32
    %c0_i32_1 = arith.constant 0 : i32
    return %c0_i32, %c0_i32_0 : i32, i32
  }
  func.func @transform_6(%arg0: i32) -> (i32, i32) {
    %c0_i32 = arith.constant 0 : i32
    %c0_i32_0 = arith.constant 0 : i32
    %c0_i32_1 = arith.constant 0 : i32
    return %c0_i32, %c0_i32_0 : i32, i32
  }
  func.func @transform_7(%arg0: i32) -> (i32, i32) {
    %c0_i32 = arith.constant 0 : i32
    %c0_i32_0 = arith.constant 0 : i32
    %c0_i32_1 = arith.constant 0 : i32
    return %c0_i32, %c0_i32_0 : i32, i32
  }
  func.func @transform_8(%arg0: i32) -> (i32, i32) {
    %c0_i32 = arith.constant 0 : i32
    %c0_i32_0 = arith.constant 0 : i32
    %c0_i32_1 = arith.constant 0 : i32
    return %c0_i32, %c0_i32_0 : i32, i32
  }
  func.func @transform_9(%arg0: i32) -> (i32, i32, i32, i32) {
    %c0_i32 = arith.constant 0 : i32
    %c0_i32_0 = arith.constant 0 : i32
    %c0_i32_1 = arith.constant 0 : i32
    %c0_i32_2 = arith.constant 0 : i32
    return %arg0, %c0_i32, %c0_i32_0, %c0_i32_1 : i32, i32, i32, i32
  }
}

</mosaic_0001>

<llo_original>
// kernel: bottleneck_forward.1
$region0: #{bottleneck_forward.1}
  #allocation0 [shape = 'u32[]', space=smem, size = 0x4, offset = 0x4, fixed_abs, tag = 'smem constant byte address 0x4 - core index']
  #allocation1 [shape = 'u32[144,128]{1,0:T(1,128)}', space=vmem, size = 0x12000, scoped, tag = 'internal scratch']
  %s0 = inlined_call_operand.vmem [shape: bf16[2,16,16,64], index: 0, kind: input, shape index: {}]
  %s1 = inlined_call_operand.vmem [shape: bf16[64,32], index: 1, kind: input, shape index: {}]
  %s2 = inlined_call_operand.vmem [shape: f32[1,32], index: 2, kind: input, shape index: {}]
  %s3 = inlined_call_operand.vmem [shape: bf16[9,32,32], index: 3, kind: input, shape index: {}]
  %s4 = inlined_call_operand.vmem [shape: f32[1,32], index: 4, kind: input, shape index: {}]
  %s5 = inlined_call_operand.vmem [shape: bf16[32,128], index: 5, kind: input, shape index: {}]
  %s6 = inlined_call_operand.vmem [shape: f32[1,128], index: 6, kind: input, shape index: {}]
  %s7 = inlined_call_operand.vmem [shape: bf16[64,128], index: 7, kind: input, shape index: {}]
  %s8 = inlined_call_operand.vmem [shape: f32[1,128], index: 8, kind: input, shape index: {}]
  %s9 = inlined_call_operand.hbm [shape: f32[2,16,16,128], index: 9, kind: output, shape index: {}]
  %s10 = sld [smem:[#allocation0]]
  $region69: #{bottleneck_forward.1} parent=0
    _
  %s12 = ssub.s32 1, %s10
  %s13 = scalar_select 0, %s12, %s10
  $region1: #{bottleneck_forward.1} parent=0
    #allocation2 [shape = 'u8[262144]{0}', space=vmem, size = 0x40000, scoped, tag = 'output window, operand 0']
    #allocation3 [shape = 's32[2]{0}', space=sflag, size = 0x8, scoped, tag = 'scoped memory for bottleneck_forward.1']
    %14 = vsyncpa [#allocation3], 0
    %s15 = scalar_lea.sflag [#allocation3], 1
    %16 = vsyncpa %s15, 0
    loop: start=0, step=1, limit=4
    $region2: #{bottleneck_forward.1} parent=1 // loop_pre_header
      _
    $region3: #{bottleneck_forward.1} parent=1 // loop_header
      %s18 = sphi 0, %s22
      %p19 = scmp.ge.s32.totalorder %s18, 4
      %s28 = sphi 0, %s30
      %s31 = sphi 0, %s28
      %s32 = sphi 0, %s31
      %s48 = sphi 0, %s32
      %s52 = sphi 0, %s52
      %s54 = sphi 0, %s52
      %s55 = sphi 0, %s54
      %s69 = sphi 0, %s55
      %s73 = sphi 0, %s73
      %s75 = sphi 0, %s73
      %s76 = sphi 0, %s75
      %s90 = sphi 0, %s76
      %s94 = sphi 0, %s94
      %s96 = sphi 0, %s94
      %s97 = sphi 0, %s96
      %s111 = sphi 0, %s97
      %s115 = sphi 0, %s115
      %s117 = sphi 0, %s115
      %s118 = sphi 0, %s117
      %s132 = sphi 0, %s118
      %s136 = sphi 0, %s136
      %s138 = sphi 0, %s136
      %s139 = sphi 0, %s138
      %s153 = sphi 0, %s139
      %s157 = sphi 0, %s157
      %s159 = sphi 0, %s157
      %s160 = sphi 0, %s159
      %s174 = sphi 0, %s160
      %s178 = sphi 0, %s178
      %s180 = sphi 0, %s178
      %s181 = sphi 0, %s180
      %s195 = sphi 0, %s181
      %s199 = sphi 0, %s199
      %s201 = sphi 0, %s199
      %s202 = sphi 0, %s201
      %s216 = sphi 0, %s202
      %s222 = sphi 0, %s224
      %s225 = sphi 0, %s222
      %s226 = sphi 0, %s225
      %s242 = sphi 0, %s226
    $region4: #{bottleneck_forward.1} parent=1 // loop_header_branch
      %21 = sbr.rel (%p19) target = $region8
    $region5: #{bottleneck_forward.1} parent=1 // loop_body
      %s23 = ssub.s32 %s18, 1
      %s24 = ssub.s32 %s18, 2
      %s25 = sadd.s32 %s18, 1
      %s26 = ssub.s32 %s18, %s25
      %p27 = scmp.eq.s32.totalorder %s26, 0
      %s29 = sadd.s32 %s28, 1
      %s30 = scalar_select %p27, %s28, %s29
      %p33 = pneg %p27
      %p34 = scmp.eq.s32.totalorder %s18, 1
      %p35 = por %p33, %p34
      %p36 = scmp.ne.s32.totalorder %s28, %s31
      %p37 = scmp.eq.s32.totalorder %s18, 0
      %p38 = por %p36, %p37
      %p39 = scmp.ne.s32.totalorder %s28, %s31
      %p40 = scmp.eq.s32.totalorder %s23, 1
      %p41 = por %p39, %p40
      %p42 = scmp.ne.s32.totalorder %s31, %s32
      %p43 = scmp.eq.s32.totalorder %s23, 0
      %p44 = por %p42, %p43
      %p45 = scmp.ne.s32.totalorder %s31, %s32
      %p46 = scmp.eq.s32.totalorder %s24, 1
      %p47 = por %p45, %p46
      %p49 = scmp.ne.s32.totalorder %s32, %s48
      %p50 = scmp.eq.s32.totalorder %s24, 0
      %p51 = por %p49, %p50
      %s53 = sadd.s32 %s52, 1
      %p56 = scmp.eq.s32.totalorder %s18, 1
      %p57 = scmp.ne.s32.totalorder %s52, %s54
      %p58 = scmp.eq.s32.totalorder %s18, 0
      %p59 = por %p57, %p58
      %p60 = scmp.ne.s32.totalorder %s52, %s54
      %p61 = scmp.eq.s32.totalorder %s23, 1
      %p62 = por %p60, %p61
      %p63 = scmp.ne.s32.totalorder %s54, %s55
      %p64 = scmp.eq.s32.totalorder %s23, 0
      %p65 = por %p63, %p64
      %p66 = scmp.ne.s32.totalorder %s54, %s55
      %p67 = scmp.eq.s32.totalorder %s24, 1
      %p68 = por %p66, %p67
      %p70 = scmp.ne.s32.totalorder %s55, %s69
      %p71 = scmp.eq.s32.totalorder %s24, 0
      %p72 = por %p70, %p71
      %s74 = sadd.s32 %s73, 1
      %p77 = scmp.eq.s32.totalorder %s18, 1
      %p78 = scmp.ne.s32.totalorder %s73, %s75
      %p79 = scmp.eq.s32.totalorder %s18, 0
      %p80 = por %p78, %p79
      %p81 = scmp.ne.s32.totalorder %s73, %s75
      %p82 = scmp.eq.s32.totalorder %s23, 1
      %p83 = por %p81, %p82
      %p84 = scmp.ne.s32.totalorder %s75, %s76
      %p85 = scmp.eq.s32.totalorder %s23, 0
      %p86 = por %p84, %p85
      %p87 = scmp.ne.s32.totalorder %s75, %s76
      %p88 = scmp.eq.s32.totalorder %s24, 1
      %p89 = por %p87, %p88
      %p91 = scmp.ne.s32.totalorder %s76, %s90
      %p92 = scmp.eq.s32.totalorder %s24, 0
      %p93 = por %p91, %p92
      %s95 = sadd.s32 %s94, 1
      %p98 = scmp.eq.s32.totalorder %s18, 1
      %p99 = scmp.ne.s32.totalorder %s94, %s96
      %p100 = scmp.eq.s32.totalorder %s18, 0
      %p101 = por %p99, %p100
      %p102 = scmp.ne.s32.totalorder %s94, %s96
      %p103 = scmp.eq.s32.totalorder %s23, 1
      %p104 = por %p102, %p103
      %p105 = scmp.ne.s32.totalorder %s96, %s97
      %p106 = scmp.eq.s32.totalorder %s23, 0
      %p107 = por %p105, %p106
      %p108 = scmp.ne.s32.totalorder %s96, %s97
      %p109 = scmp.eq.s32.totalorder %s24, 1
      %p110 = por %p108, %p109
      %p112 = scmp.ne.s32.totalorder %s97, %s111
      %p113 = scmp.eq.s32.totalorder %s24, 0
      %p114 = por %p112, %p113
      %s116 = sadd.s32 %s115, 1
      %p119 = scmp.eq.s32.totalorder %s18, 1
      %p120 = scmp.ne.s32.totalorder %s115, %s117
      %p121 = scmp.eq.s32.totalorder %s18, 0
      %p122 = por %p120, %p121
      %p123 = scmp.ne.s32.totalorder %s115, %s117
      %p124 = scmp.eq.s32.totalorder %s23, 1
      %p125 = por %p123, %p124
      %p126 = scmp.ne.s32.totalorder %s117, %s118
      %p127 = scmp.eq.s32.totalorder %s23, 0
      %p128 = por %p126, %p127
      %p129 = scmp.ne.s32.totalorder %s117, %s118
      %p130 = scmp.eq.s32.totalorder %s24, 1
      %p131 = por %p129, %p130
      %p133 = scmp.ne.s32.totalorder %s118, %s132
      %p134 = scmp.eq.s32.totalorder %s24, 0
      %p135 = por %p133, %p134
      %s137 = sadd.s32 %s136, 1
      %p140 = scmp.eq.s32.totalorder %s18, 1
      %p141 = scmp.ne.s32.totalorder %s136, %s138
      %p142 = scmp.eq.s32.totalorder %s18, 0
      %p143 = por %p141, %p142
      %p144 = scmp.ne.s32.totalorder %s136, %s138
      %p145 = scmp.eq.s32.totalorder %s23, 1
      %p146 = por %p144, %p145
      %p147 = scmp.ne.s32.totalorder %s138, %s139
      %p148 = scmp.eq.s32.totalorder %s23, 0
      %p149 = por %p147, %p148
      %p150 = scmp.ne.s32.totalorder %s138, %s139
      %p151 = scmp.eq.s32.totalorder %s24, 1
      %p152 = por %p150, %p151
      %p154 = scmp.ne.s32.totalorder %s139, %s153
      %p155 = scmp.eq.s32.totalorder %s24, 0
      %p156 = por %p154, %p155
      %s158 = sadd.s32 %s157, 1
      %p161 = scmp.eq.s32.totalorder %s18, 1
      %p162 = scmp.ne.s32.totalorder %s157, %s159
      %p163 = scmp.eq.s32.totalorder %s18, 0
      %p164 = por %p162, %p163
      %p165 = scmp.ne.s32.totalorder %s157, %s159
      %p166 = scmp.eq.s32.totalorder %s23, 1
      %p167 = por %p165, %p166
      %p168 = scmp.ne.s32.totalorder %s159, %s160
      %p169 = scmp.eq.s32.totalorder %s23, 0
      %p170 = por %p168, %p169
      %p171 = scmp.ne.s32.totalorder %s159, %s160
      %p172 = scmp.eq.s32.totalorder %s24, 1
      %p173 = por %p171, %p172
      %p175 = scmp.ne.s32.totalorder %s160, %s174
      %p176 = scmp.eq.s32.totalorder %s24, 0
      %p177 = por %p175, %p176
      %s179 = sadd.s32 %s178, 1
      %p182 = scmp.eq.s32.totalorder %s18, 1
      %p183 = scmp.ne.s32.totalorder %s178, %s180
      %p184 = scmp.eq.s32.totalorder %s18, 0
      %p185 = por %p183, %p184
      %p186 = scmp.ne.s32.totalorder %s178, %s180
      %p187 = scmp.eq.s32.totalorder %s23, 1
      %p188 = por %p186, %p187
      %p189 = scmp.ne.s32.totalorder %s180, %s181
      %p190 = scmp.eq.s32.totalorder %s23, 0
      %p191 = por %p189, %p190
      %p192 = scmp.ne.s32.totalorder %s180, %s181
      %p193 = scmp.eq.s32.totalorder %s24, 1
      %p194 = por %p192, %p193
      %p196 = scmp.ne.s32.totalorder %s181, %s195
      %p197 = scmp.eq.s32.totalorder %s24, 0
      %p198 = por %p196, %p197
      %s200 = sadd.s32 %s199, 1
      %p203 = scmp.eq.s32.totalorder %s18, 1
      %p204 = scmp.ne.s32.totalorder %s199, %s201
      %p205 = scmp.eq.s32.totalorder %s18, 0
      %p206 = por %p204, %p205
      %p207 = scmp.ne.s32.totalorder %s199, %s201
      %p208 = scmp.eq.s32.totalorder %s23, 1
      %p209 = por %p207, %p208
      %p210 = scmp.ne.s32.totalorder %s201, %s202
      %p211 = scmp.eq.s32.totalorder %s23, 0
      %p212 = por %p210, %p211
      %p213 = scmp.ne.s32.totalorder %s201, %s202
      %p214 = scmp.eq.s32.totalorder %s24, 1
      %p215 = por %p213, %p214
      %p217 = scmp.ne.s32.totalorder %s202, %s216
      %p218 = scmp.eq.s32.totalorder %s24, 0
      %p219 = por %p217, %p218
      %s220 = ssub.s32 %s18, %s25
      %p221 = scmp.eq.s32.totalorder %s220, 0
      %s223 = sadd.s32 %s222, 1
      %s224 = scalar_select %p221, %s222, %s223
      %p227 = pneg %p221
      %p228 = scmp.eq.s32.totalorder %s18, 1
      %p229 = por %p227, %p228
      %p230 = scmp.ne.s32.totalorder %s222, %s225
      %p231 = scmp.eq.s32.totalorder %s18, 0
      %p232 = por %p230, %p231
      %p233 = scmp.ne.s32.totalorder %s222, %s225
      %p234 = scmp.eq.s32.totalorder %s23, 1
      %p235 = por %p233, %p234
      %p236 = scmp.ne.s32.totalorder %s225, %s226
      %p237 = scmp.eq.s32.totalorder %s23, 0
      %p238 = por %p236, %p237
      %p239 = scmp.ne.s32.totalorder %s225, %s226
      %p240 = scmp.eq.s32.totalorder %s24, 1
      %p241 = por %p239, %p240
      %p243 = scmp.ne.s32.totalorder %s226, %s242
      %p244 = scmp.eq.s32.totalorder %s24, 0
      %p245 = por %p243, %p244
      %p246 = scmp.le.s32.totalorder 1, %s18
      %p247 = scmp.lt.s32.totalorder %s18, 3
      %p248 = pnand %p246, %p247
      %p249 = pneg %p248
      // Predicated region
      $region9: #{bottleneck_forward.1} parent=5 // pred_check
        _
      $region10: #{bottleneck_forward.1} parent=5 // pred_check_branch
        %251 = sbr.rel (%p248) target = $region12
      $region11: #{bottleneck_forward.1} parent=5 // pred_region
        %s252 = ssub.s32 %s18, 1
        // Predicated region
        $region13: #{bottleneck_forward.1} parent=11 // pred_check
          %p253 = pneg %p65
        $region14: #{bottleneck_forward.1} parent=11 // pred_check_branch
          %255 = sbr.rel (%p253) target = $region16
        $region15: #{bottleneck_forward.1} parent=11 // pred_region
          _
        $region16: #{bottleneck_forward.1} parent=11 // pred_fallthru
          _
        // Predicated region
        $region17: #{bottleneck_forward.1} parent=11 // pred_check
          %p256 = pneg %p86
        $region18: #{bottleneck_forward.1} parent=11 // pred_check_branch
          %258 = sbr.rel (%p256) target = $region20
        $region19: #{bottleneck_forward.1} parent=11 // pred_region
          _
        $region20: #{bottleneck_forward.1} parent=11 // pred_fallthru
          _
        // Predicated region
        $region21: #{bottleneck_forward.1} parent=11 // pred_check
          %p259 = pneg %p107
        $region22: #{bottleneck_forward.1} parent=11 // pred_check_branch
          %261 = sbr.rel (%p259) target = $region24
        $region23: #{bottleneck_forward.1} parent=11 // pred_region
          _
        $region24: #{bottleneck_forward.1} parent=11 // pred_fallthru
          _
        // Predicated region
        $region25: #{bottleneck_forward.1} parent=11 // pred_check
          %p262 = pneg %p128
        $region26: #{bottleneck_forward.1} parent=11 // pred_check_branch
          %264 = sbr.rel (%p262) target = $region28
        $region27: #{bottleneck_forward.1} parent=11 // pred_region
          _
        $region28: #{bottleneck_forward.1} parent=11 // pred_fallthru
          _
        // Predicated region
        $region29: #{bottleneck_forward.1} parent=11 // pred_check
          %p265 = pneg %p149
        $region30: #{bottleneck_forward.1} parent=11 // pred_check_branch
          %267 = sbr.rel (%p265) target = $region32
        $region31: #{bottleneck_forward.1} parent=11 // pred_region
          _
        $region32: #{bottleneck_forward.1} parent=11 // pred_fallthru
          _
        // Predicated region
        $region33: #{bottleneck_forward.1} parent=11 // pred_check
          %p268 = pneg %p170
        $region34: #{bottleneck_forward.1} parent=11 // pred_check_branch
          %270 = sbr.rel (%p268) target = $region36
        $region35: #{bottleneck_forward.1} parent=11 // pred_region
          _
        $region36: #{bottleneck_forward.1} parent=11 // pred_fallthru
          _
        // Predicated region
        $region37: #{bottleneck_forward.1} parent=11 // pred_check
          %p271 = pneg %p191
        $region38: #{bottleneck_forward.1} parent=11 // pred_check_branch
          %273 = sbr.rel (%p271) target = $region40
        $region39: #{bottleneck_forward.1} parent=11 // pred_region
          _
        $region40: #{bottleneck_forward.1} parent=11 // pred_fallthru
          _
        // Predicated region
        $region41: #{bottleneck_forward.1} parent=11 // pred_check
          %p274 = pneg %p212
        $region42: #{bottleneck_forward.1} parent=11 // pred_check_branch
          %276 = sbr.rel (%p274) target = $region44
        $region43: #{bottleneck_forward.1} parent=11 // pred_region
          _
        $region44: #{bottleneck_forward.1} parent=11 // pred_fallthru
          _
      $region12: #{bottleneck_forward.1} parent=5 // pred_fallthru
        _
      %p277 = scmp.lt.s32.totalorder %s18, 2
      // Predicated region
      $region45: #{bottleneck_forward.1} parent=5 // pred_check
        %p278 = pneg %p277
      $region46: #{bottleneck_forward.1} parent=5 // pred_check_branch
        %280 = sbr.rel (%p278) target = $region48
      $region47: #{bottleneck_forward.1} parent=5 // pred_region
        // Predicated region
        $region49: #{bottleneck_forward.1} parent=47 // pred_check
          %p281 = pneg %p38
        $region50: #{bottleneck_forward.1} parent=47 // pred_check_branch
          %283 = sbr.rel (%p281) target = $region52
        $region51: #{bottleneck_forward.1} parent=47 // pred_region
          %p284 = scmp.lt.s32.totalorder %s18, 1
          %s285 = scalar_select %p284, %s18, 1
          %s286 = smul.addr %s285, 32
          %s287 = smul.addr %s286, 4
          %s288 = scalar_lea.vmem %s0, %s287
        $region52: #{bottleneck_forward.1} parent=47 // pred_fallthru
          _
      $region48: #{bottleneck_forward.1} parent=5 // pred_fallthru
        _
      %p289 = scmp.le.s32.totalorder 1, %s18
      %p290 = scmp.lt.s32.totalorder %s18, 3
      %p291 = pnand %p289, %p290
      %p292 = pneg %p291
      // Predicated region
      $region53: #{bottleneck_forward.1} parent=5 // pred_check
        _
      $region54: #{bottleneck_forward.1} parent=5 // pred_check_branch
        %294 = sbr.rel (%p291) target = $region56
      $region55: #{bottleneck_forward.1} parent=5 // pred_region
        %s295 = ssub.s32 %s18, 1
        %p296 = scmp.lt.s32.totalorder %s23, 1
        %s297 = scalar_select %p296, %s23, 1
        %s298 = smul.addr %s297, 32
        %s299 = smul.addr %s298, 4
        %s300 = scalar_lea.vmem %s0, %s299
        %p301 = pneg %p44
        %p302 = pneg %p41
        %p303 = pneg %p65
        %p304 = pneg %p62
        %p305 = pneg %p86
        %p306 = pneg %p83
        %p307 = pneg %p107
        %p308 = pneg %p104
        %p309 = pneg %p128
        %p310 = pneg %p125
        %p311 = pneg %p149
        %p312 = pneg %p146
        %p313 = pneg %p170
        %p314 = pneg %p167
        %p315 = pneg %p191
        %p316 = pneg %p188
        %p317 = pneg %p212
        %p318 = pneg %p209
        %p319 = pneg %p238
        %p320 = pneg %p235
        %s321 = sand.u32 %s225, 1
        %s322 = scalar_lea.sflag [#allocation3], %s321
        %s323 = sand.u32 %s225, 1
        %s324 = smul.addr %s323, 256
        %s325 = scalar_lea.vmem [#allocation2], %s324
        %p326 = scmp.lt.s32.totalorder %s23, 1
        %s327 = scalar_select %p326, %s23, 1
        %s328 = smul.addr %s327, 32
        %s329 = smul.addr %s328, 4
        %s330 = scalar_lea.vmem %s0, %s329
        %v332 = vld [vmem:[%s330] sm:$0xf]
        %v333 = vld [vmem:[%s330 + $0x4] sm:$0xf]
        %v334 = vld [vmem:[%s330 + $0x8] sm:$0xf]
        %v335 = vld [vmem:[%s330 + $0xc] sm:$0xf]
        %v336 = vld [vmem:[%s330 + $0x10] sm:$0xf]
        %v337 = vld [vmem:[%s330 + $0x14] sm:$0xf]
        %v338 = vld [vmem:[%s330 + $0x18] sm:$0xf]
        %v339 = vld [vmem:[%s330 + $0x1c] sm:$0xf]
        %v340 = vld [vmem:[%s330 + $0x20] sm:$0xf]
        %v341 = vld [vmem:[%s330 + $0x24] sm:$0xf]
        %v342 = vld [vmem:[%s330 + $0x28] sm:$0xf]
        %v343 = vld [vmem:[%s330 + $0x2c] sm:$0xf]
        %v344 = vld [vmem:[%s330 + $0x30] sm:$0xf]
        %v345 = vld [vmem:[%s330 + $0x34] sm:$0xf]
        %v346 = vld [vmem:[%s330 + $0x38] sm:$0xf]
        %v347 = vld [vmem:[%s330 + $0x3c] sm:$0xf]
        %v348 = vld [vmem:[%s330 + $0x40] sm:$0xf]
        %v349 = vld [vmem:[%s330 + $0x44] sm:$0xf]
        %v350 = vld [vmem:[%s330 + $0x48] sm:$0xf]
        %v351 = vld [vmem:[%s330 + $0x4c] sm:$0xf]
        %v352 = vld [vmem:[%s330 + $0x50] sm:$0xf]
        %v353 = vld [vmem:[%s330 + $0x54] sm:$0xf]
        %v354 = vld [vmem:[%s330 + $0x58] sm:$0xf]
        %v355 = vld [vmem:[%s330 + $0x5c] sm:$0xf]
        %v356 = vld [vmem:[%s330 + $0x60] sm:$0xf]
        %v357 = vld [vmem:[%s330 + $0x64] sm:$0xf]
        %v358 = vld [vmem:[%s330 + $0x68] sm:$0xf]
        %v359 = vld [vmem:[%s330 + $0x6c] sm:$0xf]
        %v360 = vld [vmem:[%s330 + $0x70] sm:$0xf]
        %v361 = vld [vmem:[%s330 + $0x74] sm:$0xf]
        %v362 = vld [vmem:[%s330 + $0x78] sm:$0xf]
        %v363 = vld [vmem:[%s330 + $0x7c] sm:$0xf]
        %v364 = vld [vmem:[%s1] sm:$0xf]
        %v365 = vld [vmem:[%s1 + $0x4] sm:$0xf]
        %v366 = vld [vmem:[%s1 + $0x8] sm:$0xf]
        %v367 = vld [vmem:[%s1 + $0xc] sm:$0xf]
        %v368 = vld [vmem:[%s1 + $0x10] sm:$0xf]
        %v369 = vld [vmem:[%s1 + $0x14] sm:$0xf]
        %v370 = vld [vmem:[%s1 + $0x18] sm:$0xf]
        %v371 = vld [vmem:[%s1 + $0x1c] sm:$0xf]
        %v372 = vld [vmem:[%s2] sm:$0x1]
        %v374 = vlaneseq
        %v375 = vshrl.u32 %v374, 7
        %v376 = vsub.s32 0, %v375
        %v377 = vrot.slane %v372, %v376
        %v411 = vunpack.c.l.b16 %v332
        %v412 = vunpack.c.l.b16 %v333
        %v413 = vunpack.c.l.b16 %v334
        %v414 = vunpack.c.l.b16 %v335
        %v415 = vunpack.c.l.b16 %v336
        %v416 = vunpack.c.l.b16 %v337
        %v417 = vunpack.c.l.b16 %v338
        %v418 = vunpack.c.l.b16 %v339
        %v419 = vunpack.c.l.b16 %v340
        %v420 = vunpack.c.l.b16 %v341
        %v421 = vunpack.c.l.b16 %v342
        %v422 = vunpack.c.l.b16 %v343
        %v423 = vunpack.c.l.b16 %v344
        %v424 = vunpack.c.l.b16 %v345
        %v425 = vunpack.c.l.b16 %v346
        %v426 = vunpack.c.l.b16 %v347
        %v427 = vunpack.c.l.b16 %v348
        %v428 = vunpack.c.l.b16 %v349
        %v429 = vunpack.c.l.b16 %v350
        %v430 = vunpack.c.l.b16 %v351
        %v431 = vunpack.c.l.b16 %v352
        %v432 = vunpack.c.l.b16 %v353
        %v433 = vunpack.c.l.b16 %v354
        %v434 = vunpack.c.l.b16 %v355
        %v435 = vunpack.c.l.b16 %v356
        %v436 = vunpack.c.l.b16 %v357
        %v437 = vunpack.c.l.b16 %v358
        %v438 = vunpack.c.l.b16 %v359
        %v439 = vunpack.c.l.b16 %v360
        %v440 = vunpack.c.l.b16 %v361
        %v441 = vunpack.c.l.b16 %v362
        %v442 = vunpack.c.l.b16 %v363
        %v443 = vpack.c.b16 %v412, %v411
        %v444 = vpack.c.b16 %v414, %v413
        %v445 = vpack.c.b16 %v416, %v415
        %v446 = vpack.c.b16 %v418, %v417
        %v447 = vpack.c.b16 %v420, %v419
        %v448 = vpack.c.b16 %v422, %v421
        %v449 = vpack.c.b16 %v424, %v423
        %v450 = vpack.c.b16 %v426, %v425
        %v451 = vpack.c.b16 %v428, %v427
        %v452 = vpack.c.b16 %v430, %v429
        %v453 = vpack.c.b16 %v432, %v431
        %v454 = vpack.c.b16 %v434, %v433
        %v455 = vpack.c.b16 %v436, %v435
        %v456 = vpack.c.b16 %v438, %v437
        %v457 = vpack.c.b16 %v440, %v439
        %v458 = vpack.c.b16 %v442, %v441
        %v467 = vunpack.c.l.b16 %v364
        %v468 = vunpack.c.l.b16 %v365
        %v469 = vunpack.c.l.b16 %v366
        %v470 = vunpack.c.l.b16 %v367
        %v471 = vunpack.c.l.b16 %v368
        %v472 = vunpack.c.l.b16 %v369
        %v473 = vunpack.c.l.b16 %v370
        %v474 = vunpack.c.l.b16 %v371
        %v475 = vpack.c.b16 %v468, %v467
        %v476 = vpack.c.b16 %v470, %v469
        %v477 = vpack.c.b16 %v472, %v471
        %v478 = vpack.c.b16 %v474, %v473
        %vm483 = vcmask 523264
        %v485 = vsel %vm483, %v443, 0
        %v488 = vsel %vm483, %v444, 0
        %v491 = vsel %vm483, %v445, 0
        %v494 = vsel %vm483, %v446, 0
        %v497 = vsel %vm483, %v447, 0
        %v500 = vsel %vm483, %v448, 0
        %v503 = vsel %vm483, %v449, 0
        %v506 = vsel %vm483, %v450, 0
        %v509 = vsel %vm483, %v451, 0
        %v512 = vsel %vm483, %v452, 0
        %v515 = vsel %vm483, %v453, 0
        %v518 = vsel %vm483, %v454, 0
        %v521 = vsel %vm483, %v455, 0
        %v524 = vsel %vm483, %v456, 0
        %v527 = vsel %vm483, %v457, 0
        %v530 = vsel %vm483, %v458, 0
        %532 = vmatprep.subr.bf16.mxu0 0
        %533 = vmatpush1.bf16.msra.mxu0 %v475
        %534 = vmatprep.subr.bf16.mxu0 0
        %535 = vmatpush1.bf16.msra.mxu0 %v476
        %536 = vmatprep.subr.bf16.mxu0 0
        %537 = vmatpush1.bf16.msra.mxu0 %v477
        %538 = vmatprep.subr.bf16.mxu0 0
        %539 = vmatpush1.bf16.msra.mxu0 %v478
        %540 = vmatprep.subr.bf16.mxu0 0
        %541 = vmatpush1.bf16.msra.mxu0 0
        %542 = vmatprep.subr.bf16.mxu0 0
        %543 = vmatpush1.bf16.msra.mxu0 0
        %544 = vmatprep.subr.bf16.mxu0 0
        %545 = vmatpush1.bf16.msra.mxu0 0
        %546 = vmatprep.subr.bf16.mxu0 0
        %547 = vmatpush1.bf16.msra.mxu0 0
        %548 = vmatprep.subr.bf16.mxu0 0
        %549 = vmatpush1.bf16.msra.mxu0 0
        %550 = vmatprep.subr.bf16.mxu0 0
        %551 = vmatpush1.bf16.msra.mxu0 0
        %552 = vmatprep.subr.bf16.mxu0 0
        %553 = vmatpush1.bf16.msra.mxu0 0
        %554 = vmatprep.subr.bf16.mxu0 0
        %555 = vmatpush1.bf16.msra.mxu0 0
        %556 = vmatprep.subr.bf16.mxu0 0
        %557 = vmatpush1.bf16.msra.mxu0 0
        %558 = vmatprep.subr.bf16.mxu0 0
        %559 = vmatpush1.bf16.msra.mxu0 0
        %560 = vmatprep.subr.bf16.mxu0 0
        %561 = vmatpush1.bf16.msra.mxu0 0
        %562 = vmatprep.subr.bf16.mxu0 0
        %563 = vmatpush1.bf16.msra.mxu0 0
        %564 = vmatprep.mubr.bf16.mxu0 0
        %565 = vmatmul.mubr.bf16.gmra.mrb[0].mxu0 %v485
        %v566 = vpop.f32.mrb[0].mxu0
        %v567 = vadd.f32 %v377, %v566
        %v568 = vpop.f32.mrb[0].mxu0
        %v569 = vpop.f32.mrb[0].mxu0
        %v570 = vadd.f32 %v377, %v569
        %v571 = vpop.f32.mrb[0].mxu0
        %572 = vmatprep.mubr.bf16.mxu0 0
        %573 = vmatmul.mubr.bf16.gmra.mrb[0].mxu0 %v488
        %v574 = vpop.f32.mrb[0].mxu0
        %v575 = vadd.f32 %v377, %v574
        %v576 = vpop.f32.mrb[0].mxu0
        %v577 = vpop.f32.mrb[0].mxu0
        %v578 = vadd.f32 %v377, %v577
        %v579 = vpop.f32.mrb[0].mxu0
        %580 = vmatprep.mubr.bf16.mxu0 0
        %581 = vmatmul.mubr.bf16.gmra.mrb[0].mxu0 %v491
        %v582 = vpop.f32.mrb[0].mxu0
        %v583 = vadd.f32 %v377, %v582
        %v584 = vpop.f32.mrb[0].mxu0
        %v585 = vpop.f32.mrb[0].mxu0
        %v586 = vadd.f32 %v377, %v585
        %v587 = vpop.f32.mrb[0].mxu0
        %588 = vmatprep.mubr.bf16.mxu0 0
        %589 = vmatmul.mubr.bf16.gmra.mrb[0].mxu0 %v494
        %v590 = vpop.f32.mrb[0].mxu0
        %v591 = vadd.f32 %v377, %v590
        %v592 = vpop.f32.mrb[0].mxu0
        %v593 = vpop.f32.mrb[0].mxu0
        %v594 = vadd.f32 %v377, %v593
        %v595 = vpop.f32.mrb[0].mxu0
        %596 = vmatprep.mubr.bf16.mxu0 0
        %597 = vmatmul.mubr.bf16.gmra.mrb[0].mxu0 %v497
        %v598 = vpop.f32.mrb[0].mxu0
        %v599 = vadd.f32 %v377, %v598
        %v600 = vpop.f32.mrb[0].mxu0
        %v601 = vpop.f32.mrb[0].mxu0
        %v602 = vadd.f32 %v377, %v601
        %v603 = vpop.f32.mrb[0].mxu0
        %604 = vmatprep.mubr.bf16.mxu0 0
        %605 = vmatmul.mubr.bf16.gmra.mrb[0].mxu0 %v500
        %v606 = vpop.f32.mrb[0].mxu0
        %v607 = vadd.f32 %v377, %v606
        %v608 = vpop.f32.mrb[0].mxu0
        %v609 = vpop.f32.mrb[0].mxu0
        %v610 = vadd.f32 %v377, %v609
        %v611 = vpop.f32.mrb[0].mxu0
        %612 = vmatprep.mubr.bf16.mxu0 0
        %613 = vmatmul.mubr.bf16.gmra.mrb[0].mxu0 %v503
        %v614 = vpop.f32.mrb[0].mxu0
        %v615 = vadd.f32 %v377, %v614
        %v616 = vpop.f32.mrb[0].mxu0
        %v617 = vpop.f32.mrb[0].mxu0
        %v618 = vadd.f32 %v377, %v617
        %v619 = vpop.f32.mrb[0].mxu0
        %620 = vmatprep.mubr.bf16.mxu0 0
        %621 = vmatmul.mubr.bf16.gmra.mrb[0].mxu0 %v506
        %v622 = vpop.f32.mrb[0].mxu0
        %v623 = vadd.f32 %v377, %v622
        %v624 = vpop.f32.mrb[0].mxu0
        %v625 = vpop.f32.mrb[0].mxu0
        %v626 = vadd.f32 %v377, %v625
        %v627 = vpop.f32.mrb[0].mxu0
        %628 = vmatprep.mubr.bf16.mxu0 0
        %629 = vmatmul.mubr.bf16.gmra.mrb[0].mxu0 %v509
        %v630 = vpop.f32.mrb[0].mxu0
        %v631 = vadd.f32 %v377, %v630
        %v632 = vpop.f32.mrb[0].mxu0
        %v633 = vpop.f32.mrb[0].mxu0
        %v634 = vadd.f32 %v377, %v633
        %v635 = vpop.f32.mrb[0].mxu0
        %636 = vmatprep.mubr.bf16.mxu0 0
        %637 = vmatmul.mubr.bf16.gmra.mrb[0].mxu0 %v512
        %v638 = vpop.f32.mrb[0].mxu0
        %v639 = vadd.f32 %v377, %v638
        %v640 = vpop.f32.mrb[0].mxu0
        %v641 = vpop.f32.mrb[0].mxu0
        %v642 = vadd.f32 %v377, %v641
        %v643 = vpop.f32.mrb[0].mxu0
        %644 = vmatprep.mubr.bf16.mxu0 0
        %645 = vmatmul.mubr.bf16.gmra.mrb[0].mxu0 %v515
        %v646 = vpop.f32.mrb[0].mxu0
        %v647 = vadd.f32 %v377, %v646
        %v648 = vpop.f32.mrb[0].mxu0
        %v649 = vpop.f32.mrb[0].mxu0
        %v650 = vadd.f32 %v377, %v649
        %v651 = vpop.f32.mrb[0].mxu0
        %652 = vmatprep.mubr.bf16.mxu0 0
        %653 = vmatmul.mubr.bf16.gmra.mrb[0].mxu0 %v518
        %v654 = vpop.f32.mrb[0].mxu0
        %v655 = vadd.f32 %v377, %v654
        %v656 = vpop.f32.mrb[0].mxu0
        %v657 = vpop.f32.mrb[0].mxu0
        %v658 = vadd.f32 %v377, %v657
        %v659 = vpop.f32.mrb[0].mxu0
        %660 = vmatprep.mubr.bf16.mxu0 0
        %661 = vmatmul.mubr.bf16.gmra.mrb[0].mxu0 %v521
        %v662 = vpop.f32.mrb[0].mxu0
        %v663 = vadd.f32 %v377, %v662
        %v664 = vpop.f32.mrb[0].mxu0
        %v665 = vpop.f32.mrb[0].mxu0
        %v666 = vadd.f32 %v377, %v665
        %v667 = vpop.f32.mrb[0].mxu0
        %668 = vmatprep.mubr.bf16.mxu0 0
        %669 = vmatmul.mubr.bf16.gmra.mrb[0].mxu0 %v524
        %v670 = vpop.f32.mrb[0].mxu0
        %v671 = vadd.f32 %v377, %v670
        %v672 = vpop.f32.mrb[0].mxu0
        %v673 = vpop.f32.mrb[0].mxu0
        %v674 = vadd.f32 %v377, %v673
        %v675 = vpop.f32.mrb[0].mxu0
        %676 = vmatprep.mubr.bf16.mxu0 0
        %677 = vmatmul.mubr.bf16.gmra.mrb[0].mxu0 %v527
        %v678 = vpop.f32.mrb[0].mxu0
        %v679 = vadd.f32 %v377, %v678
        %v680 = vpop.f32.mrb[0].mxu0
        %v681 = vpop.f32.mrb[0].mxu0
        %v682 = vadd.f32 %v377, %v681
        %v683 = vpop.f32.mrb[0].mxu0
        %684 = vmatprep.mubr.bf16.mxu0 0
        %685 = vmatmul.mubr.bf16.gmra.mrb[0].mxu0 %v530
        %v686 = vpop.f32.mrb[0].mxu0
        %v687 = vadd.f32 %v377, %v686
        %v688 = vpop.f32.mrb[0].mxu0
        %v689 = vpop.f32.mrb[0].mxu0
        %v690 = vadd.f32 %v377, %v689
        %v691 = vpop.f32.mrb[0].mxu0
        %692 = vdwg.mxu0
        %v693 = vmax.f32 %v567, 0.0
        %v694 = vmax.f32 %v570, 0.0
        %v695 = vmax.f32 %v575, 0.0
        %v696 = vmax.f32 %v578, 0.0
        %v697 = vmax.f32 %v583, 0.0
        %v698 = vmax.f32 %v586, 0.0
        %v699 = vmax.f32 %v591, 0.0
        %v700 = vmax.f32 %v594, 0.0
        %v701 = vmax.f32 %v599, 0.0
        %v702 = vmax.f32 %v602, 0.0
        %v703 = vmax.f32 %v607, 0.0
        %v704 = vmax.f32 %v610, 0.0
        %v705 = vmax.f32 %v615, 0.0
        %v706 = vmax.f32 %v618, 0.0
        %v707 = vmax.f32 %v623, 0.0
        %v708 = vmax.f32 %v626, 0.0
        %v709 = vmax.f32 %v631, 0.0
        %v710 = vmax.f32 %v634, 0.0
        %v711 = vmax.f32 %v639, 0.0
        %v712 = vmax.f32 %v642, 0.0
        %v713 = vmax.f32 %v647, 0.0
        %v714 = vmax.f32 %v650, 0.0
        %v715 = vmax.f32 %v655, 0.0
        %v716 = vmax.f32 %v658, 0.0
        %v717 = vmax.f32 %v663, 0.0
        %v718 = vmax.f32 %v666, 0.0
        %v719 = vmax.f32 %v671, 0.0
        %v720 = vmax.f32 %v674, 0.0
        %v721 = vmax.f32 %v679, 0.0
        %v722 = vmax.f32 %v682, 0.0
        %v723 = vmax.f32 %v687, 0.0
        %v724 = vmax.f32 %v690, 0.0
        %v725 = vpack.c.bf16 %v694, %v693
        %v726 = vpack.c.bf16 %v696, %v695
        %v727 = vpack.c.bf16 %v698, %v697
        %v728 = vpack.c.bf16 %v700, %v699
        %v729 = vpack.c.bf16 %v702, %v701
        %v730 = vpack.c.bf16 %v704, %v703
        %v731 = vpack.c.bf16 %v706, %v705
        %v732 = vpack.c.bf16 %v708, %v707
        %v733 = vpack.c.bf16 %v710, %v709
        %v734 = vpack.c.bf16 %v712, %v711
        %v735 = vpack.c.bf16 %v714, %v713
        %v736 = vpack.c.bf16 %v716, %v715
        %v737 = vpack.c.bf16 %v718, %v717
        %v738 = vpack.c.bf16 %v720, %v719
        %v739 = vpack.c.bf16 %v722, %v721
        %v740 = vpack.c.bf16 %v724, %v723
        %v742 = vshrl.u32 %v725, 16
        %v744 = vrot.slane %v742, 7
        %v745 = vshll.u32 %v725, 16
        %v747 = vor.u32 %v744, %v745
        %v749 = vshrl.u32 %v726, 16
        %v751 = vrot.slane %v749, 7
        %v752 = vshll.u32 %v726, 16
        %v754 = vor.u32 %v751, %v752
        %v756 = vshrl.u32 %v727, 16
        %v758 = vrot.slane %v756, 7
        %v759 = vshll.u32 %v727, 16
        %v761 = vor.u32 %v758, %v759
        %v763 = vshrl.u32 %v728, 16
        %v765 = vrot.slane %v763, 7
        %v766 = vshll.u32 %v728, 16
        %v768 = vor.u32 %v765, %v766
        %v770 = vshrl.u32 %v729, 16
        %v772 = vrot.slane %v770, 7
        %v773 = vshll.u32 %v729, 16
        %v775 = vor.u32 %v772, %v773
        %v777 = vshrl.u32 %v730, 16
        %v779 = vrot.slane %v777, 7
        %v780 = vshll.u32 %v730, 16
        %v782 = vor.u32 %v779, %v780
        %v784 = vshrl.u32 %v731, 16
        %v786 = vrot.slane %v784, 7
        %v787 = vshll.u32 %v731, 16
        %v789 = vor.u32 %v786, %v787
        %v791 = vshrl.u32 %v732, 16
        %v793 = vrot.slane %v791, 7
        %v794 = vshll.u32 %v732, 16
        %v796 = vor.u32 %v793, %v794
        %v798 = vshrl.u32 %v733, 16
        %v800 = vrot.slane %v798, 7
        %v801 = vshll.u32 %v733, 16
        %v803 = vor.u32 %v800, %v801
        %v805 = vshrl.u32 %v734, 16
        %v807 = vrot.slane %v805, 7
        %v808 = vshll.u32 %v734, 16
        %v810 = vor.u32 %v807, %v808
        %v812 = vshrl.u32 %v735, 16
        %v814 = vrot.slane %v812, 7
        %v815 = vshll.u32 %v735, 16
        %v817 = vor.u32 %v814, %v815
        %v819 = vshrl.u32 %v736, 16
        %v821 = vrot.slane %v819, 7
        %v822 = vshll.u32 %v736, 16
        %v824 = vor.u32 %v821, %v822
        %v826 = vshrl.u32 %v737, 16
        %v828 = vrot.slane %v826, 7
        %v829 = vshll.u32 %v737, 16
        %v831 = vor.u32 %v828, %v829
        %v833 = vshrl.u32 %v738, 16
        %v835 = vrot.slane %v833, 7
        %v836 = vshll.u32 %v738, 16
        %v838 = vor.u32 %v835, %v836
        %v840 = vshrl.u32 %v739, 16
        %v842 = vrot.slane %v840, 7
        %v843 = vshll.u32 %v739, 16
        %v845 = vor.u32 %v842, %v843
        %v847 = vshrl.u32 %v740, 16
        %v849 = vrot.slane %v847, 7
        %v850 = vshll.u32 %v740, 16
        %v852 = vor.u32 %v849, %v850
        %vm885 = vcmask 1040384
        %vm886 = vsmask.f32 256
        %vm887 = vmand %vm885, %vm886
        %v888 = vsel %vm887, 0, %v747
        %v889 = vsel %vm887, 0, %v754
        %v890 = vsel %vm887, 0, %v761
        %v891 = vsel %vm887, 0, %v768
        %v892 = vsel %vm887, 0, %v775
        %v893 = vsel %vm887, 0, %v782
        %v894 = vsel %vm887, 0, %v789
        %v895 = vsel %vm887, 0, %v796
        %v896 = vsel %vm887, 0, %v803
        %v897 = vsel %vm887, 0, %v810
        %v898 = vsel %vm887, 0, %v817
        %v899 = vsel %vm887, 0, %v824
        %v900 = vsel %vm887, 0, %v831
        %v901 = vsel %vm887, 0, %v838
        %v902 = vsel %vm887, 0, %v845
        %v903 = vsel %vm887, 0, %v852
        %v904 = vsel %vm887, %v744, 0
        %v905 = vsel %vm887, %v751, 0
        %v906 = vsel %vm887, %v758, 0
        %v907 = vsel %vm887, %v765, 0
        %v908 = vsel %vm887, %v772, 0
        %v909 = vsel %vm887, %v779, 0
        %v910 = vsel %vm887, %v786, 0
        %v911 = vsel %vm887, %v793, 0
        %v912 = vsel %vm887, %v800, 0
        %v913 = vsel %vm887, %v807, 0
        %v914 = vsel %vm887, %v814, 0
        %v915 = vsel %vm887, %v821, 0
        %v916 = vsel %vm887, %v828, 0
        %v917 = vsel %vm887, %v835, 0
        %v918 = vsel %vm887, %v842, 0
        %v919 = vsel %vm887, %v849, 0
        %v920 = vld [vmem:[%s3] sm:$0xf]
        %v921 = vld [vmem:[%s3 + $0x4] sm:$0xf]
        %v922 = vld [vmem:[%s3 + $0x8] sm:$0xf]
        %v923 = vld [vmem:[%s3 + $0xc] sm:$0xf]
        %vm924 = vsmask.f32 7424
        %v926 = vshrl.u32 0, 16
        %v928 = vshll.u32 0, 16
        %v930 = vrot.slane %v928, 1
        %v931 = vor.u32 %v926, %v930
        %v932 = vsel %vm924, %v931, %v930
        %v934 = vshrl.u32 %v888, 16
        %v936 = vshll.u32 %v888, 16
        %v938 = vrot.slane %v936, 1
        %v939 = vor.u32 %v934, %v938
        %v941 = vshll.u32 %v904, 16
        %v943 = vrot.slane %v941, 1
        %v944 = vsel %vm924, %v939, %v943
        %v946 = vshrl.u32 %v889, 16
        %v948 = vshll.u32 %v889, 16
        %v950 = vrot.slane %v948, 1
        %v951 = vor.u32 %v946, %v950
        %v953 = vshll.u32 %v905, 16
        %v955 = vrot.slane %v953, 1
        %v956 = vsel %vm924, %v951, %v955
        %v958 = vshrl.u32 %v890, 16
        %v960 = vshll.u32 %v890, 16
        %v962 = vrot.slane %v960, 1
        %v963 = vor.u32 %v958, %v962
        %v965 = vshll.u32 %v906, 16
        %v967 = vrot.slane %v965, 1
        %v968 = vsel %vm924, %v963, %v967
        %v970 = vshrl.u32 %v891, 16
        %v972 = vshll.u32 %v891, 16
        %v974 = vrot.slane %v972, 1
        %v975 = vor.u32 %v970, %v974
        %v977 = vshll.u32 %v907, 16
        %v979 = vrot.slane %v977, 1
        %v980 = vsel %vm924, %v975, %v979
        %v982 = vshrl.u32 %v892, 16
        %v984 = vshll.u32 %v892, 16
        %v986 = vrot.slane %v984, 1
        %v987 = vor.u32 %v982, %v986
        %v989 = vshll.u32 %v908, 16
        %v991 = vrot.slane %v989, 1
        %v992 = vsel %vm924, %v987, %v991
        %v994 = vshrl.u32 %v893, 16
        %v996 = vshll.u32 %v893, 16
        %v998 = vrot.slane %v996, 1
        %v999 = vor.u32 %v994, %v998
        %v1001 = vshll.u32 %v909, 16
        %v1003 = vrot.slane %v1001, 1
        %v1004 = vsel %vm924, %v999, %v1003
        %v1006 = vshrl.u32 %v894, 16
        %v1008 = vshll.u32 %v894, 16
        %v1010 = vrot.slane %v1008, 1
        %v1011 = vor.u32 %v1006, %v1010
        %v1013 = vshll.u32 %v910, 16
        %v1015 = vrot.slane %v1013, 1
        %v1016 = vsel %vm924, %v1011, %v1015
        %v1018 = vshrl.u32 %v895, 16
        %v1020 = vshll.u32 %v895, 16
        %v1022 = vrot.slane %v1020, 1
        %v1023 = vor.u32 %v1018, %v1022
        %v1025 = vshll.u32 %v911, 16
        %v1027 = vrot.slane %v1025, 1
        %v1028 = vsel %vm924, %v1023, %v1027
        %v1030 = vshrl.u32 %v896, 16
        %v1032 = vshll.u32 %v896, 16
        %v1034 = vrot.slane %v1032, 1
        %v1035 = vor.u32 %v1030, %v1034
        %v1037 = vshll.u32 %v912, 16
        %v1039 = vrot.slane %v1037, 1
        %v1040 = vsel %vm924, %v1035, %v1039
        %v1042 = vshrl.u32 %v897, 16
        %v1044 = vshll.u32 %v897, 16
        %v1046 = vrot.slane %v1044, 1
        %v1047 = vor.u32 %v1042, %v1046
        %v1049 = vshll.u32 %v913, 16
        %v1051 = vrot.slane %v1049, 1
        %v1052 = vsel %vm924, %v1047, %v1051
        %v1054 = vshrl.u32 %v898, 16
        %v1056 = vshll.u32 %v898, 16
        %v1058 = vrot.slane %v1056, 1
        %v1059 = vor.u32 %v1054, %v1058
        %v1061 = vshll.u32 %v914, 16
        %v1063 = vrot.slane %v1061, 1
        %v1064 = vsel %vm924, %v1059, %v1063
        %v1066 = vshrl.u32 %v899, 16
        %v1068 = vshll.u32 %v899, 16
        %v1070 = vrot.slane %v1068, 1
        %v1071 = vor.u32 %v1066, %v1070
        %v1073 = vshll.u32 %v915, 16
        %v1075 = vrot.slane %v1073, 1
        %v1076 = vsel %vm924, %v1071, %v1075
        %v1078 = vshrl.u32 %v900, 16
        %v1080 = vshll.u32 %v900, 16
        %v1082 = vrot.slane %v1080, 1
        %v1083 = vor.u32 %v1078, %v1082
        %v1085 = vshll.u32 %v916, 16
        %v1087 = vrot.slane %v1085, 1
        %v1088 = vsel %vm924, %v1083, %v1087
        %v1090 = vshrl.u32 %v901, 16
        %v1092 = vshll.u32 %v901, 16
        %v1094 = vrot.slane %v1092, 1
        %v1095 = vor.u32 %v1090, %v1094
        %v1097 = vshll.u32 %v917, 16
        %v1099 = vrot.slane %v1097, 1
        %v1100 = vsel %vm924, %v1095, %v1099
        %v1102 = vshrl.u32 %v902, 16
        %v1104 = vshll.u32 %v902, 16
        %v1106 = vrot.slane %v1104, 1
        %v1107 = vor.u32 %v1102, %v1106
        %v1109 = vshll.u32 %v918, 16
        %v1111 = vrot.slane %v1109, 1
        %v1112 = vsel %vm924, %v1107, %v1111
        %s1113 = scalar_lea.vmem %s3, 16
        %v1114 = vld [vmem:[%s1113] sm:$0xf]
        %v1115 = vld [vmem:[%s1113 + $0x4] sm:$0xf]
        %v1116 = vld [vmem:[%s1113 + $0x8] sm:$0xf]
        %v1117 = vld [vmem:[%s1113 + $0xc] sm:$0xf]
        %v1122 = vunpack.c.l.b16 %v1114
        %v1123 = vunpack.c.l.b16 %v1115
        %v1124 = vunpack.c.l.b16 %v1116
        %v1125 = vunpack.c.l.b16 %v1117
        %v1126 = vpack.c.b16 %v1123, %v1122
        %v1127 = vpack.c.b16 %v1125, %v1124
        %vm1130 = vcmask 261120
        %v1132 = vsel %vm1130, %v932, 0
        %v1135 = vsel %vm1130, %v944, 0
        %v1138 = vsel %vm1130, %v956, 0
        %v1141 = vsel %vm1130, %v968, 0
        %v1144 = vsel %vm1130, %v980, 0
        %v1147 = vsel %vm1130, %v992, 0
        %v1150 = vsel %vm1130, %v1004, 0
        %v1153 = vsel %vm1130, %v1016, 0
        %v1156 = vsel %vm1130, %v1028, 0
        %v1159 = vsel %vm1130, %v1040, 0
        %v1162 = vsel %vm1130, %v1052, 0
        %v1165 = vsel %vm1130, %v1064, 0
        %v1168 = vsel %vm1130, %v1076, 0
        %v1171 = vsel %vm1130, %v1088, 0
        %v1174 = vsel %vm1130, %v1100, 0
        %v1177 = vsel %vm1130, %v1112, 0
        %1179 = vmatprep.subr.bf16.mxu0 0
        %1180 = vmatpush1.bf16.msra.mxu0 %v1126
        %1181 = vmatprep.subr.bf16.mxu0 0
        %1182 = vmatpush1.bf16.msra.mxu0 %v1127
        %1183 = vmatprep.subr.bf16.mxu0 0
        %1184 = vmatpush1.bf16.msra.mxu0 0
        %1185 = vmatprep.subr.bf16.mxu0 0
        %1186 = vmatpush1.bf16.msra.mxu0 0
        %1187 = vmatprep.subr.bf16.mxu0 0
        %1188 = vmatpush1.bf16.msra.mxu0 0
        %1189 = vmatprep.subr.bf16.mxu0 0
        %1190 = vmatpush1.bf16.msra.mxu0 0
        %1191 = vmatprep.subr.bf16.mxu0 0
        %1192 = vmatpush1.bf16.msra.mxu0 0
        %1193 = vmatprep.subr.bf16.mxu0 0
        %1194 = vmatpush1.bf16.msra.mxu0 0
        %1195 = vmatprep.subr.bf16.mxu0 0
        %1196 = vmatpush1.bf16.msra.mxu0 0
        %1197 = vmatprep.subr.bf16.mxu0 0
        %1198 = vmatpush1.bf16.msra.mxu0 0
        %1199 = vmatprep.subr.bf16.mxu0 0
        %1200 = vmatpush1.bf16.msra.mxu0 0
        %1201 = vmatprep.subr.bf16.mxu0 0
        %1202 = vmatpush1.bf16.msra.mxu0 0
        %1203 = vmatprep.subr.bf16.mxu0 0
        %1204 = vmatpush1.bf16.msra.mxu0 0
        %1205 = vmatprep.subr.bf16.mxu0 0
        %1206 = vmatpush1.bf16.msra.mxu0 0
        %1207 = vmatprep.subr.bf16.mxu0 0
        %1208 = vmatpush1.bf16.msra.mxu0 0
        %1209 = vmatprep.subr.bf16.mxu0 0
        %1210 = vmatpush1.bf16.msra.mxu0 0
        %1211 = vmatprep.mubr.bf16.mxu0 0
        %1212 = vmatmul.mubr.bf16.gmra.mrb[0].mxu0 %v1132
        %v1213 = vpop.f32.mrb[0].mxu0
        %v1214 = vadd.f32 0.0, %v1213
        %v1215 = vpop.f32.mrb[0].mxu0
        %v1216 = vpop.f32.mrb[0].mxu0
        %v1217 = vadd.f32 0.0, %v1216
        %v1218 = vpop.f32.mrb[0].mxu0
        %1219 = vmatprep.mubr.bf16.mxu0 0
        %1220 = vmatmul.mubr.bf16.gmra.mrb[0].mxu0 %v1135
        %v1221 = vpop.f32.mrb[0].mxu0
        %v1222 = vadd.f32 0.0, %v1221
        %v1223 = vpop.f32.mrb[0].mxu0
        %v1224 = vpop.f32.mrb[0].mxu0
        %v1225 = vadd.f32 0.0, %v1224
        %v1226 = vpop.f32.mrb[0].mxu0
        %1227 = vmatprep.mubr.bf16.mxu0 0
        %1228 = vmatmul.mubr.bf16.gmra.mrb[0].mxu0 %v1138
        %v1229 = vpop.f32.mrb[0].mxu0
        %v1230 = vadd.f32 0.0, %v1229
        %v1231 = vpop.f32.mrb[0].mxu0
        %v1232 = vpop.f32.mrb[0].mxu0
        %v1233 = vadd.f32 0.0, %v1232
        %v1234 = vpop.f32.mrb[0].mxu0
        %1235 = vmatprep.mubr.bf16.mxu0 0
        %1236 = vmatmul.mubr.bf16.gmra.mrb[0].mxu0 %v1141
        %v1237 = vpop.f32.mrb[0].mxu0
        %v1238 = vadd.f32 0.0, %v1237
        %v1239 = vpop.f32.mrb[0].mxu0
        %v1240 = vpop.f32.mrb[0].mxu0
        %v1241 = vadd.f32 0.0, %v1240
        %v1242 = vpop.f32.mrb[0].mxu0
        %1243 = vmatprep.mubr.bf16.mxu0 0
        %1244 = vmatmul.mubr.bf16.gmra.mrb[0].mxu0 %v1144
        %v1245 = vpop.f32.mrb[0].mxu0
        %v1246 = vadd.f32 0.0, %v1245
        %v1247 = vpop.f32.mrb[0].mxu0
        %v1248 = vpop.f32.mrb[0].mxu0
        %v1249 = vadd.f32 0.0, %v1248
        %v1250 = vpop.f32.mrb[0].mxu0
        %1251 = vmatprep.mubr.bf16.mxu0 0
        %1252 = vmatmul.mubr.bf16.gmra.mrb[0].mxu0 %v1147
        %v1253 = vpop.f32.mrb[0].mxu0
        %v1254 = vadd.f32 0.0, %v1253
        %v1255 = vpop.f32.mrb[0].mxu0
        %v1256 = vpop.f32.mrb[0].mxu0
        %v1257 = vadd.f32 0.0, %v1256
        %v1258 = vpop.f32.mrb[0].mxu0
        %1259 = vmatprep.mubr.bf16.mxu0 0
        %1260 = vmatmul.mubr.bf16.gmra.mrb[0].mxu0 %v1150
        %v1261 = vpop.f32.mrb[0].mxu0
        %v1262 = vadd.f32 0.0, %v1261
        %v1263 = vpop.f32.mrb[0].mxu0
        %v1264 = vpop.f32.mrb[0].mxu0
        %v1265 = vadd.f32 0.0, %v1264
        %v1266 = vpop.f32.mrb[0].mxu0
        %1267 = vmatprep.mubr.bf16.mxu0 0
        %1268 = vmatmul.mubr.bf16.gmra.mrb[0].mxu0 %v1153
        %v1269 = vpop.f32.mrb[0].mxu0
        %v1270 = vadd.f32 0.0, %v1269
        %v1271 = vpop.f32.mrb[0].mxu0
        %v1272 = vpop.f32.mrb[0].mxu0
        %v1273 = vadd.f32 0.0, %v1272
        %v1274 = vpop.f32.mrb[0].mxu0
        %1275 = vmatprep.mubr.bf16.mxu0 0
        %1276 = vmatmul.mubr.bf16.gmra.mrb[0].mxu0 %v1156
        %v1277 = vpop.f32.mrb[0].mxu0
        %v1278 = vadd.f32 0.0, %v1277
        %v1279 = vpop.f32.mrb[0].mxu0
        %v1280 = vpop.f32.mrb[0].mxu0
        %v1281 = vadd.f32 0.0, %v1280
        %v1282 = vpop.f32.mrb[0].mxu0
        %1283 = vmatprep.mubr.bf16.mxu0 0
        %1284 = vmatmul.mubr.bf16.gmra.mrb[0].mxu0 %v1159
        %v1285 = vpop.f32.mrb[0].mxu0
        %v1286 = vadd.f32 0.0, %v1285
        %v1287 = vpop.f32.mrb[0].mxu0
        %v1288 = vpop.f32.mrb[0].mxu0
        %v1289 = vadd.f32 0.0, %v1288
        %v1290 = vpop.f32.mrb[0].mxu0
        %1291 = vmatprep.mubr.bf16.mxu0 0
        %1292 = vmatmul.mubr.bf16.gmra.mrb[0].mxu0 %v1162
        %v1293 = vpop.f32.mrb[0].mxu0
        %v1294 = vadd.f32 0.0, %v1293
        %v1295 = vpop.f32.mrb[0].mxu0
        %v1296 = vpop.f32.mrb[0].mxu0
        %v1297 = vadd.f32 0.0, %v1296
        %v1298 = vpop.f32.mrb[0].mxu0
        %1299 = vmatprep.mubr.bf16.mxu0 0
        %1300 = vmatmul.mubr.bf16.gmra.mrb[0].mxu0 %v1165
        %v1301 = vpop.f32.mrb[0].mxu0
        %v1302 = vadd.f32 0.0, %v1301
        %v1303 = vpop.f32.mrb[0].mxu0
        %v1304 = vpop.f32.mrb[0].mxu0
        %v1305 = vadd.f32 0.0, %v1304
        %v1306 = vpop.f32.mrb[0].mxu0
        %1307 = vmatprep.mubr.bf16.mxu0 0
        %1308 = vmatmul.mubr.bf16.gmra.mrb[0].mxu0 %v1168
        %v1309 = vpop.f32.mrb[0].mxu0
        %v1310 = vadd.f32 0.0, %v1309
        %v1311 = vpop.f32.mrb[0].mxu0
        %v1312 = vpop.f32.mrb[0].mxu0
        %v1313 = vadd.f32 0.0, %v1312
        %v1314 = vpop.f32.mrb[0].mxu0
        %1315 = vmatprep.mubr.bf16.mxu0 0
        %1316 = vmatmul.mubr.bf16.gmra.mrb[0].mxu0 %v1171
        %v1317 = vpop.f32.mrb[0].mxu0
        %v1318 = vadd.f32 0.0, %v1317
        %v1319 = vpop.f32.mrb[0].mxu0
        %v1320 = vpop.f32.mrb[0].mxu0
        %v1321 = vadd.f32 0.0, %v1320
        %v1322 = vpop.f32.mrb[0].mxu0
        %1323 = vmatprep.mubr.bf16.mxu0 0
        %1324 = vmatmul.mubr.bf16.gmra.mrb[0].mxu0 %v1174
        %v1325 = vpop.f32.mrb[0].mxu0
        %v1326 = vadd.f32 0.0, %v1325
        %v1327 = vpop.f32.mrb[0].mxu0
        %v1328 = vpop.f32.mrb[0].mxu0
        %v1329 = vadd.f32 0.0, %v1328
        %v1330 = vpop.f32.mrb[0].mxu0
        %1331 = vmatprep.mubr.bf16.mxu0 0
        %1332 = vmatmul.mubr.bf16.gmra.mrb[0].mxu0 %v1177
        %v1333 = vpop.f32.mrb[0].mxu0
        %v1334 = vadd.f32 0.0, %v1333
        %v1335 = vpop.f32.mrb[0].mxu0
        %v1336 = vpop.f32.mrb[0].mxu0
        %v1337 = vadd.f32 0.0, %v1336
        %v1338 = vpop.f32.mrb[0].mxu0
        %1339 = vdwg.mxu0
        %v1344 = vunpack.c.l.b16 %v920
        %v1345 = vunpack.c.l.b16 %v921
        %v1346 = vunpack.c.l.b16 %v922
        %v1347 = vunpack.c.l.b16 %v923
        %v1348 = vpack.c.b16 %v1345, %v1344
        %v1349 = vpack.c.b16 %v1347, %v1346
        %v1352 = vsel %vm1130, 0, 0
        %v1354 = vsel %vm1130, %v888, 0
        %v1356 = vsel %vm1130, %v889, 0
        %v1358 = vsel %vm1130, %v890, 0
        %v1360 = vsel %vm1130, %v891, 0
        %v1362 = vsel %vm1130, %v892, 0
        %v1364 = vsel %vm1130, %v893, 0
        %v1366 = vsel %vm1130, %v894, 0
        %v1368 = vsel %vm1130, %v895, 0
        %v1370 = vsel %vm1130, %v896, 0
        %v1372 = vsel %vm1130, %v897, 0
        %v1374 = vsel %vm1130, %v898, 0
        %v1376 = vsel %vm1130, %v899, 0
        %v1378 = vsel %vm1130, %v900, 0
        %v1380 = vsel %vm1130, %v901, 0
        %v1382 = vsel %vm1130, %v902, 0
        %1384 = vmatprep.subr.bf16.mxu0 0
        %1385 = vmatpush1.bf16.msra.mxu0 %v1348
        %1386 = vmatprep.subr.bf16.mxu0 0
        %1387 = vmatpush1.bf16.msra.mxu0 %v1349
        %1388 = vmatprep.subr.bf16.mxu0 0
        %1389 = vmatpush1.bf16.msra.mxu0 0
        %1390 = vmatprep.subr.bf16.mxu0 0
        %1391 = vmatpush1.bf16.msra.mxu0 0
        %1392 = vmatprep.subr.bf16.mxu0 0
        %1393 = vmatpush1.bf16.msra.mxu0 0
        %1394 = vmatprep.subr.bf16.mxu0 0
        %1395 = vmatpush1.bf16.msra.mxu0 0
        %1396 = vmatprep.subr.bf16.mxu0 0
        %1397 = vmatpush1.bf16.msra.mxu0 0
        %1398 = vmatprep.subr.bf16.mxu0 0
        %1399 = vmatpush1.bf16.msra.mxu0 0
        %1400 = vmatprep.subr.bf16.mxu0 0
        %1401 = vmatpush1.bf16.msra.mxu0 0
        %1402 = vmatprep.subr.bf16.mxu0 0
        %1403 = vmatpush1.bf16.msra.mxu0 0
        %1404 = vmatprep.subr.bf16.mxu0 0
        %1405 = vmatpush1.bf16.msra.mxu0 0
        %1406 = vmatprep.subr.bf16.mxu0 0
        %1407 = vmatpush1.bf16.msra.mxu0 0
        %1408 = vmatprep.subr.bf16.mxu0 0
        %1409 = vmatpush1.bf16.msra.mxu0 0
        %1410 = vmatprep.subr.bf16.mxu0 0
        %1411 = vmatpush1.bf16.msra.mxu0 0
        %1412 = vmatprep.subr.bf16.mxu0 0
        %1413 = vmatpush1.bf16.msra.mxu0 0
        %1414 = vmatprep.subr.bf16.mxu0 0
        %1415 = vmatpush1.bf16.msra.mxu0 0
        %1416 = vmatprep.mubr.bf16.mxu0 0
        %1417 = vmatmul.mubr.bf16.gmra.mrb[0].mxu0 %v1352
        %v1418 = vpop.f32.mrb[0].mxu0
        %v1419 = vadd.f32 %v1214, %v1418
        %v1420 = vpop.f32.mrb[0].mxu0
        %v1421 = vpop.f32.mrb[0].mxu0
        %v1422 = vadd.f32 %v1217, %v1421
        %v1423 = vpop.f32.mrb[0].mxu0
        %1424 = vmatprep.mubr.bf16.mxu0 0
        %1425 = vmatmul.mubr.bf16.gmra.mrb[0].mxu0 %v1354
        %v1426 = vpop.f32.mrb[0].mxu0
        %v1427 = vadd.f32 %v1222, %v1426
        %v1428 = vpop.f32.mrb[0].mxu0
        %v1429 = vpop.f32.mrb[0].mxu0
        %v1430 = vadd.f32 %v1225, %v1429
        %v1431 = vpop.f32.mrb[0].mxu0
        %1432 = vmatprep.mubr.bf16.mxu0 0
        %1433 = vmatmul.mubr.bf16.gmra.mrb[0].mxu0 %v1356
        %v1434 = vpop.f32.mrb[0].mxu0
        %v1435 = vadd.f32 %v1230, %v1434
        %v1436 = vpop.f32.mrb[0].mxu0
        %v1437 = vpop.f32.mrb[0].mxu0
        %v1438 = vadd.f32 %v1233, %v1437
        %v1439 = vpop.f32.mrb[0].mxu0
        %1440 = vmatprep.mubr.bf16.mxu0 0
        %1441 = vmatmul.mubr.bf16.gmra.mrb[0].mxu0 %v1358
        %v1442 = vpop.f32.mrb[0].mxu0
        %v1443 = vadd.f32 %v1238, %v1442
        %v1444 = vpop.f32.mrb[0].mxu0
        %v1445 = vpop.f32.mrb[0].mxu0
        %v1446 = vadd.f32 %v1241, %v1445
        %v1447 = vpop.f32.mrb[0].mxu0
        %1448 = vmatprep.mubr.bf16.mxu0 0
        %1449 = vmatmul.mubr.bf16.gmra.mrb[0].mxu0 %v1360
        %v1450 = vpop.f32.mrb[0].mxu0
        %v1451 = vadd.f32 %v1246, %v1450
        %v1452 = vpop.f32.mrb[0].mxu0
        %v1453 = vpop.f32.mrb[0].mxu0
        %v1454 = vadd.f32 %v1249, %v1453
        %v1455 = vpop.f32.mrb[0].mxu0
        %1456 = vmatprep.mubr.bf16.mxu0 0
        %1457 = vmatmul.mubr.bf16.gmra.mrb[0].mxu0 %v1362
        %v1458 = vpop.f32.mrb[0].mxu0
        %v1459 = vadd.f32 %v1254, %v1458
        %v1460 = vpop.f32.mrb[0].mxu0
        %v1461 = vpop.f32.mrb[0].mxu0
        %v1462 = vadd.f32 %v1257, %v1461
        %v1463 = vpop.f32.mrb[0].mxu0
        %1464 = vmatprep.mubr.bf16.mxu0 0
        %1465 = vmatmul.mubr.bf16.gmra.mrb[0].mxu0 %v1364
        %v1466 = vpop.f32.mrb[0].mxu0
        %v1467 = vadd.f32 %v1262, %v1466
        %v1468 = vpop.f32.mrb[0].mxu0
        %v1469 = vpop.f32.mrb[0].mxu0
        %v1470 = vadd.f32 %v1265, %v1469
        %v1471 = vpop.f32.mrb[0].mxu0
        %1472 = vmatprep.mubr.bf16.mxu0 0
        %1473 = vmatmul.mubr.bf16.gmra.mrb[0].mxu0 %v1366
        %v1474 = vpop.f32.mrb[0].mxu0
        %v1475 = vadd.f32 %v1270, %v1474
        %v1476 = vpop.f32.mrb[0].mxu0
        %v1477 = vpop.f32.mrb[0].mxu0
        %v1478 = vadd.f32 %v1273, %v1477
        %v1479 = vpop.f32.mrb[0].mxu0
        %1480 = vmatprep.mubr.bf16.mxu0 0
        %1481 = vmatmul.mubr.bf16.gmra.mrb[0].mxu0 %v1368
        %v1482 = vpop.f32.mrb[0].mxu0
        %v1483 = vadd.f32 %v1278, %v1482
        %v1484 = vpop.f32.mrb[0].mxu0
        %v1485 = vpop.f32.mrb[0].mxu0
        %v1486 = vadd.f32 %v1281, %v1485
        %v1487 = vpop.f32.mrb[0].mxu0
        %1488 = vmatprep.mubr.bf16.mxu0 0
        %1489 = vmatmul.mubr.bf16.gmra.mrb[0].mxu0 %v1370
        %v1490 = vpop.f32.mrb[0].mxu0
        %v1491 = vadd.f32 %v1286, %v1490
        %v1492 = vpop.f32.mrb[0].mxu0
        %v1493 = vpop.f32.mrb[0].mxu0
        %v1494 = vadd.f32 %v1289, %v1493
        %v1495 = vpop.f32.mrb[0].mxu0
        %1496 = vmatprep.mubr.bf16.mxu0 0
        %1497 = vmatmul.mubr.bf16.gmra.mrb[0].mxu0 %v1372
        %v1498 = vpop.f32.mrb[0].mxu0
        %v1499 = vadd.f32 %v1294, %v1498
        %v1500 = vpop.f32.mrb[0].mxu0
        %v1501 = vpop.f32.mrb[0].mxu0
        %v1502 = vadd.f32 %v1297, %v1501
        %v1503 = vpop.f32.mrb[0].mxu0
        %1504 = vmatprep.mubr.bf16.mxu0 0
        %1505 = vmatmul.mubr.bf16.gmra.mrb[0].mxu0 %v1374
        %v1506 = vpop.f32.mrb[0].mxu0
        %v1507 = vadd.f32 %v1302, %v1506
        %v1508 = vpop.f32.mrb[0].mxu0
        %v1509 = vpop.f32.mrb[0].mxu0
        %v1510 = vadd.f32 %v1305, %v1509
        %v1511 = vpop.f32.mrb[0].mxu0
        %1512 = vmatprep.mubr.bf16.mxu0 0
        %1513 = vmatmul.mubr.bf16.gmra.mrb[0].mxu0 %v1376
        %v1514 = vpop.f32.mrb[0].mxu0
        %v1515 = vadd.f32 %v1310, %v1514
        %v1516 = vpop.f32.mrb[0].mxu0
        %v1517 = vpop.f32.mrb[0].mxu0
        %v1518 = vadd.f32 %v1313, %v1517
        %v1519 = vpop.f32.mrb[0].mxu0
        %1520 = vmatprep.mubr.bf16.mxu0 0
        %1521 = vmatmul.mubr.bf16.gmra.mrb[0].mxu0 %v1378
        %v1522 = vpop.f32.mrb[0].mxu0
        %v1523 = vadd.f32 %v1318, %v1522
        %v1524 = vpop.f32.mrb[0].mxu0
        %v1525 = vpop.f32.mrb[0].mxu0
        %v1526 = vadd.f32 %v1321, %v1525
        %v1527 = vpop.f32.mrb[0].mxu0
        %1528 = vmatprep.mubr.bf16.mxu0 0
        %1529 = vmatmul.mubr.bf16.gmra.mrb[0].mxu0 %v1380
        %v1530 = vpop.f32.mrb[0].mxu0
        %v1531 = vadd.f32 %v1326, %v1530
        %v1532 = vpop.f32.mrb[0].mxu0
        %v1533 = vpop.f32.mrb[0].mxu0
        %v1534 = vadd.f32 %v1329, %v1533
        %v1535 = vpop.f32.mrb[0].mxu0
        %1536 = vmatprep.mubr.bf16.mxu0 0
        %1537 = vmatmul.mubr.bf16.gmra.mrb[0].mxu0 %v1382
        %v1538 = vpop.f32.mrb[0].mxu0
        %v1539 = vadd.f32 %v1334, %v1538
        %v1540 = vpop.f32.mrb[0].mxu0
        %v1541 = vpop.f32.mrb[0].mxu0
        %v1542 = vadd.f32 %v1337, %v1541
        %v1543 = vpop.f32.mrb[0].mxu0
        %1544 = vdwg.mxu0
        %vm1576 = vcmask 1046528
        %v1577 = vrot.slane 0, 1
        %v1578 = vsel %vm1576, %v1577, %v1577
        %v1579 = vrot.slane %v888, 1
        %v1580 = vrot.slane %v904, 1
        %v1581 = vsel %vm1576, %v1579, %v1580
        %v1582 = vrot.slane %v889, 1
        %v1583 = vrot.slane %v905, 1
        %v1584 = vsel %vm1576, %v1582, %v1583
        %v1585 = vrot.slane %v890, 1
        %v1586 = vrot.slane %v906, 1
        %v1587 = vsel %vm1576, %v1585, %v1586
        %v1588 = vrot.slane %v891, 1
        %v1589 = vrot.slane %v907, 1
        %v1590 = vsel %vm1576, %v1588, %v1589
        %v1591 = vrot.slane %v892, 1
        %v1592 = vrot.slane %v908, 1
        %v1593 = vsel %vm1576, %v1591, %v1592
        %v1594 = vrot.slane %v893, 1
        %v1595 = vrot.slane %v909, 1
        %v1596 = vsel %vm1576, %v1594, %v1595
        %v1597 = vrot.slane %v894, 1
        %v1598 = vrot.slane %v910, 1
        %v1599 = vsel %vm1576, %v1597, %v1598
        %v1600 = vrot.slane %v895, 1
        %v1601 = vrot.slane %v911, 1
        %v1602 = vsel %vm1576, %v1600, %v1601
        %v1603 = vrot.slane %v896, 1
        %v1604 = vrot.slane %v912, 1
        %v1605 = vsel %vm1576, %v1603, %v1604
        %v1606 = vrot.slane %v897, 1
        %v1607 = vrot.slane %v913, 1
        %v1608 = vsel %vm1576, %v1606, %v1607
        %v1609 = vrot.slane %v898, 1
        %v1610 = vrot.slane %v914, 1
        %v1611 = vsel %vm1576, %v1609, %v1610
        %v1612 = vrot.slane %v899, 1
        %v1613 = vrot.slane %v915, 1
        %v1614 = vsel %vm1576, %v1612, %v1613
        %v1615 = vrot.slane %v900, 1
        %v1616 = vrot.slane %v916, 1
        %v1617 = vsel %vm1576, %v1615, %v1616
        %v1618 = vrot.slane %v901, 1
        %v1619 = vrot.slane %v917, 1
        %v1620 = vsel %vm1576, %v1618, %v1619
        %v1621 = vrot.slane %v902, 1
        %v1622 = vrot.slane %v918, 1
        %v1623 = vsel %vm1576, %v1621, %v1622
        %s1624 = scalar_lea.vmem %s3, 32
        %v1625 = vld [vmem:[%s1624] sm:$0xf]
        %v1626 = vld [vmem:[%s1624 + $0x4] sm:$0xf]
        %v1627 = vld [vmem:[%s1624 + $0x8] sm:$0xf]
        %v1628 = vld [vmem:[%s1624 + $0xc] sm:$0xf]
        %v1633 = vunpack.c.l.b16 %v1625
        %v1634 = vunpack.c.l.b16 %v1626
        %v1635 = vunpack.c.l.b16 %v1627
        %v1636 = vunpack.c.l.b16 %v1628
        %v1637 = vpack.c.b16 %v1634, %v1633
        %v1638 = vpack.c.b16 %v1636, %v1635
        %v1642 = vsel %vm1130, %v1578, 0
        %v1645 = vsel %vm1130, %v1581, 0
        %v1648 = vsel %vm1130, %v1584, 0
        %v1651 = vsel %vm1130, %v1587, 0
        %v1654 = vsel %vm1130, %v1590, 0
        %v1657 = vsel %vm1130, %v1593, 0
        %v1660 = vsel %vm1130, %v1596, 0
        %v1663 = vsel %vm1130, %v1599, 0
        %v1666 = vsel %vm1130, %v1602, 0
        %v1669 = vsel %vm1130, %v1605, 0
        %v1672 = vsel %vm1130, %v1608, 0
        %v1675 = vsel %vm1130, %v1611, 0
        %v1678 = vsel %vm1130, %v1614, 0
        %v1681 = vsel %vm1130, %v1617, 0
        %v1684 = vsel %vm1130, %v1620, 0
        %v1687 = vsel %vm1130, %v1623, 0
        %1689 = vmatprep.subr.bf16.mxu0 0
        %1690 = vmatpush1.bf16.msra.mxu0 %v1637
        %1691 = vmatprep.subr.bf16.mxu0 0
        %1692 = vmatpush1.bf16.msra.mxu0 %v1638
        %1693 = vmatprep.subr.bf16.mxu0 0
        %1694 = vmatpush1.bf16.msra.mxu0 0
        %1695 = vmatprep.subr.bf16.mxu0 0
        %1696 = vmatpush1.bf16.msra.mxu0 0
        %1697 = vmatprep.subr.bf16.mxu0 0
        %1698 = vmatpush1.bf16.msra.mxu0 0
        %1699 = vmatprep.subr.bf16.mxu0 0
        %1700 = vmatpush1.bf16.msra.mxu0 0
        %1701 = vmatprep.subr.bf16.mxu0 0
        %1702 = vmatpush1.bf16.msra.mxu0 0
        %1703 = vmatprep.subr.bf16.mxu0 0
        %1704 = vmatpush1.bf16.msra.mxu0 0
        %1705 = vmatprep.subr.bf16.mxu0 0
        %1706 = vmatpush1.bf16.msra.mxu0 0
        %1707 = vmatprep.subr.bf16.mxu0 0
        %1708 = vmatpush1.bf16.msra.mxu0 0
        %1709 = vmatprep.subr.bf16.mxu0 0
        %1710 = vmatpush1.bf16.msra.mxu0 0
        %1711 = vmatprep.subr.bf16.mxu0 0
        %1712 = vmatpush1.bf16.msra.mxu0 0
        %1713 = vmatprep.subr.bf16.mxu0 0
        %1714 = vmatpush1.bf16.msra.mxu0 0
        %1715 = vmatprep.subr.bf16.mxu0 0
        %1716 = vmatpush1.bf16.msra.mxu0 0
        %1717 = vmatprep.subr.bf16.mxu0 0
        %1718 = vmatpush1.bf16.msra.mxu0 0
        %1719 = vmatprep.subr.bf16.mxu0 0
        %1720 = vmatpush1.bf16.msra.mxu0 0
        %1721 = vmatprep.mubr.bf16.mxu0 0
        %1722 = vmatmul.mubr.bf16.gmra.mrb[0].mxu0 %v1642
        %v1723 = vpop.f32.mrb[0].mxu0
        %v1724 = vadd.f32 0.0, %v1723
        %v1725 = vpop.f32.mrb[0].mxu0
        %v1726 = vpop.f32.mrb[0].mxu0
        %v1727 = vadd.f32 0.0, %v1726
        %v1728 = vpop.f32.mrb[0].mxu0
        %1729 = vmatprep.mubr.bf16.mxu0 0
        %1730 = vmatmul.mubr.bf16.gmra.mrb[0].mxu0 %v1645
        %v1731 = vpop.f32.mrb[0].mxu0
        %v1732 = vadd.f32 0.0, %v1731
        %v1733 = vpop.f32.mrb[0].mxu0
        %v1734 = vpop.f32.mrb[0].mxu0
        %v1735 = vadd.f32 0.0, %v1734
        %v1736 = vpop.f32.mrb[0].mxu0
        %1737 = vmatprep.mubr.bf16.mxu0 0
        %1738 = vmatmul.mubr.bf16.gmra.mrb[0].mxu0 %v1648
        %v1739 = vpop.f32.mrb[0].mxu0
        %v1740 = vadd.f32 0.0, %v1739
        %v1741 = vpop.f32.mrb[0].mxu0
        %v1742 = vpop.f32.mrb[0].mxu0
        %v1743 = vadd.f32 0.0, %v1742
        %v1744 = vpop.f32.mrb[0].mxu0
        %1745 = vmatprep.mubr.bf16.mxu0 0
        %1746 = vmatmul.mubr.bf16.gmra.mrb[0].mxu0 %v1651
        %v1747 = vpop.f32.mrb[0].mxu0
        %v1748 = vadd.f32 0.0, %v1747
        %v1749 = vpop.f32.mrb[0].mxu0
        %v1750 = vpop.f32.mrb[0].mxu0
        %v1751 = vadd.f32 0.0, %v1750
        %v1752 = vpop.f32.mrb[0].mxu0
        %1753 = vmatprep.mubr.bf16.mxu0 0
        %1754 = vmatmul.mubr.bf16.gmra.mrb[0].mxu0 %v1654
        %v1755 = vpop.f32.mrb[0].mxu0
        %v1756 = vadd.f32 0.0, %v1755
        %v1757 = vpop.f32.mrb[0].mxu0
        %v1758 = vpop.f32.mrb[0].mxu0
        %v1759 = vadd.f32 0.0, %v1758
        %v1760 = vpop.f32.mrb[0].mxu0
        %1761 = vmatprep.mubr.bf16.mxu0 0
        %1762 = vmatmul.mubr.bf16.gmra.mrb[0].mxu0 %v1657
        %v1763 = vpop.f32.mrb[0].mxu0
        %v1764 = vadd.f32 0.0, %v1763
        %v1765 = vpop.f32.mrb[0].mxu0
        %v1766 = vpop.f32.mrb[0].mxu0
        %v1767 = vadd.f32 0.0, %v1766
        %v1768 = vpop.f32.mrb[0].mxu0
        %1769 = vmatprep.mubr.bf16.mxu0 0
        %1770 = vmatmul.mubr.bf16.gmra.mrb[0].mxu0 %v1660
        %v1771 = vpop.f32.mrb[0].mxu0
        %v1772 = vadd.f32 0.0, %v1771
        %v1773 = vpop.f32.mrb[0].mxu0
        %v1774 = vpop.f32.mrb[0].mxu0
        %v1775 = vadd.f32 0.0, %v1774
        %v1776 = vpop.f32.mrb[0].mxu0
        %1777 = vmatprep.mubr.bf16.mxu0 0
        %1778 = vmatmul.mubr.bf16.gmra.mrb[0].mxu0 %v1663
        %v1779 = vpop.f32.mrb[0].mxu0
        %v1780 = vadd.f32 0.0, %v1779
        %v1781 = vpop.f32.mrb[0].mxu0
        %v1782 = vpop.f32.mrb[0].mxu0
        %v1783 = vadd.f32 0.0, %v1782
        %v1784 = vpop.f32.mrb[0].mxu0
        %1785 = vmatprep.mubr.bf16.mxu0 0
        %1786 = vmatmul.mubr.bf16.gmra.mrb[0].mxu0 %v1666
        %v1787 = vpop.f32.mrb[0].mxu0
        %v1788 = vadd.f32 0.0, %v1787
        %v1789 = vpop.f32.mrb[0].mxu0
        %v1790 = vpop.f32.mrb[0].mxu0
        %v1791 = vadd.f32 0.0, %v1790
        %v1792 = vpop.f32.mrb[0].mxu0
        %1793 = vmatprep.mubr.bf16.mxu0 0
        %1794 = vmatmul.mubr.bf16.gmra.mrb[0].mxu0 %v1669
        %v1795 = vpop.f32.mrb[0].mxu0
        %v1796 = vadd.f32 0.0, %v1795
        %v1797 = vpop.f32.mrb[0].mxu0
        %v1798 = vpop.f32.mrb[0].mxu0
        %v1799 = vadd.f32 0.0, %v1798
        %v1800 = vpop.f32.mrb[0].mxu0
        %1801 = vmatprep.mubr.bf16.mxu0 0
        %1802 = vmatmul.mubr.bf16.gmra.mrb[0].mxu0 %v1672
        %v1803 = vpop.f32.mrb[0].mxu0
        %v1804 = vadd.f32 0.0, %v1803
        %v1805 = vpop.f32.mrb[0].mxu0
        %v1806 = vpop.f32.mrb[0].mxu0
        %v1807 = vadd.f32 0.0, %v1806
        %v1808 = vpop.f32.mrb[0].mxu0
        %1809 = vmatprep.mubr.bf16.mxu0 0
        %1810 = vmatmul.mubr.bf16.gmra.mrb[0].mxu0 %v1675
        %v1811 = vpop.f32.mrb[0].mxu0
        %v1812 = vadd.f32 0.0, %v1811
        %v1813 = vpop.f32.mrb[0].mxu0
        %v1814 = vpop.f32.mrb[0].mxu0
        %v1815 = vadd.f32 0.0, %v1814
        %v1816 = vpop.f32.mrb[0].mxu0
        %1817 = vmatprep.mubr.bf16.mxu0 0
        %1818 = vmatmul.mubr.bf16.gmra.mrb[0].mxu0 %v1678
        %v1819 = vpop.f32.mrb[0].mxu0
        %v1820 = vadd.f32 0.0, %v1819
        %v1821 = vpop.f32.mrb[0].mxu0
        %v1822 = vpop.f32.mrb[0].mxu0
        %v1823 = vadd.f32 0.0, %v1822
        %v1824 = vpop.f32.mrb[0].mxu0
        %1825 = vmatprep.mubr.bf16.mxu0 0
        %1826 = vmatmul.mubr.bf16.gmra.mrb[0].mxu0 %v1681
        %v1827 = vpop.f32.mrb[0].mxu0
        %v1828 = vadd.f32 0.0, %v1827
        %v1829 = vpop.f32.mrb[0].mxu0
        %v1830 = vpop.f32.mrb[0].mxu0
        %v1831 = vadd.f32 0.0, %v1830
        %v1832 = vpop.f32.mrb[0].mxu0
        %1833 = vmatprep.mubr.bf16.mxu0 0
        %1834 = vmatmul.mubr.bf16.gmra.mrb[0].mxu0 %v1684
        %v1835 = vpop.f32.mrb[0].mxu0
        %v1836 = vadd.f32 0.0, %v1835
        %v1837 = vpop.f32.mrb[0].mxu0
        %v1838 = vpop.f32.mrb[0].mxu0
        %v1839 = vadd.f32 0.0, %v1838
        %v1840 = vpop.f32.mrb[0].mxu0
        %1841 = vmatprep.mubr.bf16.mxu0 0
        %1842 = vmatmul.mubr.bf16.gmra.mrb[0].mxu0 %v1687
        %v1843 = vpop.f32.mrb[0].mxu0
        %v1844 = vadd.f32 0.0, %v1843
        %v1845 = vpop.f32.mrb[0].mxu0
        %v1846 = vpop.f32.mrb[0].mxu0
        %v1847 = vadd.f32 0.0, %v1846
        %v1848 = vpop.f32.mrb[0].mxu0
        %1849 = vdwg.mxu0
        %v1850 = vadd.f32 %v1419, %v1724
        %v1851 = vadd.f32 %v1422, %v1727
        %v1852 = vadd.f32 %v1427, %v1732
        %v1853 = vadd.f32 %v1430, %v1735
        %v1854 = vadd.f32 %v1435, %v1740
        %v1855 = vadd.f32 %v1438, %v1743
        %v1856 = vadd.f32 %v1443, %v1748
        %v1857 = vadd.f32 %v1446, %v1751
        %v1858 = vadd.f32 %v1451, %v1756
        %v1859 = vadd.f32 %v1454, %v1759
        %v1860 = vadd.f32 %v1459, %v1764
        %v1861 = vadd.f32 %v1462, %v1767
        %v1862 = vadd.f32 %v1467, %v1772
        %v1863 = vadd.f32 %v1470, %v1775
        %v1864 = vadd.f32 %v1475, %v1780
        %v1865 = vadd.f32 %v1478, %v1783
        %v1866 = vadd.f32 %v1483, %v1788
        %v1867 = vadd.f32 %v1486, %v1791
        %v1868 = vadd.f32 %v1491, %v1796
        %v1869 = vadd.f32 %v1494, %v1799
        %v1870 = vadd.f32 %v1499, %v1804
        %v1871 = vadd.f32 %v1502, %v1807
        %v1872 = vadd.f32 %v1507, %v1812
        %v1873 = vadd.f32 %v1510, %v1815
        %v1874 = vadd.f32 %v1515, %v1820
        %v1875 = vadd.f32 %v1518, %v1823
        %v1876 = vadd.f32 %v1523, %v1828
        %v1877 = vadd.f32 %v1526, %v1831
        %v1878 = vadd.f32 %v1531, %v1836
        %v1879 = vadd.f32 %v1534, %v1839
        %v1880 = vadd.f32 %v1539, %v1844
        %v1881 = vadd.f32 %v1542, %v1847
        %s1882 = scalar_lea.vmem %s3, 48
        %v1883 = vld [vmem:[%s1882] sm:$0xf]
        %v1884 = vld [vmem:[%s1882 + $0x4] sm:$0xf]
        %v1885 = vld [vmem:[%s1882 + $0x8] sm:$0xf]
        %v1886 = vld [vmem:[%s1882 + $0xc] sm:$0xf]
        %v1891 = vunpack.c.l.b16 %v1883
        %v1892 = vunpack.c.l.b16 %v1884
        %v1893 = vunpack.c.l.b16 %v1885
        %v1894 = vunpack.c.l.b16 %v1886
        %v1895 = vpack.c.b16 %v1892, %v1891
        %v1896 = vpack.c.b16 %v1894, %v1893
        %v1900 = vsel %vm1130, %v903, 0
        %1902 = vmatprep.subr.bf16.mxu0 0
        %1903 = vmatpush1.bf16.msra.mxu0 %v1895
        %1904 = vmatprep.subr.bf16.mxu0 0
        %1905 = vmatpush1.bf16.msra.mxu0 %v1896
        %1906 = vmatprep.subr.bf16.mxu0 0
        %1907 = vmatpush1.bf16.msra.mxu0 0
        %1908 = vmatprep.subr.bf16.mxu0 0
        %1909 = vmatpush1.bf16.msra.mxu0 0
        %1910 = vmatprep.subr.bf16.mxu0 0
        %1911 = vmatpush1.bf16.msra.mxu0 0
        %1912 = vmatprep.subr.bf16.mxu0 0
        %1913 = vmatpush1.bf16.msra.mxu0 0
        %1914 = vmatprep.subr.bf16.mxu0 0
        %1915 = vmatpush1.bf16.msra.mxu0 0
        %1916 = vmatprep.subr.bf16.mxu0 0
        %1917 = vmatpush1.bf16.msra.mxu0 0
        %1918 = vmatprep.subr.bf16.mxu0 0
        %1919 = vmatpush1.bf16.msra.mxu0 0
        %1920 = vmatprep.subr.bf16.mxu0 0
        %1921 = vmatpush1.bf16.msra.mxu0 0
        %1922 = vmatprep.subr.bf16.mxu0 0
        %1923 = vmatpush1.bf16.msra.mxu0 0
        %1924 = vmatprep.subr.bf16.mxu0 0
        %1925 = vmatpush1.bf16.msra.mxu0 0
        %1926 = vmatprep.subr.bf16.mxu0 0
        %1927 = vmatpush1.bf16.msra.mxu0 0
        %1928 = vmatprep.subr.bf16.mxu0 0
        %1929 = vmatpush1.bf16.msra.mxu0 0
        %1930 = vmatprep.subr.bf16.mxu0 0
        %1931 = vmatpush1.bf16.msra.mxu0 0
        %1932 = vmatprep.subr.bf16.mxu0 0
        %1933 = vmatpush1.bf16.msra.mxu0 0
        %1934 = vmatprep.mubr.bf16.mxu0 0
        %1935 = vmatmul.mubr.bf16.gmra.mrb[0].mxu0 %v1354
        %v1936 = vpop.f32.mrb[0].mxu0
        %v1937 = vadd.f32 0.0, %v1936
        %v1938 = vpop.f32.mrb[0].mxu0
        %v1939 = vpop.f32.mrb[0].mxu0
        %v1940 = vadd.f32 0.0, %v1939
        %v1941 = vpop.f32.mrb[0].mxu0
        %1942 = vmatprep.mubr.bf16.mxu0 0
        %1943 = vmatmul.mubr.bf16.gmra.mrb[0].mxu0 %v1356
        %v1944 = vpop.f32.mrb[0].mxu0
        %v1945 = vadd.f32 0.0, %v1944
        %v1946 = vpop.f32.mrb[0].mxu0
        %v1947 = vpop.f32.mrb[0].mxu0
        %v1948 = vadd.f32 0.0, %v1947
        %v1949 = vpop.f32.mrb[0].mxu0
        %1950 = vmatprep.mubr.bf16.mxu0 0
        %1951 = vmatmul.mubr.bf16.gmra.mrb[0].mxu0 %v1358
        %v1952 = vpop.f32.mrb[0].mxu0
        %v1953 = vadd.f32 0.0, %v1952
        %v1954 = vpop.f32.mrb[0].mxu0
        %v1955 = vpop.f32.mrb[0].mxu0
        %v1956 = vadd.f32 0.0, %v1955
        %v1957 = vpop.f32.mrb[0].mxu0
        %1958 = vmatprep.mubr.bf16.mxu0 0
        %1959 = vmatmul.mubr.bf16.gmra.mrb[0].mxu0 %v1360
        %v1960 = vpop.f32.mrb[0].mxu0
        %v1961 = vadd.f32 0.0, %v1960
        %v1962 = vpop.f32.mrb[0].mxu0
        %v1963 = vpop.f32.mrb[0].mxu0
        %v1964 = vadd.f32 0.0, %v1963
        %v1965 = vpop.f32.mrb[0].mxu0
        %1966 = vmatprep.mubr.bf16.mxu0 0
        %1967 = vmatmul.mubr.bf16.gmra.mrb[0].mxu0 %v1362
        %v1968 = vpop.f32.mrb[0].mxu0
        %v1969 = vadd.f32 0.0, %v1968
        %v1970 = vpop.f32.mrb[0].mxu0
        %v1971 = vpop.f32.mrb[0].mxu0
        %v1972 = vadd.f32 0.0, %v1971
        %v1973 = vpop.f32.mrb[0].mxu0
        %1974 = vmatprep.mubr.bf16.mxu0 0
        %1975 = vmatmul.mubr.bf16.gmra.mrb[0].mxu0 %v1364
        %v1976 = vpop.f32.mrb[0].mxu0
        %v1977 = vadd.f32 0.0, %v1976
        %v1978 = vpop.f32.mrb[0].mxu0
        %v1979 = vpop.f32.mrb[0].mxu0
        %v1980 = vadd.f32 0.0, %v1979
        %v1981 = vpop.f32.mrb[0].mxu0
        %1982 = vmatprep.mubr.bf16.mxu0 0
        %1983 = vmatmul.mubr.bf16.gmra.mrb[0].mxu0 %v1366
        %v1984 = vpop.f32.mrb[0].mxu0
        %v1985 = vadd.f32 0.0, %v1984
        %v1986 = vpop.f32.mrb[0].mxu0
        %v1987 = vpop.f32.mrb[0].mxu0
        %v1988 = vadd.f32 0.0, %v1987
        %v1989 = vpop.f32.mrb[0].mxu0
        %1990 = vmatprep.mubr.bf16.mxu0 0
        %1991 = vmatmul.mubr.bf16.gmra.mrb[0].mxu0 %v1368
        %v1992 = vpop.f32.mrb[0].mxu0
        %v1993 = vadd.f32 0.0, %v1992
        %v1994 = vpop.f32.mrb[0].mxu0
        %v1995 = vpop.f32.mrb[0].mxu0
        %v1996 = vadd.f32 0.0, %v1995
        %v1997 = vpop.f32.mrb[0].mxu0
        %1998 = vmatprep.mubr.bf16.mxu0 0
        %1999 = vmatmul.mubr.bf16.gmra.mrb[0].mxu0 %v1370
        %v2000 = vpop.f32.mrb[0].mxu0
        %v2001 = vadd.f32 0.0, %v2000
        %v2002 = vpop.f32.mrb[0].mxu0
        %v2003 = vpop.f32.mrb[0].mxu0
        %v2004 = vadd.f32 0.0, %v2003
        %v2005 = vpop.f32.mrb[0].mxu0
        %2006 = vmatprep.mubr.bf16.mxu0 0
        %2007 = vmatmul.mubr.bf16.gmra.mrb[0].mxu0 %v1372
        %v2008 = vpop.f32.mrb[0].mxu0
        %v2009 = vadd.f32 0.0, %v2008
        %v2010 = vpop.f32.mrb[0].mxu0
        %v2011 = vpop.f32.mrb[0].mxu0
        %v2012 = vadd.f32 0.0, %v2011
        %v2013 = vpop.f32.mrb[0].mxu0
        %2014 = vmatprep.mubr.bf16.mxu0 0
        %2015 = vmatmul.mubr.bf16.gmra.mrb[0].mxu0 %v1374
        %v2016 = vpop.f32.mrb[0].mxu0
        %v2017 = vadd.f32 0.0, %v2016
        %v2018 = vpop.f32.mrb[0].mxu0
        %v2019 = vpop.f32.mrb[0].mxu0
        %v2020 = vadd.f32 0.0, %v2019
        %v2021 = vpop.f32.mrb[0].mxu0
        %2022 = vmatprep.mubr.bf16.mxu0 0
        %2023 = vmatmul.mubr.bf16.gmra.mrb[0].mxu0 %v1376
        %v2024 = vpop.f32.mrb[0].mxu0
        %v2025 = vadd.f32 0.0, %v2024
        %v2026 = vpop.f32.mrb[0].mxu0
        %v2027 = vpop.f32.mrb[0].mxu0
        %v2028 = vadd.f32 0.0, %v2027
        %v2029 = vpop.f32.mrb[0].mxu0
        %2030 = vmatprep.mubr.bf16.mxu0 0
        %2031 = vmatmul.mubr.bf16.gmra.mrb[0].mxu0 %v1378
        %v2032 = vpop.f32.mrb[0].mxu0
        %v2033 = vadd.f32 0.0, %v2032
        %v2034 = vpop.f32.mrb[0].mxu0
        %v2035 = vpop.f32.mrb[0].mxu0
        %v2036 = vadd.f32 0.0, %v2035
        %v2037 = vpop.f32.mrb[0].mxu0
        %2038 = vmatprep.mubr.bf16.mxu0 0
        %2039 = vmatmul.mubr.bf16.gmra.mrb[0].mxu0 %v1380
        %v2040 = vpop.f32.mrb[0].mxu0
        %v2041 = vadd.f32 0.0, %v2040
        %v2042 = vpop.f32.mrb[0].mxu0
        %v2043 = vpop.f32.mrb[0].mxu0
        %v2044 = vadd.f32 0.0, %v2043
        %v2045 = vpop.f32.mrb[0].mxu0
        %2046 = vmatprep.mubr.bf16.mxu0 0
        %2047 = vmatmul.mubr.bf16.gmra.mrb[0].mxu0 %v1382
        %v2048 = vpop.f32.mrb[0].mxu0
        %v2049 = vadd.f32 0.0, %v2048
        %v2050 = vpop.f32.mrb[0].mxu0
        %v2051 = vpop.f32.mrb[0].mxu0
        %v2052 = vadd.f32 0.0, %v2051
        %v2053 = vpop.f32.mrb[0].mxu0
        %2054 = vmatprep.mubr.bf16.mxu0 0
        %2055 = vmatmul.mubr.bf16.gmra.mrb[0].mxu0 %v1900
        %v2056 = vpop.f32.mrb[0].mxu0
        %v2057 = vadd.f32 0.0, %v2056
        %v2058 = vpop.f32.mrb[0].mxu0
        %v2059 = vpop.f32.mrb[0].mxu0
        %v2060 = vadd.f32 0.0, %v2059
        %v2061 = vpop.f32.mrb[0].mxu0
        %2062 = vdwg.mxu0
        %v2063 = vadd.f32 %v1850, %v1937
        %v2064 = vadd.f32 %v1851, %v1940
        %v2065 = vadd.f32 %v1852, %v1945
        %v2066 = vadd.f32 %v1853, %v1948
        %v2067 = vadd.f32 %v1854, %v1953
        %v2068 = vadd.f32 %v1855, %v1956
        %v2069 = vadd.f32 %v1856, %v1961
        %v2070 = vadd.f32 %v1857, %v1964
        %v2071 = vadd.f32 %v1858, %v1969
        %v2072 = vadd.f32 %v1859, %v1972
        %v2073 = vadd.f32 %v1860, %v1977
        %v2074 = vadd.f32 %v1861, %v1980
        %v2075 = vadd.f32 %v1862, %v1985
        %v2076 = vadd.f32 %v1863, %v1988
        %v2077 = vadd.f32 %v1864, %v1993
        %v2078 = vadd.f32 %v1865, %v1996
        %v2079 = vadd.f32 %v1866, %v2001
        %v2080 = vadd.f32 %v1867, %v2004
        %v2081 = vadd.f32 %v1868, %v2009
        %v2082 = vadd.f32 %v1869, %v2012
        %v2083 = vadd.f32 %v1870, %v2017
        %v2084 = vadd.f32 %v1871, %v2020
        %v2085 = vadd.f32 %v1872, %v2025
        %v2086 = vadd.f32 %v1873, %v2028
        %v2087 = vadd.f32 %v1874, %v2033
        %v2088 = vadd.f32 %v1875, %v2036
        %v2089 = vadd.f32 %v1876, %v2041
        %v2090 = vadd.f32 %v1877, %v2044
        %v2091 = vadd.f32 %v1878, %v2049
        %v2092 = vadd.f32 %v1879, %v2052
        %v2093 = vadd.f32 %v1880, %v2057
        %v2094 = vadd.f32 %v1881, %v2060
        %v2095 = vshrl.u32 %v903, 16
        %v2097 = vshll.u32 %v903, 16
        %v2099 = vrot.slane %v2097, 1
        %v2100 = vor.u32 %v2095, %v2099
        %v2102 = vshll.u32 %v919, 16
        %v2104 = vrot.slane %v2102, 1
        %v2105 = vsel %vm924, %v2100, %v2104
        %s2106 = scalar_lea.vmem %s3, 64
        %v2107 = vld [vmem:[%s2106] sm:$0xf]
        %v2108 = vld [vmem:[%s2106 + $0x4] sm:$0xf]
        %v2109 = vld [vmem:[%s2106 + $0x8] sm:$0xf]
        %v2110 = vld [vmem:[%s2106 + $0xc] sm:$0xf]
        %v2115 = vunpack.c.l.b16 %v2107
        %v2116 = vunpack.c.l.b16 %v2108
        %v2117 = vunpack.c.l.b16 %v2109
        %v2118 = vunpack.c.l.b16 %v2110
        %v2119 = vpack.c.b16 %v2116, %v2115
        %v2120 = vpack.c.b16 %v2118, %v2117
        %v2124 = vsel %vm1130, %v2105, 0
        %2126 = vmatprep.subr.bf16.mxu0 0
        %2127 = vmatpush1.bf16.msra.mxu0 %v2119
        %2128 = vmatprep.subr.bf16.mxu0 0
        %2129 = vmatpush1.bf16.msra.mxu0 %v2120
        %2130 = vmatprep.subr.bf16.mxu0 0
        %2131 = vmatpush1.bf16.msra.mxu0 0
        %2132 = vmatprep.subr.bf16.mxu0 0
        %2133 = vmatpush1.bf16.msra.mxu0 0
        %2134 = vmatprep.subr.bf16.mxu0 0
        %2135 = vmatpush1.bf16.msra.mxu0 0
        %2136 = vmatprep.subr.bf16.mxu0 0
        %2137 = vmatpush1.bf16.msra.mxu0 0
        %2138 = vmatprep.subr.bf16.mxu0 0
        %2139 = vmatpush1.bf16.msra.mxu0 0
        %2140 = vmatprep.subr.bf16.mxu0 0
        %2141 = vmatpush1.bf16.msra.mxu0 0
        %2142 = vmatprep.subr.bf16.mxu0 0
        %2143 = vmatpush1.bf16.msra.mxu0 0
        %2144 = vmatprep.subr.bf16.mxu0 0
        %2145 = vmatpush1.bf16.msra.mxu0 0
        %2146 = vmatprep.subr.bf16.mxu0 0
        %2147 = vmatpush1.bf16.msra.mxu0 0
        %2148 = vmatprep.subr.bf16.mxu0 0
        %2149 = vmatpush1.bf16.msra.mxu0 0
        %2150 = vmatprep.subr.bf16.mxu0 0
        %2151 = vmatpush1.bf16.msra.mxu0 0
        %2152 = vmatprep.subr.bf16.mxu0 0
        %2153 = vmatpush1.bf16.msra.mxu0 0
        %2154 = vmatprep.subr.bf16.mxu0 0
        %2155 = vmatpush1.bf16.msra.mxu0 0
        %2156 = vmatprep.subr.bf16.mxu0 0
        %2157 = vmatpush1.bf16.msra.mxu0 0
        %2158 = vmatprep.mubr.bf16.mxu0 0
        %2159 = vmatmul.mubr.bf16.gmra.mrb[0].mxu0 %v1135
        %v2160 = vpop.f32.mrb[0].mxu0
        %v2161 = vadd.f32 0.0, %v2160
        %v2162 = vpop.f32.mrb[0].mxu0
        %v2163 = vpop.f32.mrb[0].mxu0
        %v2164 = vadd.f32 0.0, %v2163
        %v2165 = vpop.f32.mrb[0].mxu0
        %2166 = vmatprep.mubr.bf16.mxu0 0
        %2167 = vmatmul.mubr.bf16.gmra.mrb[0].mxu0 %v1138
        %v2168 = vpop.f32.mrb[0].mxu0
        %v2169 = vadd.f32 0.0, %v2168
        %v2170 = vpop.f32.mrb[0].mxu0
        %v2171 = vpop.f32.mrb[0].mxu0
        %v2172 = vadd.f32 0.0, %v2171
        %v2173 = vpop.f32.mrb[0].mxu0
        %2174 = vmatprep.mubr.bf16.mxu0 0
        %2175 = vmatmul.mubr.bf16.gmra.mrb[0].mxu0 %v1141
        %v2176 = vpop.f32.mrb[0].mxu0
        %v2177 = vadd.f32 0.0, %v2176
        %v2178 = vpop.f32.mrb[0].mxu0
        %v2179 = vpop.f32.mrb[0].mxu0
        %v2180 = vadd.f32 0.0, %v2179
        %v2181 = vpop.f32.mrb[0].mxu0
        %2182 = vmatprep.mubr.bf16.mxu0 0
        %2183 = vmatmul.mubr.bf16.gmra.mrb[0].mxu0 %v1144
        %v2184 = vpop.f32.mrb[0].mxu0
        %v2185 = vadd.f32 0.0, %v2184
        %v2186 = vpop.f32.mrb[0].mxu0
        %v2187 = vpop.f32.mrb[0].mxu0
        %v2188 = vadd.f32 0.0, %v2187
        %v2189 = vpop.f32.mrb[0].mxu0
        %2190 = vmatprep.mubr.bf16.mxu0 0
        %2191 = vmatmul.mubr.bf16.gmra.mrb[0].mxu0 %v1147
        %v2192 = vpop.f32.mrb[0].mxu0
        %v2193 = vadd.f32 0.0, %v2192
        %v2194 = vpop.f32.mrb[0].mxu0
        %v2195 = vpop.f32.mrb[0].mxu0
        %v2196 = vadd.f32 0.0, %v2195
        %v2197 = vpop.f32.mrb[0].mxu0
        %2198 = vmatprep.mubr.bf16.mxu0 0
        %2199 = vmatmul.mubr.bf16.gmra.mrb[0].mxu0 %v1150
        %v2200 = vpop.f32.mrb[0].mxu0
        %v2201 = vadd.f32 0.0, %v2200
        %v2202 = vpop.f32.mrb[0].mxu0
        %v2203 = vpop.f32.mrb[0].mxu0
        %v2204 = vadd.f32 0.0, %v2203
        %v2205 = vpop.f32.mrb[0].mxu0
        %2206 = vmatprep.mubr.bf16.mxu0 0
        %2207 = vmatmul.mubr.bf16.gmra.mrb[0].mxu0 %v1153
        %v2208 = vpop.f32.mrb[0].mxu0
        %v2209 = vadd.f32 0.0, %v2208
        %v2210 = vpop.f32.mrb[0].mxu0
        %v2211 = vpop.f32.mrb[0].mxu0
        %v2212 = vadd.f32 0.0, %v2211
        %v2213 = vpop.f32.mrb[0].mxu0
        %2214 = vmatprep.mubr.bf16.mxu0 0
        %2215 = vmatmul.mubr.bf16.gmra.mrb[0].mxu0 %v1156
        %v2216 = vpop.f32.mrb[0].mxu0
        %v2217 = vadd.f32 0.0, %v2216
        %v2218 = vpop.f32.mrb[0].mxu0
        %v2219 = vpop.f32.mrb[0].mxu0
        %v2220 = vadd.f32 0.0, %v2219
        %v2221 = vpop.f32.mrb[0].mxu0
        %2222 = vmatprep.mubr.bf16.mxu0 0
        %2223 = vmatmul.mubr.bf16.gmra.mrb[0].mxu0 %v1159
        %v2224 = vpop.f32.mrb[0].mxu0
        %v2225 = vadd.f32 0.0, %v2224
        %v2226 = vpop.f32.mrb[0].mxu0
        %v2227 = vpop.f32.mrb[0].mxu0
        %v2228 = vadd.f32 0.0, %v2227
        %v2229 = vpop.f32.mrb[0].mxu0
        %2230 = vmatprep.mubr.bf16.mxu0 0
        %2231 = vmatmul.mubr.bf16.gmra.mrb[0].mxu0 %v1162
        %v2232 = vpop.f32.mrb[0].mxu0
        %v2233 = vadd.f32 0.0, %v2232
        %v2234 = vpop.f32.mrb[0].mxu0
        %v2235 = vpop.f32.mrb[0].mxu0
        %v2236 = vadd.f32 0.0, %v2235
        %v2237 = vpop.f32.mrb[0].mxu0
        %2238 = vmatprep.mubr.bf16.mxu0 0
        %2239 = vmatmul.mubr.bf16.gmra.mrb[0].mxu0 %v1165
        %v2240 = vpop.f32.mrb[0].mxu0
        %v2241 = vadd.f32 0.0, %v2240
        %v2242 = vpop.f32.mrb[0].mxu0
        %v2243 = vpop.f32.mrb[0].mxu0
        %v2244 = vadd.f32 0.0, %v2243
        %v2245 = vpop.f32.mrb[0].mxu0
        %2246 = vmatprep.mubr.bf16.mxu0 0
        %2247 = vmatmul.mubr.bf16.gmra.mrb[0].mxu0 %v1168
        %v2248 = vpop.f32.mrb[0].mxu0
        %v2249 = vadd.f32 0.0, %v2248
        %v2250 = vpop.f32.mrb[0].mxu0
        %v2251 = vpop.f32.mrb[0].mxu0
        %v2252 = vadd.f32 0.0, %v2251
        %v2253 = vpop.f32.mrb[0].mxu0
        %2254 = vmatprep.mubr.bf16.mxu0 0
        %2255 = vmatmul.mubr.bf16.gmra.mrb[0].mxu0 %v1171
        %v2256 = vpop.f32.mrb[0].mxu0
        %v2257 = vadd.f32 0.0, %v2256
        %v2258 = vpop.f32.mrb[0].mxu0
        %v2259 = vpop.f32.mrb[0].mxu0
        %v2260 = vadd.f32 0.0, %v2259
        %v2261 = vpop.f32.mrb[0].mxu0
        %2262 = vmatprep.mubr.bf16.mxu0 0
        %2263 = vmatmul.mubr.bf16.gmra.mrb[0].mxu0 %v1174
        %v2264 = vpop.f32.mrb[0].mxu0
        %v2265 = vadd.f32 0.0, %v2264
        %v2266 = vpop.f32.mrb[0].mxu0
        %v2267 = vpop.f32.mrb[0].mxu0
        %v2268 = vadd.f32 0.0, %v2267
        %v2269 = vpop.f32.mrb[0].mxu0
        %2270 = vmatprep.mubr.bf16.mxu0 0
        %2271 = vmatmul.mubr.bf16.gmra.mrb[0].mxu0 %v1177
        %v2272 = vpop.f32.mrb[0].mxu0
        %v2273 = vadd.f32 0.0, %v2272
        %v2274 = vpop.f32.mrb[0].mxu0
        %v2275 = vpop.f32.mrb[0].mxu0
        %v2276 = vadd.f32 0.0, %v2275
        %v2277 = vpop.f32.mrb[0].mxu0
        %2278 = vmatprep.mubr.bf16.mxu0 0
        %2279 = vmatmul.mubr.bf16.gmra.mrb[0].mxu0 %v2124
        %v2280 = vpop.f32.mrb[0].mxu0
        %v2281 = vadd.f32 0.0, %v2280
        %v2282 = vpop.f32.mrb[0].mxu0
        %v2283 = vpop.f32.mrb[0].mxu0
        %v2284 = vadd.f32 0.0, %v2283
        %v2285 = vpop.f32.mrb[0].mxu0
        %2286 = vdwg.mxu0
        %v2287 = vadd.f32 %v2063, %v2161
        %v2288 = vadd.f32 %v2064, %v2164
        %v2289 = vadd.f32 %v2065, %v2169
        %v2290 = vadd.f32 %v2066, %v2172
        %v2291 = vadd.f32 %v2067, %v2177
        %v2292 = vadd.f32 %v2068, %v2180
        %v2293 = vadd.f32 %v2069, %v2185
        %v2294 = vadd.f32 %v2070, %v2188
        %v2295 = vadd.f32 %v2071, %v2193
        %v2296 = vadd.f32 %v2072, %v2196
        %v2297 = vadd.f32 %v2073, %v2201
        %v2298 = vadd.f32 %v2074, %v2204
        %v2299 = vadd.f32 %v2075, %v2209
        %v2300 = vadd.f32 %v2076, %v2212
        %v2301 = vadd.f32 %v2077, %v2217
        %v2302 = vadd.f32 %v2078, %v2220
        %v2303 = vadd.f32 %v2079, %v2225
        %v2304 = vadd.f32 %v2080, %v2228
        %v2305 = vadd.f32 %v2081, %v2233
        %v2306 = vadd.f32 %v2082, %v2236
        %v2307 = vadd.f32 %v2083, %v2241
        %v2308 = vadd.f32 %v2084, %v2244
        %v2309 = vadd.f32 %v2085, %v2249
        %v2310 = vadd.f32 %v2086, %v2252
        %v2311 = vadd.f32 %v2087, %v2257
        %v2312 = vadd.f32 %v2088, %v2260
        %v2313 = vadd.f32 %v2089, %v2265
        %v2314 = vadd.f32 %v2090, %v2268
        %v2315 = vadd.f32 %v2091, %v2273
        %v2316 = vadd.f32 %v2092, %v2276
        %v2317 = vadd.f32 %v2093, %v2281
        %v2318 = vadd.f32 %v2094, %v2284
        %v2321 = vrot.slane %v903, 1
        %v2322 = vrot.slane %v919, 1
        %v2323 = vsel %vm1576, %v2321, %v2322
        %s2324 = scalar_lea.vmem %s3, 80
        %v2325 = vld [vmem:[%s2324] sm:$0xf]
        %v2326 = vld [vmem:[%s2324 + $0x4] sm:$0xf]
        %v2327 = vld [vmem:[%s2324 + $0x8] sm:$0xf]
        %v2328 = vld [vmem:[%s2324 + $0xc] sm:$0xf]
        %v2333 = vunpack.c.l.b16 %v2325
        %v2334 = vunpack.c.l.b16 %v2326
        %v2335 = vunpack.c.l.b16 %v2327
        %v2336 = vunpack.c.l.b16 %v2328
        %v2337 = vpack.c.b16 %v2334, %v2333
        %v2338 = vpack.c.b16 %v2336, %v2335
        %v2342 = vsel %vm1130, %v2323, 0
        %2344 = vmatprep.subr.bf16.mxu0 0
        %2345 = vmatpush1.bf16.msra.mxu0 %v2337
        %2346 = vmatprep.subr.bf16.mxu0 0
        %2347 = vmatpush1.bf16.msra.mxu0 %v2338
        %2348 = vmatprep.subr.bf16.mxu0 0
        %2349 = vmatpush1.bf16.msra.mxu0 0
        %2350 = vmatprep.subr.bf16.mxu0 0
        %2351 = vmatpush1.bf16.msra.mxu0 0
        %2352 = vmatprep.subr.bf16.mxu0 0
        %2353 = vmatpush1.bf16.msra.mxu0 0
        %2354 = vmatprep.subr.bf16.mxu0 0
        %2355 = vmatpush1.bf16.msra.mxu0 0
        %2356 = vmatprep.subr.bf16.mxu0 0
        %2357 = vmatpush1.bf16.msra.mxu0 0
        %2358 = vmatprep.subr.bf16.mxu0 0
        %2359 = vmatpush1.bf16.msra.mxu0 0
        %2360 = vmatprep.subr.bf16.mxu0 0
        %2361 = vmatpush1.bf16.msra.mxu0 0
        %2362 = vmatprep.subr.bf16.mxu0 0
        %2363 = vmatpush1.bf16.msra.mxu0 0
        %2364 = vmatprep.subr.bf16.mxu0 0
        %2365 = vmatpush1.bf16.msra.mxu0 0
        %2366 = vmatprep.subr.bf16.mxu0 0
        %2367 = vmatpush1.bf16.msra.mxu0 0
        %2368 = vmatprep.subr.bf16.mxu0 0
        %2369 = vmatpush1.bf16.msra.mxu0 0
        %2370 = vmatprep.subr.bf16.mxu0 0
        %2371 = vmatpush1.bf16.msra.mxu0 0
        %2372 = vmatprep.subr.bf16.mxu0 0
        %2373 = vmatpush1.bf16.msra.mxu0 0
        %2374 = vmatprep.subr.bf16.mxu0 0
        %2375 = vmatpush1.bf16.msra.mxu0 0
        %2376 = vmatprep.mubr.bf16.mxu0 0
        %2377 = vmatmul.mubr.bf16.gmra.mrb[0].mxu0 %v1645
        %v2378 = vpop.f32.mrb[0].mxu0
        %v2379 = vadd.f32 0.0, %v2378
        %v2380 = vpop.f32.mrb[0].mxu0
        %v2381 = vpop.f32.mrb[0].mxu0
        %v2382 = vadd.f32 0.0, %v2381
        %v2383 = vpop.f32.mrb[0].mxu0
        %2384 = vmatprep.mubr.bf16.mxu0 0
        %2385 = vmatmul.mubr.bf16.gmra.mrb[0].mxu0 %v1648
        %v2386 = vpop.f32.mrb[0].mxu0
        %v2387 = vadd.f32 0.0, %v2386
        %v2388 = vpop.f32.mrb[0].mxu0
        %v2389 = vpop.f32.mrb[0].mxu0
        %v2390 = vadd.f32 0.0, %v2389
        %v2391 = vpop.f32.mrb[0].mxu0
        %2392 = vmatprep.mubr.bf16.mxu0 0
        %2393 = vmatmul.mubr.bf16.gmra.mrb[0].mxu0 %v1651
        %v2394 = vpop.f32.mrb[0].mxu0
        %v2395 = vadd.f32 0.0, %v2394
        %v2396 = vpop.f32.mrb[0].mxu0
        %v2397 = vpop.f32.mrb[0].mxu0
        %v2398 = vadd.f32 0.0, %v2397
        %v2399 = vpop.f32.mrb[0].mxu0
        %2400 = vmatprep.mubr.bf16.mxu0 0
        %2401 = vmatmul.mubr.bf16.gmra.mrb[0].mxu0 %v1654
        %v2402 = vpop.f32.mrb[0].mxu0
        %v2403 = vadd.f32 0.0, %v2402
        %v2404 = vpop.f32.mrb[0].mxu0
        %v2405 = vpop.f32.mrb[0].mxu0
        %v2406 = vadd.f32 0.0, %v2405
        %v2407 = vpop.f32.mrb[0].mxu0
        %2408 = vmatprep.mubr.bf16.mxu0 0
        %2409 = vmatmul.mubr.bf16.gmra.mrb[0].mxu0 %v1657
        %v2410 = vpop.f32.mrb[0].mxu0
        %v2411 = vadd.f32 0.0, %v2410
        %v2412 = vpop.f32.mrb[0].mxu0
        %v2413 = vpop.f32.mrb[0].mxu0
        %v2414 = vadd.f32 0.0, %v2413
        %v2415 = vpop.f32.mrb[0].mxu0
        %2416 = vmatprep.mubr.bf16.mxu0 0
        %2417 = vmatmul.mubr.bf16.gmra.mrb[0].mxu0 %v1660
        %v2418 = vpop.f32.mrb[0].mxu0
        %v2419 = vadd.f32 0.0, %v2418
        %v2420 = vpop.f32.mrb[0].mxu0
        %v2421 = vpop.f32.mrb[0].mxu0
        %v2422 = vadd.f32 0.0, %v2421
        %v2423 = vpop.f32.mrb[0].mxu0
        %2424 = vmatprep.mubr.bf16.mxu0 0
        %2425 = vmatmul.mubr.bf16.gmra.mrb[0].mxu0 %v1663
        %v2426 = vpop.f32.mrb[0].mxu0
        %v2427 = vadd.f32 0.0, %v2426
        %v2428 = vpop.f32.mrb[0].mxu0
        %v2429 = vpop.f32.mrb[0].mxu0
        %v2430 = vadd.f32 0.0, %v2429
        %v2431 = vpop.f32.mrb[0].mxu0
        %2432 = vmatprep.mubr.bf16.mxu0 0
        %2433 = vmatmul.mubr.bf16.gmra.mrb[0].mxu0 %v1666
        %v2434 = vpop.f32.mrb[0].mxu0
        %v2435 = vadd.f32 0.0, %v2434
        %v2436 = vpop.f32.mrb[0].mxu0
        %v2437 = vpop.f32.mrb[0].mxu0
        %v2438 = vadd.f32 0.0, %v2437
        %v2439 = vpop.f32.mrb[0].mxu0
        %2440 = vmatprep.mubr.bf16.mxu0 0
        %2441 = vmatmul.mubr.bf16.gmra.mrb[0].mxu0 %v1669
        %v2442 = vpop.f32.mrb[0].mxu0
        %v2443 = vadd.f32 0.0, %v2442
        %v2444 = vpop.f32.mrb[0].mxu0
        %v2445 = vpop.f32.mrb[0].mxu0
        %v2446 = vadd.f32 0.0, %v2445
        %v2447 = vpop.f32.mrb[0].mxu0
        %2448 = vmatprep.mubr.bf16.mxu0 0
        %2449 = vmatmul.mubr.bf16.gmra.mrb[0].mxu0 %v1672
        %v2450 = vpop.f32.mrb[0].mxu0
        %v2451 = vadd.f32 0.0, %v2450
        %v2452 = vpop.f32.mrb[0].mxu0
        %v2453 = vpop.f32.mrb[0].mxu0
        %v2454 = vadd.f32 0.0, %v2453
        %v2455 = vpop.f32.mrb[0].mxu0
        %2456 = vmatprep.mubr.bf16.mxu0 0
        %2457 = vmatmul.mubr.bf16.gmra.mrb[0].mxu0 %v1675
        %v2458 = vpop.f32.mrb[0].mxu0
        %v2459 = vadd.f32 0.0, %v2458
        %v2460 = vpop.f32.mrb[0].mxu0
        %v2461 = vpop.f32.mrb[0].mxu0
        %v2462 = vadd.f32 0.0, %v2461
        %v2463 = vpop.f32.mrb[0].mxu0
        %2464 = vmatprep.mubr.bf16.mxu0 0
        %2465 = vmatmul.mubr.bf16.gmra.mrb[0].mxu0 %v1678
        %v2466 = vpop.f32.mrb[0].mxu0
        %v2467 = vadd.f32 0.0, %v2466
        %v2468 = vpop.f32.mrb[0].mxu0
        %v2469 = vpop.f32.mrb[0].mxu0
        %v2470 = vadd.f32 0.0, %v2469
        %v2471 = vpop.f32.mrb[0].mxu0
        %2472 = vmatprep.mubr.bf16.mxu0 0
        %2473 = vmatmul.mubr.bf16.gmra.mrb[0].mxu0 %v1681
        %v2474 = vpop.f32.mrb[0].mxu0
        %v2475 = vadd.f32 0.0, %v2474
        %v2476 = vpop.f32.mrb[0].mxu0
        %v2477 = vpop.f32.mrb[0].mxu0
        %v2478 = vadd.f32 0.0, %v2477
        %v2479 = vpop.f32.mrb[0].mxu0
        %2480 = vmatprep.mubr.bf16.mxu0 0
        %2481 = vmatmul.mubr.bf16.gmra.mrb[0].mxu0 %v1684
        %v2482 = vpop.f32.mrb[0].mxu0
        %v2483 = vadd.f32 0.0, %v2482
        %v2484 = vpop.f32.mrb[0].mxu0
        %v2485 = vpop.f32.mrb[0].mxu0
        %v2486 = vadd.f32 0.0, %v2485
        %v2487 = vpop.f32.mrb[0].mxu0
        %2488 = vmatprep.mubr.bf16.mxu0 0
        %2489 = vmatmul.mubr.bf16.gmra.mrb[0].mxu0 %v1687
        %v2490 = vpop.f32.mrb[0].mxu0
        %v2491 = vadd.f32 0.0, %v2490
        %v2492 = vpop.f32.mrb[0].mxu0
        %v2493 = vpop.f32.mrb[0].mxu0
        %v2494 = vadd.f32 0.0, %v2493
        %v2495 = vpop.f32.mrb[0].mxu0
        %2496 = vmatprep.mubr.bf16.mxu0 0
        %2497 = vmatmul.mubr.bf16.gmra.mrb[0].mxu0 %v2342
        %v2498 = vpop.f32.mrb[0].mxu0
        %v2499 = vadd.f32 0.0, %v2498
        %v2500 = vpop.f32.mrb[0].mxu0
        %v2501 = vpop.f32.mrb[0].mxu0
        %v2502 = vadd.f32 0.0, %v2501
        %v2503 = vpop.f32.mrb[0].mxu0
        %2504 = vdwg.mxu0
        %v2505 = vadd.f32 %v2287, %v2379
        %v2506 = vadd.f32 %v2288, %v2382
        %v2507 = vadd.f32 %v2289, %v2387
        %v2508 = vadd.f32 %v2290, %v2390
        %v2509 = vadd.f32 %v2291, %v2395
        %v2510 = vadd.f32 %v2292, %v2398
        %v2511 = vadd.f32 %v2293, %v2403
        %v2512 = vadd.f32 %v2294, %v2406
        %v2513 = vadd.f32 %v2295, %v2411
        %v2514 = vadd.f32 %v2296, %v2414
        %v2515 = vadd.f32 %v2297, %v2419
        %v2516 = vadd.f32 %v2298, %v2422
        %v2517 = vadd.f32 %v2299, %v2427
        %v2518 = vadd.f32 %v2300, %v2430
        %v2519 = vadd.f32 %v2301, %v2435
        %v2520 = vadd.f32 %v2302, %v2438
        %v2521 = vadd.f32 %v2303, %v2443
        %v2522 = vadd.f32 %v2304, %v2446
        %v2523 = vadd.f32 %v2305, %v2451
        %v2524 = vadd.f32 %v2306, %v2454
        %v2525 = vadd.f32 %v2307, %v2459
        %v2526 = vadd.f32 %v2308, %v2462
        %v2527 = vadd.f32 %v2309, %v2467
        %v2528 = vadd.f32 %v2310, %v2470
        %v2529 = vadd.f32 %v2311, %v2475
        %v2530 = vadd.f32 %v2312, %v2478
        %v2531 = vadd.f32 %v2313, %v2483
        %v2532 = vadd.f32 %v2314, %v2486
        %v2533 = vadd.f32 %v2315, %v2491
        %v2534 = vadd.f32 %v2316, %v2494
        %v2535 = vadd.f32 %v2317, %v2499
        %v2536 = vadd.f32 %v2318, %v2502
        %s2537 = scalar_lea.vmem %s3, 96
        %v2538 = vld [vmem:[%s2537] sm:$0xf]
        %v2539 = vld [vmem:[%s2537 + $0x4] sm:$0xf]
        %v2540 = vld [vmem:[%s2537 + $0x8] sm:$0xf]
        %v2541 = vld [vmem:[%s2537 + $0xc] sm:$0xf]
        %v2546 = vunpack.c.l.b16 %v2538
        %v2547 = vunpack.c.l.b16 %v2539
        %v2548 = vunpack.c.l.b16 %v2540
        %v2549 = vunpack.c.l.b16 %v2541
        %v2550 = vpack.c.b16 %v2547, %v2546
        %v2551 = vpack.c.b16 %v2549, %v2548
        %2554 = vmatprep.subr.bf16.mxu0 0
        %2555 = vmatpush1.bf16.msra.mxu0 %v2550
        %2556 = vmatprep.subr.bf16.mxu0 0
        %2557 = vmatpush1.bf16.msra.mxu0 %v2551
        %2558 = vmatprep.subr.bf16.mxu0 0
        %2559 = vmatpush1.bf16.msra.mxu0 0
        %2560 = vmatprep.subr.bf16.mxu0 0
        %2561 = vmatpush1.bf16.msra.mxu0 0
        %2562 = vmatprep.subr.bf16.mxu0 0
        %2563 = vmatpush1.bf16.msra.mxu0 0
        %2564 = vmatprep.subr.bf16.mxu0 0
        %2565 = vmatpush1.bf16.msra.mxu0 0
        %2566 = vmatprep.subr.bf16.mxu0 0
        %2567 = vmatpush1.bf16.msra.mxu0 0
        %2568 = vmatprep.subr.bf16.mxu0 0
        %2569 = vmatpush1.bf16.msra.mxu0 0
        %2570 = vmatprep.subr.bf16.mxu0 0
        %2571 = vmatpush1.bf16.msra.mxu0 0
        %2572 = vmatprep.subr.bf16.mxu0 0
        %2573 = vmatpush1.bf16.msra.mxu0 0
        %2574 = vmatprep.subr.bf16.mxu0 0
        %2575 = vmatpush1.bf16.msra.mxu0 0
        %2576 = vmatprep.subr.bf16.mxu0 0
        %2577 = vmatpush1.bf16.msra.mxu0 0
        %2578 = vmatprep.subr.bf16.mxu0 0
        %2579 = vmatpush1.bf16.msra.mxu0 0
        %2580 = vmatprep.subr.bf16.mxu0 0
        %2581 = vmatpush1.bf16.msra.mxu0 0
        %2582 = vmatprep.subr.bf16.mxu0 0
        %2583 = vmatpush1.bf16.msra.mxu0 0
        %2584 = vmatprep.subr.bf16.mxu0 0
        %2585 = vmatpush1.bf16.msra.mxu0 0
        %2586 = vmatprep.mubr.bf16.mxu0 0
        %2587 = vmatmul.mubr.bf16.gmra.mrb[0].mxu0 %v1356
        %v2588 = vpop.f32.mrb[0].mxu0
        %v2589 = vadd.f32 0.0, %v2588
        %v2590 = vpop.f32.mrb[0].mxu0
        %v2591 = vpop.f32.mrb[0].mxu0
        %v2592 = vadd.f32 0.0, %v2591
        %v2593 = vpop.f32.mrb[0].mxu0
        %2594 = vmatprep.mubr.bf16.mxu0 0
        %2595 = vmatmul.mubr.bf16.gmra.mrb[0].mxu0 %v1358
        %v2596 = vpop.f32.mrb[0].mxu0
        %v2597 = vadd.f32 0.0, %v2596
        %v2598 = vpop.f32.mrb[0].mxu0
        %v2599 = vpop.f32.mrb[0].mxu0
        %v2600 = vadd.f32 0.0, %v2599
        %v2601 = vpop.f32.mrb[0].mxu0
        %2602 = vmatprep.mubr.bf16.mxu0 0
        %2603 = vmatmul.mubr.bf16.gmra.mrb[0].mxu0 %v1360
        %v2604 = vpop.f32.mrb[0].mxu0
        %v2605 = vadd.f32 0.0, %v2604
        %v2606 = vpop.f32.mrb[0].mxu0
        %v2607 = vpop.f32.mrb[0].mxu0
        %v2608 = vadd.f32 0.0, %v2607
        %v2609 = vpop.f32.mrb[0].mxu0
        %2610 = vmatprep.mubr.bf16.mxu0 0
        %2611 = vmatmul.mubr.bf16.gmra.mrb[0].mxu0 %v1362
        %v2612 = vpop.f32.mrb[0].mxu0
        %v2613 = vadd.f32 0.0, %v2612
        %v2614 = vpop.f32.mrb[0].mxu0
        %v2615 = vpop.f32.mrb[0].mxu0
        %v2616 = vadd.f32 0.0, %v2615
        %v2617 = vpop.f32.mrb[0].mxu0
        %2618 = vmatprep.mubr.bf16.mxu0 0
        %2619 = vmatmul.mubr.bf16.gmra.mrb[0].mxu0 %v1364
        %v2620 = vpop.f32.mrb[0].mxu0
        %v2621 = vadd.f32 0.0, %v2620
        %v2622 = vpop.f32.mrb[0].mxu0
        %v2623 = vpop.f32.mrb[0].mxu0
        %v2624 = vadd.f32 0.0, %v2623
        %v2625 = vpop.f32.mrb[0].mxu0
        %2626 = vmatprep.mubr.bf16.mxu0 0
        %2627 = vmatmul.mubr.bf16.gmra.mrb[0].mxu0 %v1366
        %v2628 = vpop.f32.mrb[0].mxu0
        %v2629 = vadd.f32 0.0, %v2628
        %v2630 = vpop.f32.mrb[0].mxu0
        %v2631 = vpop.f32.mrb[0].mxu0
        %v2632 = vadd.f32 0.0, %v2631
        %v2633 = vpop.f32.mrb[0].mxu0
        %2634 = vmatprep.mubr.bf16.mxu0 0
        %2635 = vmatmul.mubr.bf16.gmra.mrb[0].mxu0 %v1368
        %v2636 = vpop.f32.mrb[0].mxu0
        %v2637 = vadd.f32 0.0, %v2636
        %v2638 = vpop.f32.mrb[0].mxu0
        %v2639 = vpop.f32.mrb[0].mxu0
        %v2640 = vadd.f32 0.0, %v2639
        %v2641 = vpop.f32.mrb[0].mxu0
        %2642 = vmatprep.mubr.bf16.mxu0 0
        %2643 = vmatmul.mubr.bf16.gmra.mrb[0].mxu0 %v1370
        %v2644 = vpop.f32.mrb[0].mxu0
        %v2645 = vadd.f32 0.0, %v2644
        %v2646 = vpop.f32.mrb[0].mxu0
        %v2647 = vpop.f32.mrb[0].mxu0
        %v2648 = vadd.f32 0.0, %v2647
        %v2649 = vpop.f32.mrb[0].mxu0
        %2650 = vmatprep.mubr.bf16.mxu0 0
        %2651 = vmatmul.mubr.bf16.gmra.mrb[0].mxu0 %v1372
        %v2652 = vpop.f32.mrb[0].mxu0
        %v2653 = vadd.f32 0.0, %v2652
        %v2654 = vpop.f32.mrb[0].mxu0
        %v2655 = vpop.f32.mrb[0].mxu0
        %v2656 = vadd.f32 0.0, %v2655
        %v2657 = vpop.f32.mrb[0].mxu0
        %2658 = vmatprep.mubr.bf16.mxu0 0
        %2659 = vmatmul.mubr.bf16.gmra.mrb[0].mxu0 %v1374
        %v2660 = vpop.f32.mrb[0].mxu0
        %v2661 = vadd.f32 0.0, %v2660
        %v2662 = vpop.f32.mrb[0].mxu0
        %v2663 = vpop.f32.mrb[0].mxu0
        %v2664 = vadd.f32 0.0, %v2663
        %v2665 = vpop.f32.mrb[0].mxu0
        %2666 = vmatprep.mubr.bf16.mxu0 0
        %2667 = vmatmul.mubr.bf16.gmra.mrb[0].mxu0 %v1376
        %v2668 = vpop.f32.mrb[0].mxu0
        %v2669 = vadd.f32 0.0, %v2668
        %v2670 = vpop.f32.mrb[0].mxu0
        %v2671 = vpop.f32.mrb[0].mxu0
        %v2672 = vadd.f32 0.0, %v2671
        %v2673 = vpop.f32.mrb[0].mxu0
        %2674 = vmatprep.mubr.bf16.mxu0 0
        %2675 = vmatmul.mubr.bf16.gmra.mrb[0].mxu0 %v1378
        %v2676 = vpop.f32.mrb[0].mxu0
        %v2677 = vadd.f32 0.0, %v2676
        %v2678 = vpop.f32.mrb[0].mxu0
        %v2679 = vpop.f32.mrb[0].mxu0
        %v2680 = vadd.f32 0.0, %v2679
        %v2681 = vpop.f32.mrb[0].mxu0
        %2682 = vmatprep.mubr.bf16.mxu0 0
        %2683 = vmatmul.mubr.bf16.gmra.mrb[0].mxu0 %v1380
        %v2684 = vpop.f32.mrb[0].mxu0
        %v2685 = vadd.f32 0.0, %v2684
        %v2686 = vpop.f32.mrb[0].mxu0
        %v2687 = vpop.f32.mrb[0].mxu0
        %v2688 = vadd.f32 0.0, %v2687
        %v2689 = vpop.f32.mrb[0].mxu0
        %2690 = vmatprep.mubr.bf16.mxu0 0
        %2691 = vmatmul.mubr.bf16.gmra.mrb[0].mxu0 %v1382
        %v2692 = vpop.f32.mrb[0].mxu0
        %v2693 = vadd.f32 0.0, %v2692
        %v2694 = vpop.f32.mrb[0].mxu0
        %v2695 = vpop.f32.mrb[0].mxu0
        %v2696 = vadd.f32 0.0, %v2695
        %v2697 = vpop.f32.mrb[0].mxu0
        %2698 = vmatprep.mubr.bf16.mxu0 0
        %2699 = vmatmul.mubr.bf16.gmra.mrb[0].mxu0 %v1900
        %v2700 = vpop.f32.mrb[0].mxu0
        %v2701 = vadd.f32 0.0, %v2700
        %v2702 = vpop.f32.mrb[0].mxu0
        %v2703 = vpop.f32.mrb[0].mxu0
        %v2704 = vadd.f32 0.0, %v2703
        %v2705 = vpop.f32.mrb[0].mxu0
        %2706 = vmatprep.mubr.bf16.mxu0 0
        %2707 = vmatmul.mubr.bf16.gmra.mrb[0].mxu0 %v1352
        %v2708 = vpop.f32.mrb[0].mxu0
        %v2709 = vadd.f32 0.0, %v2708
        %v2710 = vpop.f32.mrb[0].mxu0
        %v2711 = vpop.f32.mrb[0].mxu0
        %v2712 = vadd.f32 0.0, %v2711
        %v2713 = vpop.f32.mrb[0].mxu0
        %2714 = vdwg.mxu0
        %v2715 = vadd.f32 %v2505, %v2589
        %v2716 = vadd.f32 %v2506, %v2592
        %v2717 = vadd.f32 %v2507, %v2597
        %v2718 = vadd.f32 %v2508, %v2600
        %v2719 = vadd.f32 %v2509, %v2605
        %v2720 = vadd.f32 %v2510, %v2608
        %v2721 = vadd.f32 %v2511, %v2613
        %v2722 = vadd.f32 %v2512, %v2616
        %v2723 = vadd.f32 %v2513, %v2621
        %v2724 = vadd.f32 %v2514, %v2624
        %v2725 = vadd.f32 %v2515, %v2629
        %v2726 = vadd.f32 %v2516, %v2632
        %v2727 = vadd.f32 %v2517, %v2637
        %v2728 = vadd.f32 %v2518, %v2640
        %v2729 = vadd.f32 %v2519, %v2645
        %v2730 = vadd.f32 %v2520, %v2648
        %v2731 = vadd.f32 %v2521, %v2653
        %v2732 = vadd.f32 %v2522, %v2656
        %v2733 = vadd.f32 %v2523, %v2661
        %v2734 = vadd.f32 %v2524, %v2664
        %v2735 = vadd.f32 %v2525, %v2669
        %v2736 = vadd.f32 %v2526, %v2672
        %v2737 = vadd.f32 %v2527, %v2677
        %v2738 = vadd.f32 %v2528, %v2680
        %v2739 = vadd.f32 %v2529, %v2685
        %v2740 = vadd.f32 %v2530, %v2688
        %v2741 = vadd.f32 %v2531, %v2693
        %v2742 = vadd.f32 %v2532, %v2696
        %v2743 = vadd.f32 %v2533, %v2701
        %v2744 = vadd.f32 %v2534, %v2704
        %v2745 = vadd.f32 %v2535, %v2709
        %v2746 = vadd.f32 %v2536, %v2712
        %s2747 = scalar_lea.vmem %s3, 112
        %v2748 = vld [vmem:[%s2747] sm:$0xf]
        %v2749 = vld [vmem:[%s2747 + $0x4] sm:$0xf]
        %v2750 = vld [vmem:[%s2747 + $0x8] sm:$0xf]
        %v2751 = vld [vmem:[%s2747 + $0xc] sm:$0xf]
        %v2756 = vunpack.c.l.b16 %v2748
        %v2757 = vunpack.c.l.b16 %v2749
        %v2758 = vunpack.c.l.b16 %v2750
        %v2759 = vunpack.c.l.b16 %v2751
        %v2760 = vpack.c.b16 %v2757, %v2756
        %v2761 = vpack.c.b16 %v2759, %v2758
        %2764 = vmatprep.subr.bf16.mxu0 0
        %2765 = vmatpush1.bf16.msra.mxu0 %v2760
        %2766 = vmatprep.subr.bf16.mxu0 0
        %2767 = vmatpush1.bf16.msra.mxu0 %v2761
        %2768 = vmatprep.subr.bf16.mxu0 0
        %2769 = vmatpush1.bf16.msra.mxu0 0
        %2770 = vmatprep.subr.bf16.mxu0 0
        %2771 = vmatpush1.bf16.msra.mxu0 0
        %2772 = vmatprep.subr.bf16.mxu0 0
        %2773 = vmatpush1.bf16.msra.mxu0 0
        %2774 = vmatprep.subr.bf16.mxu0 0
        %2775 = vmatpush1.bf16.msra.mxu0 0
        %2776 = vmatprep.subr.bf16.mxu0 0
        %2777 = vmatpush1.bf16.msra.mxu0 0
        %2778 = vmatprep.subr.bf16.mxu0 0
        %2779 = vmatpush1.bf16.msra.mxu0 0
        %2780 = vmatprep.subr.bf16.mxu0 0
        %2781 = vmatpush1.bf16.msra.mxu0 0
        %2782 = vmatprep.subr.bf16.mxu0 0
        %2783 = vmatpush1.bf16.msra.mxu0 0
        %2784 = vmatprep.subr.bf16.mxu0 0
        %2785 = vmatpush1.bf16.msra.mxu0 0
        %2786 = vmatprep.subr.bf16.mxu0 0
        %2787 = vmatpush1.bf16.msra.mxu0 0
        %2788 = vmatprep.subr.bf16.mxu0 0
        %2789 = vmatpush1.bf16.msra.mxu0 0
        %2790 = vmatprep.subr.bf16.mxu0 0
        %2791 = vmatpush1.bf16.msra.mxu0 0
        %2792 = vmatprep.subr.bf16.mxu0 0
        %2793 = vmatpush1.bf16.msra.mxu0 0
        %2794 = vmatprep.subr.bf16.mxu0 0
        %2795 = vmatpush1.bf16.msra.mxu0 0
        %2796 = vmatprep.mubr.bf16.mxu0 0
        %2797 = vmatmul.mubr.bf16.gmra.mrb[0].mxu0 %v1138
        %v2798 = vpop.f32.mrb[0].mxu0
        %v2799 = vadd.f32 0.0, %v2798
        %v2800 = vpop.f32.mrb[0].mxu0
        %v2801 = vpop.f32.mrb[0].mxu0
        %v2802 = vadd.f32 0.0, %v2801
        %v2803 = vpop.f32.mrb[0].mxu0
        %2804 = vmatprep.mubr.bf16.mxu0 0
        %2805 = vmatmul.mubr.bf16.gmra.mrb[0].mxu0 %v1141
        %v2806 = vpop.f32.mrb[0].mxu0
        %v2807 = vadd.f32 0.0, %v2806
        %v2808 = vpop.f32.mrb[0].mxu0
        %v2809 = vpop.f32.mrb[0].mxu0
        %v2810 = vadd.f32 0.0, %v2809
        %v2811 = vpop.f32.mrb[0].mxu0
        %2812 = vmatprep.mubr.bf16.mxu0 0
        %2813 = vmatmul.mubr.bf16.gmra.mrb[0].mxu0 %v1144
        %v2814 = vpop.f32.mrb[0].mxu0
        %v2815 = vadd.f32 0.0, %v2814
        %v2816 = vpop.f32.mrb[0].mxu0
        %v2817 = vpop.f32.mrb[0].mxu0
        %v2818 = vadd.f32 0.0, %v2817
        %v2819 = vpop.f32.mrb[0].mxu0
        %2820 = vmatprep.mubr.bf16.mxu0 0
        %2821 = vmatmul.mubr.bf16.gmra.mrb[0].mxu0 %v1147
        %v2822 = vpop.f32.mrb[0].mxu0
        %v2823 = vadd.f32 0.0, %v2822
        %v2824 = vpop.f32.mrb[0].mxu0
        %v2825 = vpop.f32.mrb[0].mxu0
        %v2826 = vadd.f32 0.0, %v2825
        %v2827 = vpop.f32.mrb[0].mxu0
        %2828 = vmatprep.mubr.bf16.mxu0 0
        %2829 = vmatmul.mubr.bf16.gmra.mrb[0].mxu0 %v1150
        %v2830 = vpop.f32.mrb[0].mxu0
        %v2831 = vadd.f32 0.0, %v2830
        %v2832 = vpop.f32.mrb[0].mxu0
        %v2833 = vpop.f32.mrb[0].mxu0
        %v2834 = vadd.f32 0.0, %v2833
        %v2835 = vpop.f32.mrb[0].mxu0
        %2836 = vmatprep.mubr.bf16.mxu0 0
        %2837 = vmatmul.mubr.bf16.gmra.mrb[0].mxu0 %v1153
        %v2838 = vpop.f32.mrb[0].mxu0
        %v2839 = vadd.f32 0.0, %v2838
        %v2840 = vpop.f32.mrb[0].mxu0
        %v2841 = vpop.f32.mrb[0].mxu0
        %v2842 = vadd.f32 0.0, %v2841
        %v2843 = vpop.f32.mrb[0].mxu0
        %2844 = vmatprep.mubr.bf16.mxu0 0
        %2845 = vmatmul.mubr.bf16.gmra.mrb[0].mxu0 %v1156
        %v2846 = vpop.f32.mrb[0].mxu0
        %v2847 = vadd.f32 0.0, %v2846
        %v2848 = vpop.f32.mrb[0].mxu0
        %v2849 = vpop.f32.mrb[0].mxu0
        %v2850 = vadd.f32 0.0, %v2849
        %v2851 = vpop.f32.mrb[0].mxu0
        %2852 = vmatprep.mubr.bf16.mxu0 0
        %2853 = vmatmul.mubr.bf16.gmra.mrb[0].mxu0 %v1159
        %v2854 = vpop.f32.mrb[0].mxu0
        %v2855 = vadd.f32 0.0, %v2854
        %v2856 = vpop.f32.mrb[0].mxu0
        %v2857 = vpop.f32.mrb[0].mxu0
        %v2858 = vadd.f32 0.0, %v2857
        %v2859 = vpop.f32.mrb[0].mxu0
        %2860 = vmatprep.mubr.bf16.mxu0 0
        %2861 = vmatmul.mubr.bf16.gmra.mrb[0].mxu0 %v1162
        %v2862 = vpop.f32.mrb[0].mxu0
        %v2863 = vadd.f32 0.0, %v2862
        %v2864 = vpop.f32.mrb[0].mxu0
        %v2865 = vpop.f32.mrb[0].mxu0
        %v2866 = vadd.f32 0.0, %v2865
        %v2867 = vpop.f32.mrb[0].mxu0
        %2868 = vmatprep.mubr.bf16.mxu0 0
        %2869 = vmatmul.mubr.bf16.gmra.mrb[0].mxu0 %v1165
        %v2870 = vpop.f32.mrb[0].mxu0
        %v2871 = vadd.f32 0.0, %v2870
        %v2872 = vpop.f32.mrb[0].mxu0
        %v2873 = vpop.f32.mrb[0].mxu0
        %v2874 = vadd.f32 0.0, %v2873
        %v2875 = vpop.f32.mrb[0].mxu0
        %2876 = vmatprep.mubr.bf16.mxu0 0
        %2877 = vmatmul.mubr.bf16.gmra.mrb[0].mxu0 %v1168
        %v2878 = vpop.f32.mrb[0].mxu0
        %v2879 = vadd.f32 0.0, %v2878
        %v2880 = vpop.f32.mrb[0].mxu0
        %v2881 = vpop.f32.mrb[0].mxu0
        %v2882 = vadd.f32 0.0, %v2881
        %v2883 = vpop.f32.mrb[0].mxu0
        %2884 = vmatprep.mubr.bf16.mxu0 0
        %2885 = vmatmul.mubr.bf16.gmra.mrb[0].mxu0 %v1171
        %v2886 = vpop.f32.mrb[0].mxu0
        %v2887 = vadd.f32 0.0, %v2886
        %v2888 = vpop.f32.mrb[0].mxu0
        %v2889 = vpop.f32.mrb[0].mxu0
        %v2890 = vadd.f32 0.0, %v2889
        %v2891 = vpop.f32.mrb[0].mxu0
        %2892 = vmatprep.mubr.bf16.mxu0 0
        %2893 = vmatmul.mubr.bf16.gmra.mrb[0].mxu0 %v1174
        %v2894 = vpop.f32.mrb[0].mxu0
        %v2895 = vadd.f32 0.0, %v2894
        %v2896 = vpop.f32.mrb[0].mxu0
        %v2897 = vpop.f32.mrb[0].mxu0
        %v2898 = vadd.f32 0.0, %v2897
        %v2899 = vpop.f32.mrb[0].mxu0
        %2900 = vmatprep.mubr.bf16.mxu0 0
        %2901 = vmatmul.mubr.bf16.gmra.mrb[0].mxu0 %v1177
        %v2902 = vpop.f32.mrb[0].mxu0
        %v2903 = vadd.f32 0.0, %v2902
        %v2904 = vpop.f32.mrb[0].mxu0
        %v2905 = vpop.f32.mrb[0].mxu0
        %v2906 = vadd.f32 0.0, %v2905
        %v2907 = vpop.f32.mrb[0].mxu0
        %2908 = vmatprep.mubr.bf16.mxu0 0
        %2909 = vmatmul.mubr.bf16.gmra.mrb[0].mxu0 %v2124
        %v2910 = vpop.f32.mrb[0].mxu0
        %v2911 = vadd.f32 0.0, %v2910
        %v2912 = vpop.f32.mrb[0].mxu0
        %v2913 = vpop.f32.mrb[0].mxu0
        %v2914 = vadd.f32 0.0, %v2913
        %v2915 = vpop.f32.mrb[0].mxu0
        %2916 = vmatprep.mubr.bf16.mxu0 0
        %2917 = vmatmul.mubr.bf16.gmra.mrb[0].mxu0 %v1132
        %v2918 = vpop.f32.mrb[0].mxu0
        %v2919 = vadd.f32 0.0, %v2918
        %v2920 = vpop.f32.mrb[0].mxu0
        %v2921 = vpop.f32.mrb[0].mxu0
        %v2922 = vadd.f32 0.0, %v2921
        %v2923 = vpop.f32.mrb[0].mxu0
        %2924 = vdwg.mxu0
        %v2925 = vadd.f32 %v2715, %v2799
        %v2926 = vadd.f32 %v2716, %v2802
        %v2927 = vadd.f32 %v2717, %v2807
        %v2928 = vadd.f32 %v2718, %v2810
        %v2929 = vadd.f32 %v2719, %v2815
        %v2930 = vadd.f32 %v2720, %v2818
        %v2931 = vadd.f32 %v2721, %v2823
        %v2932 = vadd.f32 %v2722, %v2826
        %v2933 = vadd.f32 %v2723, %v2831
        %v2934 = vadd.f32 %v2724, %v2834
        %v2935 = vadd.f32 %v2725, %v2839
        %v2936 = vadd.f32 %v2726, %v2842
        %v2937 = vadd.f32 %v2727, %v2847
        %v2938 = vadd.f32 %v2728, %v2850
        %v2939 = vadd.f32 %v2729, %v2855
        %v2940 = vadd.f32 %v2730, %v2858
        %v2941 = vadd.f32 %v2731, %v2863
        %v2942 = vadd.f32 %v2732, %v2866
        %v2943 = vadd.f32 %v2733, %v2871
        %v2944 = vadd.f32 %v2734, %v2874
        %v2945 = vadd.f32 %v2735, %v2879
        %v2946 = vadd.f32 %v2736, %v2882
        %v2947 = vadd.f32 %v2737, %v2887
        %v2948 = vadd.f32 %v2738, %v2890
        %v2949 = vadd.f32 %v2739, %v2895
        %v2950 = vadd.f32 %v2740, %v2898
        %v2951 = vadd.f32 %v2741, %v2903
        %v2952 = vadd.f32 %v2742, %v2906
        %v2953 = vadd.f32 %v2743, %v2911
        %v2954 = vadd.f32 %v2744, %v2914
        %v2955 = vadd.f32 %v2745, %v2919
        %v2956 = vadd.f32 %v2746, %v2922
        %s2957 = scalar_lea.vmem %s3, 128
        %v2958 = vld [vmem:[%s2957] sm:$0xf]
        %v2959 = vld [vmem:[%s2957 + $0x4] sm:$0xf]
        %v2960 = vld [vmem:[%s2957 + $0x8] sm:$0xf]
        %v2961 = vld [vmem:[%s2957 + $0xc] sm:$0xf]
        %v2966 = vunpack.c.l.b16 %v2958
        %v2967 = vunpack.c.l.b16 %v2959
        %v2968 = vunpack.c.l.b16 %v2960
        %v2969 = vunpack.c.l.b16 %v2961
        %v2970 = vpack.c.b16 %v2967, %v2966
        %v2971 = vpack.c.b16 %v2969, %v2968
        %2974 = vmatprep.subr.bf16.mxu0 0
        %2975 = vmatpush1.bf16.msra.mxu0 %v2970
        %2976 = vmatprep.subr.bf16.mxu0 0
        %2977 = vmatpush1.bf16.msra.mxu0 %v2971
        %2978 = vmatprep.subr.bf16.mxu0 0
        %2979 = vmatpush1.bf16.msra.mxu0 0
        %2980 = vmatprep.subr.bf16.mxu0 0
        %2981 = vmatpush1.bf16.msra.mxu0 0
        %2982 = vmatprep.subr.bf16.mxu0 0
        %2983 = vmatpush1.bf16.msra.mxu0 0
        %2984 = vmatprep.subr.bf16.mxu0 0
        %2985 = vmatpush1.bf16.msra.mxu0 0
        %2986 = vmatprep.subr.bf16.mxu0 0
        %2987 = vmatpush1.bf16.msra.mxu0 0
        %2988 = vmatprep.subr.bf16.mxu0 0
        %2989 = vmatpush1.bf16.msra.mxu0 0
        %2990 = vmatprep.subr.bf16.mxu0 0
        %2991 = vmatpush1.bf16.msra.mxu0 0
        %2992 = vmatprep.subr.bf16.mxu0 0
        %2993 = vmatpush1.bf16.msra.mxu0 0
        %2994 = vmatprep.subr.bf16.mxu0 0
        %2995 = vmatpush1.bf16.msra.mxu0 0
        %2996 = vmatprep.subr.bf16.mxu0 0
        %2997 = vmatpush1.bf16.msra.mxu0 0
        %2998 = vmatprep.subr.bf16.mxu0 0
        %2999 = vmatpush1.bf16.msra.mxu0 0
        %3000 = vmatprep.subr.bf16.mxu0 0
        %3001 = vmatpush1.bf16.msra.mxu0 0
        %3002 = vmatprep.subr.bf16.mxu0 0
        %3003 = vmatpush1.bf16.msra.mxu0 0
        %3004 = vmatprep.subr.bf16.mxu0 0
        %3005 = vmatpush1.bf16.msra.mxu0 0
        %3006 = vmatprep.mubr.bf16.mxu0 0
        %3007 = vmatmul.mubr.bf16.gmra.mrb[0].mxu0 %v1648
        %v3008 = vpop.f32.mrb[0].mxu0
        %v3009 = vadd.f32 0.0, %v3008
        %v3010 = vpop.f32.mrb[0].mxu0
        %v3011 = vpop.f32.mrb[0].mxu0
        %v3012 = vadd.f32 0.0, %v3011
        %v3013 = vpop.f32.mrb[0].mxu0
        %3014 = vmatprep.mubr.bf16.mxu0 0
        %3015 = vmatmul.mubr.bf16.gmra.mrb[0].mxu0 %v1651
        %v3016 = vpop.f32.mrb[0].mxu0
        %v3017 = vadd.f32 0.0, %v3016
        %v3018 = vpop.f32.mrb[0].mxu0
        %v3019 = vpop.f32.mrb[0].mxu0
        %v3020 = vadd.f32 0.0, %v3019
        %v3021 = vpop.f32.mrb[0].mxu0
        %3022 = vmatprep.mubr.bf16.mxu0 0
        %3023 = vmatmul.mubr.bf16.gmra.mrb[0].mxu0 %v1654
        %v3024 = vpop.f32.mrb[0].mxu0
        %v3025 = vadd.f32 0.0, %v3024
        %v3026 = vpop.f32.mrb[0].mxu0
        %v3027 = vpop.f32.mrb[0].mxu0
        %v3028 = vadd.f32 0.0, %v3027
        %v3029 = vpop.f32.mrb[0].mxu0
        %3030 = vmatprep.mubr.bf16.mxu0 0
        %3031 = vmatmul.mubr.bf16.gmra.mrb[0].mxu0 %v1657
        %v3032 = vpop.f32.mrb[0].mxu0
        %v3033 = vadd.f32 0.0, %v3032
        %v3034 = vpop.f32.mrb[0].mxu0
        %v3035 = vpop.f32.mrb[0].mxu0
        %v3036 = vadd.f32 0.0, %v3035
        %v3037 = vpop.f32.mrb[0].mxu0
        %3038 = vmatprep.mubr.bf16.mxu0 0
        %3039 = vmatmul.mubr.bf16.gmra.mrb[0].mxu0 %v1660
        %v3040 = vpop.f32.mrb[0].mxu0
        %v3041 = vadd.f32 0.0, %v3040
        %v3042 = vpop.f32.mrb[0].mxu0
        %v3043 = vpop.f32.mrb[0].mxu0
        %v3044 = vadd.f32 0.0, %v3043
        %v3045 = vpop.f32.mrb[0].mxu0
        %3046 = vmatprep.mubr.bf16.mxu0 0
        %3047 = vmatmul.mubr.bf16.gmra.mrb[0].mxu0 %v1663
        %v3048 = vpop.f32.mrb[0].mxu0
        %v3049 = vadd.f32 0.0, %v3048
        %v3050 = vpop.f32.mrb[0].mxu0
        %v3051 = vpop.f32.mrb[0].mxu0
        %v3052 = vadd.f32 0.0, %v3051
        %v3053 = vpop.f32.mrb[0].mxu0
        %3054 = vmatprep.mubr.bf16.mxu0 0
        %3055 = vmatmul.mubr.bf16.gmra.mrb[0].mxu0 %v1666
        %v3056 = vpop.f32.mrb[0].mxu0
        %v3057 = vadd.f32 0.0, %v3056
        %v3058 = vpop.f32.mrb[0].mxu0
        %v3059 = vpop.f32.mrb[0].mxu0
        %v3060 = vadd.f32 0.0, %v3059
        %v3061 = vpop.f32.mrb[0].mxu0
        %3062 = vmatprep.mubr.bf16.mxu0 0
        %3063 = vmatmul.mubr.bf16.gmra.mrb[0].mxu0 %v1669
        %v3064 = vpop.f32.mrb[0].mxu0
        %v3065 = vadd.f32 0.0, %v3064
        %v3066 = vpop.f32.mrb[0].mxu0
        %v3067 = vpop.f32.mrb[0].mxu0
        %v3068 = vadd.f32 0.0, %v3067
        %v3069 = vpop.f32.mrb[0].mxu0
        %3070 = vmatprep.mubr.bf16.mxu0 0
        %3071 = vmatmul.mubr.bf16.gmra.mrb[0].mxu0 %v1672
        %v3072 = vpop.f32.mrb[0].mxu0
        %v3073 = vadd.f32 0.0, %v3072
        %v3074 = vpop.f32.mrb[0].mxu0
        %v3075 = vpop.f32.mrb[0].mxu0
        %v3076 = vadd.f32 0.0, %v3075
        %v3077 = vpop.f32.mrb[0].mxu0
        %3078 = vmatprep.mubr.bf16.mxu0 0
        %3079 = vmatmul.mubr.bf16.gmra.mrb[0].mxu0 %v1675
        %v3080 = vpop.f32.mrb[0].mxu0
        %v3081 = vadd.f32 0.0, %v3080
        %v3082 = vpop.f32.mrb[0].mxu0
        %v3083 = vpop.f32.mrb[0].mxu0
        %v3084 = vadd.f32 0.0, %v3083
        %v3085 = vpop.f32.mrb[0].mxu0
        %3086 = vmatprep.mubr.bf16.mxu0 0
        %3087 = vmatmul.mubr.bf16.gmra.mrb[0].mxu0 %v1678
        %v3088 = vpop.f32.mrb[0].mxu0
        %v3089 = vadd.f32 0.0, %v3088
        %v3090 = vpop.f32.mrb[0].mxu0
        %v3091 = vpop.f32.mrb[0].mxu0
        %v3092 = vadd.f32 0.0, %v3091
        %v3093 = vpop.f32.mrb[0].mxu0
        %3094 = vmatprep.mubr.bf16.mxu0 0
        %3095 = vmatmul.mubr.bf16.gmra.mrb[0].mxu0 %v1681
        %v3096 = vpop.f32.mrb[0].mxu0
        %v3097 = vadd.f32 0.0, %v3096
        %v3098 = vpop.f32.mrb[0].mxu0
        %v3099 = vpop.f32.mrb[0].mxu0
        %v3100 = vadd.f32 0.0, %v3099
        %v3101 = vpop.f32.mrb[0].mxu0
        %3102 = vmatprep.mubr.bf16.mxu0 0
        %3103 = vmatmul.mubr.bf16.gmra.mrb[0].mxu0 %v1684
        %v3104 = vpop.f32.mrb[0].mxu0
        %v3105 = vadd.f32 0.0, %v3104
        %v3106 = vpop.f32.mrb[0].mxu0
        %v3107 = vpop.f32.mrb[0].mxu0
        %v3108 = vadd.f32 0.0, %v3107
        %v3109 = vpop.f32.mrb[0].mxu0
        %3110 = vmatprep.mubr.bf16.mxu0 0
        %3111 = vmatmul.mubr.bf16.gmra.mrb[0].mxu0 %v1687
        %v3112 = vpop.f32.mrb[0].mxu0
        %v3113 = vadd.f32 0.0, %v3112
        %v3114 = vpop.f32.mrb[0].mxu0
        %v3115 = vpop.f32.mrb[0].mxu0
        %v3116 = vadd.f32 0.0, %v3115
        %v3117 = vpop.f32.mrb[0].mxu0
        %3118 = vmatprep.mubr.bf16.mxu0 0
        %3119 = vmatmul.mubr.bf16.gmra.mrb[0].mxu0 %v2342
        %v3120 = vpop.f32.mrb[0].mxu0
        %v3121 = vadd.f32 0.0, %v3120
        %v3122 = vpop.f32.mrb[0].mxu0
        %v3123 = vpop.f32.mrb[0].mxu0
        %v3124 = vadd.f32 0.0, %v3123
        %v3125 = vpop.f32.mrb[0].mxu0
        %3126 = vmatprep.mubr.bf16.mxu0 0
        %3127 = vmatmul.mubr.bf16.gmra.mrb[0].mxu0 %v1642
        %v3128 = vpop.f32.mrb[0].mxu0
        %v3129 = vadd.f32 0.0, %v3128
        %v3130 = vpop.f32.mrb[0].mxu0
        %v3131 = vpop.f32.mrb[0].mxu0
        %v3132 = vadd.f32 0.0, %v3131
        %v3133 = vpop.f32.mrb[0].mxu0
        %3134 = vdwg.mxu0
        %v3135 = vadd.f32 %v2925, %v3009
        %v3136 = vadd.f32 %v2926, %v3012
        %v3137 = vadd.f32 %v2927, %v3017
        %v3138 = vadd.f32 %v2928, %v3020
        %v3139 = vadd.f32 %v2929, %v3025
        %v3140 = vadd.f32 %v2930, %v3028
        %v3141 = vadd.f32 %v2931, %v3033
        %v3142 = vadd.f32 %v2932, %v3036
        %v3143 = vadd.f32 %v2933, %v3041
        %v3144 = vadd.f32 %v2934, %v3044
        %v3145 = vadd.f32 %v2935, %v3049
        %v3146 = vadd.f32 %v2936, %v3052
        %v3147 = vadd.f32 %v2937, %v3057
        %v3148 = vadd.f32 %v2938, %v3060
        %v3149 = vadd.f32 %v2939, %v3065
        %v3150 = vadd.f32 %v2940, %v3068
        %v3151 = vadd.f32 %v2941, %v3073
        %v3152 = vadd.f32 %v2942, %v3076
        %v3153 = vadd.f32 %v2943, %v3081
        %v3154 = vadd.f32 %v2944, %v3084
        %v3155 = vadd.f32 %v2945, %v3089
        %v3156 = vadd.f32 %v2946, %v3092
        %v3157 = vadd.f32 %v2947, %v3097
        %v3158 = vadd.f32 %v2948, %v3100
        %v3159 = vadd.f32 %v2949, %v3105
        %v3160 = vadd.f32 %v2950, %v3108
        %v3161 = vadd.f32 %v2951, %v3113
        %v3162 = vadd.f32 %v2952, %v3116
        %v3163 = vadd.f32 %v2953, %v3121
        %v3164 = vadd.f32 %v2954, %v3124
        %v3165 = vadd.f32 %v2955, %v3129
        %v3166 = vadd.f32 %v2956, %v3132
        %v3167 = vld [vmem:[%s4] sm:$0x1]
        %v3169 = vlaneseq
        %v3170 = vshrl.u32 %v3169, 7
        %v3171 = vsub.s32 0, %v3170
        %v3172 = vrot.slane %v3167, %v3171
        %v3174 = vadd.f32 %v3135, %v3172
        %v3175 = vadd.f32 %v3136, %v3172
        %v3176 = vadd.f32 %v3137, %v3172
        %v3177 = vadd.f32 %v3138, %v3172
        %v3178 = vadd.f32 %v3139, %v3172
        %v3179 = vadd.f32 %v3140, %v3172
        %v3180 = vadd.f32 %v3141, %v3172
        %v3181 = vadd.f32 %v3142, %v3172
        %v3182 = vadd.f32 %v3143, %v3172
        %v3183 = vadd.f32 %v3144, %v3172
        %v3184 = vadd.f32 %v3145, %v3172
        %v3185 = vadd.f32 %v3146, %v3172
        %v3186 = vadd.f32 %v3147, %v3172
        %v3187 = vadd.f32 %v3148, %v3172
        %v3188 = vadd.f32 %v3149, %v3172
        %v3189 = vadd.f32 %v3150, %v3172
        %v3190 = vadd.f32 %v3151, %v3172
        %v3191 = vadd.f32 %v3152, %v3172
        %v3192 = vadd.f32 %v3153, %v3172
        %v3193 = vadd.f32 %v3154, %v3172
        %v3194 = vadd.f32 %v3155, %v3172
        %v3195 = vadd.f32 %v3156, %v3172
        %v3196 = vadd.f32 %v3157, %v3172
        %v3197 = vadd.f32 %v3158, %v3172
        %v3198 = vadd.f32 %v3159, %v3172
        %v3199 = vadd.f32 %v3160, %v3172
        %v3200 = vadd.f32 %v3161, %v3172
        %v3201 = vadd.f32 %v3162, %v3172
        %v3202 = vadd.f32 %v3163, %v3172
        %v3203 = vadd.f32 %v3164, %v3172
        %v3204 = vadd.f32 %v3165, %v3172
        %v3205 = vadd.f32 %v3166, %v3172
        %v3206 = vmax.f32 %v3174, 0.0
        %v3207 = vmax.f32 %v3175, 0.0
        %v3208 = vmax.f32 %v3176, 0.0
        %v3209 = vmax.f32 %v3177, 0.0
        %v3210 = vmax.f32 %v3178, 0.0
        %v3211 = vmax.f32 %v3179, 0.0
        %v3212 = vmax.f32 %v3180, 0.0
        %v3213 = vmax.f32 %v3181, 0.0
        %v3214 = vmax.f32 %v3182, 0.0
        %v3215 = vmax.f32 %v3183, 0.0
        %v3216 = vmax.f32 %v3184, 0.0
        %v3217 = vmax.f32 %v3185, 0.0
        %v3218 = vmax.f32 %v3186, 0.0
        %v3219 = vmax.f32 %v3187, 0.0
        %v3220 = vmax.f32 %v3188, 0.0
        %v3221 = vmax.f32 %v3189, 0.0
        %v3222 = vmax.f32 %v3190, 0.0
        %v3223 = vmax.f32 %v3191, 0.0
        %v3224 = vmax.f32 %v3192, 0.0
        %v3225 = vmax.f32 %v3193, 0.0
        %v3226 = vmax.f32 %v3194, 0.0
        %v3227 = vmax.f32 %v3195, 0.0
        %v3228 = vmax.f32 %v3196, 0.0
        %v3229 = vmax.f32 %v3197, 0.0
        %v3230 = vmax.f32 %v3198, 0.0
        %v3231 = vmax.f32 %v3199, 0.0
        %v3232 = vmax.f32 %v3200, 0.0
        %v3233 = vmax.f32 %v3201, 0.0
        %v3234 = vmax.f32 %v3202, 0.0
        %v3235 = vmax.f32 %v3203, 0.0
        %v3236 = vmax.f32 %v3204, 0.0
        %v3237 = vmax.f32 %v3205, 0.0
        %v3238 = vpack.c.bf16 %v3207, %v3206
        %v3239 = vpack.c.bf16 %v3209, %v3208
        %v3240 = vpack.c.bf16 %v3211, %v3210
        %v3241 = vpack.c.bf16 %v3213, %v3212
        %v3242 = vpack.c.bf16 %v3215, %v3214
        %v3243 = vpack.c.bf16 %v3217, %v3216
        %v3244 = vpack.c.bf16 %v3219, %v3218
        %v3245 = vpack.c.bf16 %v3221, %v3220
        %v3246 = vpack.c.bf16 %v3223, %v3222
        %v3247 = vpack.c.bf16 %v3225, %v3224
        %v3248 = vpack.c.bf16 %v3227, %v3226
        %v3249 = vpack.c.bf16 %v3229, %v3228
        %v3250 = vpack.c.bf16 %v3231, %v3230
        %v3251 = vpack.c.bf16 %v3233, %v3232
        %v3252 = vpack.c.bf16 %v3235, %v3234
        %v3253 = vpack.c.bf16 %v3237, %v3236
        %v3254 = vld [vmem:[%s5] sm:$0xf]
        %v3255 = vld [vmem:[%s5 + $0x4] sm:$0xf]
        %v3256 = vld [vmem:[%s5 + $0x8] sm:$0xf]
        %v3257 = vld [vmem:[%s5 + $0xc] sm:$0xf]
        %v3258 = vld [vmem:[%s6] sm:$0x1]
        %v3260 = vlaneseq
        %v3261 = vshrl.u32 %v3260, 7
        %v3262 = vsub.s32 0, %v3261
        %v3263 = vrot.slane %v3258, %v3262
        %v3269 = vunpack.c.l.b16 %v3254
        %v3270 = vunpack.c.l.b16 %v3255
        %v3271 = vunpack.c.l.b16 %v3256
        %v3272 = vunpack.c.l.b16 %v3257
        %v3273 = vpack.c.b16 %v3270, %v3269
        %v3274 = vpack.c.b16 %v3272, %v3271
        %v3278 = vsel %vm1130, %v3238, 0
        %v3281 = vsel %vm1130, %v3239, 0
        %v3284 = vsel %vm1130, %v3240, 0
        %v3287 = vsel %vm1130, %v3241, 0
        %v3290 = vsel %vm1130, %v3242, 0
        %v3293 = vsel %vm1130, %v3243, 0
        %v3296 = vsel %vm1130, %v3244, 0
        %v3299 = vsel %vm1130, %v3245, 0
        %v3302 = vsel %vm1130, %v3246, 0
        %v3305 = vsel %vm1130, %v3247, 0
        %v3308 = vsel %vm1130, %v3248, 0
        %v3311 = vsel %vm1130, %v3249, 0
        %v3314 = vsel %vm1130, %v3250, 0
        %v3317 = vsel %vm1130, %v3251, 0
        %v3320 = vsel %vm1130, %v3252, 0
        %v3323 = vsel %vm1130, %v3253, 0
        %3325 = vmatprep.subr.bf16.mxu0 0
        %3326 = vmatpush1.bf16.msra.mxu0 %v3273
        %3327 = vmatprep.subr.bf16.mxu0 0
        %3328 = vmatpush1.bf16.msra.mxu0 %v3274
        %3329 = vmatprep.subr.bf16.mxu0 0
        %3330 = vmatpush1.bf16.msra.mxu0 0
        %3331 = vmatprep.subr.bf16.mxu0 0
        %3332 = vmatpush1.bf16.msra.mxu0 0
        %3333 = vmatprep.subr.bf16.mxu0 0
        %3334 = vmatpush1.bf16.msra.mxu0 0
        %3335 = vmatprep.subr.bf16.mxu0 0
        %3336 = vmatpush1.bf16.msra.mxu0 0
        %3337 = vmatprep.subr.bf16.mxu0 0
        %3338 = vmatpush1.bf16.msra.mxu0 0
        %3339 = vmatprep.subr.bf16.mxu0 0
        %3340 = vmatpush1.bf16.msra.mxu0 0
        %3341 = vmatprep.subr.bf16.mxu0 0
        %3342 = vmatpush1.bf16.msra.mxu0 0
        %3343 = vmatprep.subr.bf16.mxu0 0
        %3344 = vmatpush1.bf16.msra.mxu0 0
        %3345 = vmatprep.subr.bf16.mxu0 0
        %3346 = vmatpush1.bf16.msra.mxu0 0
        %3347 = vmatprep.subr.bf16.mxu0 0
        %3348 = vmatpush1.bf16.msra.mxu0 0
        %3349 = vmatprep.subr.bf16.mxu0 0
        %3350 = vmatpush1.bf16.msra.mxu0 0
        %3351 = vmatprep.subr.bf16.mxu0 0
        %3352 = vmatpush1.bf16.msra.mxu0 0
        %3353 = vmatprep.subr.bf16.mxu0 0
        %3354 = vmatpush1.bf16.msra.mxu0 0
        %3355 = vmatprep.subr.bf16.mxu0 0
        %3356 = vmatpush1.bf16.msra.mxu0 0
        %3357 = vmatprep.mubr.bf16.mxu0 0
        %3358 = vmatmul.mubr.bf16.gmra.mrb[0].mxu0 %v3278
        %v3359 = vpop.f32.mrb[0].mxu0
        %v3360 = vadd.f32 %v3263, %v3359
        %v3361 = vpop.f32.mrb[0].mxu0
        %v3362 = vpop.f32.mrb[0].mxu0
        %v3363 = vadd.f32 %v3263, %v3362
        %v3364 = vpop.f32.mrb[0].mxu0
        %3365 = vmatprep.mubr.bf16.mxu0 0
        %3366 = vmatmul.mubr.bf16.gmra.mrb[0].mxu0 %v3281
        %v3367 = vpop.f32.mrb[0].mxu0
        %v3368 = vadd.f32 %v3263, %v3367
        %v3369 = vpop.f32.mrb[0].mxu0
        %v3370 = vpop.f32.mrb[0].mxu0
        %v3371 = vadd.f32 %v3263, %v3370
        %v3372 = vpop.f32.mrb[0].mxu0
        %3373 = vmatprep.mubr.bf16.mxu0 0
        %3374 = vmatmul.mubr.bf16.gmra.mrb[0].mxu0 %v3284
        %v3375 = vpop.f32.mrb[0].mxu0
        %v3376 = vadd.f32 %v3263, %v3375
        %v3377 = vpop.f32.mrb[0].mxu0
        %v3378 = vpop.f32.mrb[0].mxu0
        %v3379 = vadd.f32 %v3263, %v3378
        %v3380 = vpop.f32.mrb[0].mxu0
        %3381 = vmatprep.mubr.bf16.mxu0 0
        %3382 = vmatmul.mubr.bf16.gmra.mrb[0].mxu0 %v3287
        %v3383 = vpop.f32.mrb[0].mxu0
        %v3384 = vadd.f32 %v3263, %v3383
        %v3385 = vpop.f32.mrb[0].mxu0
        %v3386 = vpop.f32.mrb[0].mxu0
        %v3387 = vadd.f32 %v3263, %v3386
        %v3388 = vpop.f32.mrb[0].mxu0
        %3389 = vmatprep.mubr.bf16.mxu0 0
        %3390 = vmatmul.mubr.bf16.gmra.mrb[0].mxu0 %v3290
        %v3391 = vpop.f32.mrb[0].mxu0
        %v3392 = vadd.f32 %v3263, %v3391
        %v3393 = vpop.f32.mrb[0].mxu0
        %v3394 = vpop.f32.mrb[0].mxu0
        %v3395 = vadd.f32 %v3263, %v3394
        %v3396 = vpop.f32.mrb[0].mxu0
        %3397 = vmatprep.mubr.bf16.mxu0 0
        %3398 = vmatmul.mubr.bf16.gmra.mrb[0].mxu0 %v3293
        %v3399 = vpop.f32.mrb[0].mxu0
        %v3400 = vadd.f32 %v3263, %v3399
        %v3401 = vpop.f32.mrb[0].mxu0
        %v3402 = vpop.f32.mrb[0].mxu0
        %v3403 = vadd.f32 %v3263, %v3402
        %v3404 = vpop.f32.mrb[0].mxu0
        %3405 = vmatprep.mubr.bf16.mxu0 0
        %3406 = vmatmul.mubr.bf16.gmra.mrb[0].mxu0 %v3296
        %v3407 = vpop.f32.mrb[0].mxu0
        %v3408 = vadd.f32 %v3263, %v3407
        %v3409 = vpop.f32.mrb[0].mxu0
        %v3410 = vpop.f32.mrb[0].mxu0
        %v3411 = vadd.f32 %v3263, %v3410
        %v3412 = vpop.f32.mrb[0].mxu0
        %3413 = vmatprep.mubr.bf16.mxu0 0
        %3414 = vmatmul.mubr.bf16.gmra.mrb[0].mxu0 %v3299
        %v3415 = vpop.f32.mrb[0].mxu0
        %v3416 = vadd.f32 %v3263, %v3415
        %v3417 = vpop.f32.mrb[0].mxu0
        %v3418 = vpop.f32.mrb[0].mxu0
        %v3419 = vadd.f32 %v3263, %v3418
        %v3420 = vpop.f32.mrb[0].mxu0
        %3421 = vmatprep.mubr.bf16.mxu0 0
        %3422 = vmatmul.mubr.bf16.gmra.mrb[0].mxu0 %v3302
        %v3423 = vpop.f32.mrb[0].mxu0
        %v3424 = vadd.f32 %v3263, %v3423
        %v3425 = vpop.f32.mrb[0].mxu0
        %v3426 = vpop.f32.mrb[0].mxu0
        %v3427 = vadd.f32 %v3263, %v3426
        %v3428 = vpop.f32.mrb[0].mxu0
        %3429 = vmatprep.mubr.bf16.mxu0 0
        %3430 = vmatmul.mubr.bf16.gmra.mrb[0].mxu0 %v3305
        %v3431 = vpop.f32.mrb[0].mxu0
        %v3432 = vadd.f32 %v3263, %v3431
        %v3433 = vpop.f32.mrb[0].mxu0
        %v3434 = vpop.f32.mrb[0].mxu0
        %v3435 = vadd.f32 %v3263, %v3434
        %v3436 = vpop.f32.mrb[0].mxu0
        %3437 = vmatprep.mubr.bf16.mxu0 0
        %3438 = vmatmul.mubr.bf16.gmra.mrb[0].mxu0 %v3308
        %v3439 = vpop.f32.mrb[0].mxu0
        %v3440 = vadd.f32 %v3263, %v3439
        %v3441 = vpop.f32.mrb[0].mxu0
        %v3442 = vpop.f32.mrb[0].mxu0
        %v3443 = vadd.f32 %v3263, %v3442
        %v3444 = vpop.f32.mrb[0].mxu0
        %3445 = vmatprep.mubr.bf16.mxu0 0
        %3446 = vmatmul.mubr.bf16.gmra.mrb[0].mxu0 %v3311
        %v3447 = vpop.f32.mrb[0].mxu0
        %v3448 = vadd.f32 %v3263, %v3447
        %v3449 = vpop.f32.mrb[0].mxu0
        %v3450 = vpop.f32.mrb[0].mxu0
        %v3451 = vadd.f32 %v3263, %v3450
        %v3452 = vpop.f32.mrb[0].mxu0
        %3453 = vmatprep.mubr.bf16.mxu0 0
        %3454 = vmatmul.mubr.bf16.gmra.mrb[0].mxu0 %v3314
        %v3455 = vpop.f32.mrb[0].mxu0
        %v3456 = vadd.f32 %v3263, %v3455
        %v3457 = vpop.f32.mrb[0].mxu0
        %v3458 = vpop.f32.mrb[0].mxu0
        %v3459 = vadd.f32 %v3263, %v3458
        %v3460 = vpop.f32.mrb[0].mxu0
        %3461 = vmatprep.mubr.bf16.mxu0 0
        %3462 = vmatmul.mubr.bf16.gmra.mrb[0].mxu0 %v3317
        %v3463 = vpop.f32.mrb[0].mxu0
        %v3464 = vadd.f32 %v3263, %v3463
        %v3465 = vpop.f32.mrb[0].mxu0
        %v3466 = vpop.f32.mrb[0].mxu0
        %v3467 = vadd.f32 %v3263, %v3466
        %v3468 = vpop.f32.mrb[0].mxu0
        %3469 = vmatprep.mubr.bf16.mxu0 0
        %3470 = vmatmul.mubr.bf16.gmra.mrb[0].mxu0 %v3320
        %v3471 = vpop.f32.mrb[0].mxu0
        %v3472 = vadd.f32 %v3263, %v3471
        %v3473 = vpop.f32.mrb[0].mxu0
        %v3474 = vpop.f32.mrb[0].mxu0
        %v3475 = vadd.f32 %v3263, %v3474
        %v3476 = vpop.f32.mrb[0].mxu0
        %3477 = vmatprep.mubr.bf16.mxu0 0
        %3478 = vmatmul.mubr.bf16.gmra.mrb[0].mxu0 %v3323
        %v3479 = vpop.f32.mrb[0].mxu0
        %v3480 = vadd.f32 %v3263, %v3479
        %v3481 = vpop.f32.mrb[0].mxu0
        %v3482 = vpop.f32.mrb[0].mxu0
        %v3483 = vadd.f32 %v3263, %v3482
        %v3484 = vpop.f32.mrb[0].mxu0
        %3485 = vdwg.mxu0
        %v3486 = vld [vmem:[%s7] sm:$0xf]
        %v3487 = vld [vmem:[%s7 + $0x4] sm:$0xf]
        %v3488 = vld [vmem:[%s7 + $0x8] sm:$0xf]
        %v3489 = vld [vmem:[%s7 + $0xc] sm:$0xf]
        %v3490 = vld [vmem:[%s7 + $0x10] sm:$0xf]
        %v3491 = vld [vmem:[%s7 + $0x14] sm:$0xf]
        %v3492 = vld [vmem:[%s7 + $0x18] sm:$0xf]
        %v3493 = vld [vmem:[%s7 + $0x1c] sm:$0xf]
        %v3502 = vunpack.c.l.b16 %v3486
        %v3503 = vunpack.c.l.b16 %v3487
        %v3504 = vunpack.c.l.b16 %v3488
        %v3505 = vunpack.c.l.b16 %v3489
        %v3506 = vunpack.c.l.b16 %v3490
        %v3507 = vunpack.c.l.b16 %v3491
        %v3508 = vunpack.c.l.b16 %v3492
        %v3509 = vunpack.c.l.b16 %v3493
        %v3510 = vpack.c.b16 %v3503, %v3502
        %v3511 = vpack.c.b16 %v3505, %v3504
        %v3512 = vpack.c.b16 %v3507, %v3506
        %v3513 = vpack.c.b16 %v3509, %v3508
        %3518 = vmatprep.subr.bf16.mxu0 0
        %3519 = vmatpush1.bf16.msra.mxu0 %v3510
        %3520 = vmatprep.subr.bf16.mxu0 0
        %3521 = vmatpush1.bf16.msra.mxu0 %v3511
        %3522 = vmatprep.subr.bf16.mxu0 0
        %3523 = vmatpush1.bf16.msra.mxu0 %v3512
        %3524 = vmatprep.subr.bf16.mxu0 0
        %3525 = vmatpush1.bf16.msra.mxu0 %v3513
        %3526 = vmatprep.subr.bf16.mxu0 0
        %3527 = vmatpush1.bf16.msra.mxu0 0
        %3528 = vmatprep.subr.bf16.mxu0 0
        %3529 = vmatpush1.bf16.msra.mxu0 0
        %3530 = vmatprep.subr.bf16.mxu0 0
        %3531 = vmatpush1.bf16.msra.mxu0 0
        %3532 = vmatprep.subr.bf16.mxu0 0
        %3533 = vmatpush1.bf16.msra.mxu0 0
        %3534 = vmatprep.subr.bf16.mxu0 0
        %3535 = vmatpush1.bf16.msra.mxu0 0
        %3536 = vmatprep.subr.bf16.mxu0 0
        %3537 = vmatpush1.bf16.msra.mxu0 0
        %3538 = vmatprep.subr.bf16.mxu0 0
        %3539 = vmatpush1.bf16.msra.mxu0 0
        %3540 = vmatprep.subr.bf16.mxu0 0
        %3541 = vmatpush1.bf16.msra.mxu0 0
        %3542 = vmatprep.subr.bf16.mxu0 0
        %3543 = vmatpush1.bf16.msra.mxu0 0
        %3544 = vmatprep.subr.bf16.mxu0 0
        %3545 = vmatpush1.bf16.msra.mxu0 0
        %3546 = vmatprep.subr.bf16.mxu0 0
        %3547 = vmatpush1.bf16.msra.mxu0 0
        %3548 = vmatprep.subr.bf16.mxu0 0
        %3549 = vmatpush1.bf16.msra.mxu0 0
        %3550 = vmatprep.mubr.bf16.mxu0 0
        %3551 = vmatmul.mubr.bf16.gmra.mrb[0].mxu0 %v485
        %v3552 = vpop.f32.mrb[0].mxu0
        %v3553 = vadd.f32 0.0, %v3552
        %v3554 = vpop.f32.mrb[0].mxu0
        %v3555 = vpop.f32.mrb[0].mxu0
        %v3556 = vadd.f32 0.0, %v3555
        %v3557 = vpop.f32.mrb[0].mxu0
        %3558 = vmatprep.mubr.bf16.mxu0 0
        %3559 = vmatmul.mubr.bf16.gmra.mrb[0].mxu0 %v488
        %v3560 = vpop.f32.mrb[0].mxu0
        %v3561 = vadd.f32 0.0, %v3560
        %v3562 = vpop.f32.mrb[0].mxu0
        %v3563 = vpop.f32.mrb[0].mxu0
        %v3564 = vadd.f32 0.0, %v3563
        %v3565 = vpop.f32.mrb[0].mxu0
        %3566 = vmatprep.mubr.bf16.mxu0 0
        %3567 = vmatmul.mubr.bf16.gmra.mrb[0].mxu0 %v491
        %v3568 = vpop.f32.mrb[0].mxu0
        %v3569 = vadd.f32 0.0, %v3568
        %v3570 = vpop.f32.mrb[0].mxu0
        %v3571 = vpop.f32.mrb[0].mxu0
        %v3572 = vadd.f32 0.0, %v3571
        %v3573 = vpop.f32.mrb[0].mxu0
        %3574 = vmatprep.mubr.bf16.mxu0 0
        %3575 = vmatmul.mubr.bf16.gmra.mrb[0].mxu0 %v494
        %v3576 = vpop.f32.mrb[0].mxu0
        %v3577 = vadd.f32 0.0, %v3576
        %v3578 = vpop.f32.mrb[0].mxu0
        %v3579 = vpop.f32.mrb[0].mxu0
        %v3580 = vadd.f32 0.0, %v3579
        %v3581 = vpop.f32.mrb[0].mxu0
        %3582 = vmatprep.mubr.bf16.mxu0 0
        %3583 = vmatmul.mubr.bf16.gmra.mrb[0].mxu0 %v497
        %v3584 = vpop.f32.mrb[0].mxu0
        %v3585 = vadd.f32 0.0, %v3584
        %v3586 = vpop.f32.mrb[0].mxu0
        %v3587 = vpop.f32.mrb[0].mxu0
        %v3588 = vadd.f32 0.0, %v3587
        %v3589 = vpop.f32.mrb[0].mxu0
        %3590 = vmatprep.mubr.bf16.mxu0 0
        %3591 = vmatmul.mubr.bf16.gmra.mrb[0].mxu0 %v500
        %v3592 = vpop.f32.mrb[0].mxu0
        %v3593 = vadd.f32 0.0, %v3592
        %v3594 = vpop.f32.mrb[0].mxu0
        %v3595 = vpop.f32.mrb[0].mxu0
        %v3596 = vadd.f32 0.0, %v3595
        %v3597 = vpop.f32.mrb[0].mxu0
        %3598 = vmatprep.mubr.bf16.mxu0 0
        %3599 = vmatmul.mubr.bf16.gmra.mrb[0].mxu0 %v503
        %v3600 = vpop.f32.mrb[0].mxu0
        %v3601 = vadd.f32 0.0, %v3600
        %v3602 = vpop.f32.mrb[0].mxu0
        %v3603 = vpop.f32.mrb[0].mxu0
        %v3604 = vadd.f32 0.0, %v3603
        %v3605 = vpop.f32.mrb[0].mxu0
        %3606 = vmatprep.mubr.bf16.mxu0 0
        %3607 = vmatmul.mubr.bf16.gmra.mrb[0].mxu0 %v506
        %v3608 = vpop.f32.mrb[0].mxu0
        %v3609 = vadd.f32 0.0, %v3608
        %v3610 = vpop.f32.mrb[0].mxu0
        %v3611 = vpop.f32.mrb[0].mxu0
        %v3612 = vadd.f32 0.0, %v3611
        %v3613 = vpop.f32.mrb[0].mxu0
        %3614 = vmatprep.mubr.bf16.mxu0 0
        %3615 = vmatmul.mubr.bf16.gmra.mrb[0].mxu0 %v509
        %v3616 = vpop.f32.mrb[0].mxu0
        %v3617 = vadd.f32 0.0, %v3616
        %v3618 = vpop.f32.mrb[0].mxu0
        %v3619 = vpop.f32.mrb[0].mxu0
        %v3620 = vadd.f32 0.0, %v3619
        %v3621 = vpop.f32.mrb[0].mxu0
        %3622 = vmatprep.mubr.bf16.mxu0 0
        %3623 = vmatmul.mubr.bf16.gmra.mrb[0].mxu0 %v512
        %v3624 = vpop.f32.mrb[0].mxu0
        %v3625 = vadd.f32 0.0, %v3624
        %v3626 = vpop.f32.mrb[0].mxu0
        %v3627 = vpop.f32.mrb[0].mxu0
        %v3628 = vadd.f32 0.0, %v3627
        %v3629 = vpop.f32.mrb[0].mxu0
        %3630 = vmatprep.mubr.bf16.mxu0 0
        %3631 = vmatmul.mubr.bf16.gmra.mrb[0].mxu0 %v515
        %v3632 = vpop.f32.mrb[0].mxu0
        %v3633 = vadd.f32 0.0, %v3632
        %v3634 = vpop.f32.mrb[0].mxu0
        %v3635 = vpop.f32.mrb[0].mxu0
        %v3636 = vadd.f32 0.0, %v3635
        %v3637 = vpop.f32.mrb[0].mxu0
        %3638 = vmatprep.mubr.bf16.mxu0 0
        %3639 = vmatmul.mubr.bf16.gmra.mrb[0].mxu0 %v518
        %v3640 = vpop.f32.mrb[0].mxu0
        %v3641 = vadd.f32 0.0, %v3640
        %v3642 = vpop.f32.mrb[0].mxu0
        %v3643 = vpop.f32.mrb[0].mxu0
        %v3644 = vadd.f32 0.0, %v3643
        %v3645 = vpop.f32.mrb[0].mxu0
        %3646 = vmatprep.mubr.bf16.mxu0 0
        %3647 = vmatmul.mubr.bf16.gmra.mrb[0].mxu0 %v521
        %v3648 = vpop.f32.mrb[0].mxu0
        %v3649 = vadd.f32 0.0, %v3648
        %v3650 = vpop.f32.mrb[0].mxu0
        %v3651 = vpop.f32.mrb[0].mxu0
        %v3652 = vadd.f32 0.0, %v3651
        %v3653 = vpop.f32.mrb[0].mxu0
        %3654 = vmatprep.mubr.bf16.mxu0 0
        %3655 = vmatmul.mubr.bf16.gmra.mrb[0].mxu0 %v524
        %v3656 = vpop.f32.mrb[0].mxu0
        %v3657 = vadd.f32 0.0, %v3656
        %v3658 = vpop.f32.mrb[0].mxu0
        %v3659 = vpop.f32.mrb[0].mxu0
        %v3660 = vadd.f32 0.0, %v3659
        %v3661 = vpop.f32.mrb[0].mxu0
        %3662 = vmatprep.mubr.bf16.mxu0 0
        %3663 = vmatmul.mubr.bf16.gmra.mrb[0].mxu0 %v527
        %v3664 = vpop.f32.mrb[0].mxu0
        %v3665 = vadd.f32 0.0, %v3664
        %v3666 = vpop.f32.mrb[0].mxu0
        %v3667 = vpop.f32.mrb[0].mxu0
        %v3668 = vadd.f32 0.0, %v3667
        %v3669 = vpop.f32.mrb[0].mxu0
        %3670 = vmatprep.mubr.bf16.mxu0 0
        %3671 = vmatmul.mubr.bf16.gmra.mrb[0].mxu0 %v530
        %v3672 = vpop.f32.mrb[0].mxu0
        %v3673 = vadd.f32 0.0, %v3672
        %v3674 = vpop.f32.mrb[0].mxu0
        %v3675 = vpop.f32.mrb[0].mxu0
        %v3676 = vadd.f32 0.0, %v3675
        %v3677 = vpop.f32.mrb[0].mxu0
        %3678 = vdwg.mxu0
        %v3679 = vadd.f32 %v3360, %v3553
        %v3680 = vadd.f32 %v3363, %v3556
        %v3681 = vadd.f32 %v3368, %v3561
        %v3682 = vadd.f32 %v3371, %v3564
        %v3683 = vadd.f32 %v3376, %v3569
        %v3684 = vadd.f32 %v3379, %v3572
        %v3685 = vadd.f32 %v3384, %v3577
        %v3686 = vadd.f32 %v3387, %v3580
        %v3687 = vadd.f32 %v3392, %v3585
        %v3688 = vadd.f32 %v3395, %v3588
        %v3689 = vadd.f32 %v3400, %v3593
        %v3690 = vadd.f32 %v3403, %v3596
        %v3691 = vadd.f32 %v3408, %v3601
        %v3692 = vadd.f32 %v3411, %v3604
        %v3693 = vadd.f32 %v3416, %v3609
        %v3694 = vadd.f32 %v3419, %v3612
        %v3695 = vadd.f32 %v3424, %v3617
        %v3696 = vadd.f32 %v3427, %v3620
        %v3697 = vadd.f32 %v3432, %v3625
        %v3698 = vadd.f32 %v3435, %v3628
        %v3699 = vadd.f32 %v3440, %v3633
        %v3700 = vadd.f32 %v3443, %v3636
        %v3701 = vadd.f32 %v3448, %v3641
        %v3702 = vadd.f32 %v3451, %v3644
        %v3703 = vadd.f32 %v3456, %v3649
        %v3704 = vadd.f32 %v3459, %v3652
        %v3705 = vadd.f32 %v3464, %v3657
        %v3706 = vadd.f32 %v3467, %v3660
        %v3707 = vadd.f32 %v3472, %v3665
        %v3708 = vadd.f32 %v3475, %v3668
        %v3709 = vadd.f32 %v3480, %v3673
        %v3710 = vadd.f32 %v3483, %v3676
        %v3711 = vld [vmem:[%s8] sm:$0x1]
        %v3713 = vlaneseq
        %v3714 = vshrl.u32 %v3713, 7
        %v3715 = vsub.s32 0, %v3714
        %v3716 = vrot.slane %v3711, %v3715
        %v3718 = vadd.f32 %v3679, %v3716
        %v3719 = vadd.f32 %v3680, %v3716
        %v3720 = vadd.f32 %v3681, %v3716
        %v3721 = vadd.f32 %v3682, %v3716
        %v3722 = vadd.f32 %v3683, %v3716
        %v3723 = vadd.f32 %v3684, %v3716
        %v3724 = vadd.f32 %v3685, %v3716
        %v3725 = vadd.f32 %v3686, %v3716
        %v3726 = vadd.f32 %v3687, %v3716
        %v3727 = vadd.f32 %v3688, %v3716
        %v3728 = vadd.f32 %v3689, %v3716
        %v3729 = vadd.f32 %v3690, %v3716
        %v3730 = vadd.f32 %v3691, %v3716
        %v3731 = vadd.f32 %v3692, %v3716
        %v3732 = vadd.f32 %v3693, %v3716
        %v3733 = vadd.f32 %v3694, %v3716
        %v3734 = vadd.f32 %v3695, %v3716
        %v3735 = vadd.f32 %v3696, %v3716
        %v3736 = vadd.f32 %v3697, %v3716
        %v3737 = vadd.f32 %v3698, %v3716
        %v3738 = vadd.f32 %v3699, %v3716
        %v3739 = vadd.f32 %v3700, %v3716
        %v3740 = vadd.f32 %v3701, %v3716
        %v3741 = vadd.f32 %v3702, %v3716
        %v3742 = vadd.f32 %v3703, %v3716
        %v3743 = vadd.f32 %v3704, %v3716
        %v3744 = vadd.f32 %v3705, %v3716
        %v3745 = vadd.f32 %v3706, %v3716
        %v3746 = vadd.f32 %v3707, %v3716
        %v3747 = vadd.f32 %v3708, %v3716
        %v3748 = vadd.f32 %v3709, %v3716
        %v3749 = vadd.f32 %v3710, %v3716
        %v3750 = vmax.f32 %v3718, 0.0
        %v3751 = vmax.f32 %v3719, 0.0
        %v3752 = vmax.f32 %v3720, 0.0
        %v3753 = vmax.f32 %v3721, 0.0
        %v3754 = vmax.f32 %v3722, 0.0
        %v3755 = vmax.f32 %v3723, 0.0
        %v3756 = vmax.f32 %v3724, 0.0
        %v3757 = vmax.f32 %v3725, 0.0
        %v3758 = vmax.f32 %v3726, 0.0
        %v3759 = vmax.f32 %v3727, 0.0
        %v3760 = vmax.f32 %v3728, 0.0
        %v3761 = vmax.f32 %v3729, 0.0
        %v3762 = vmax.f32 %v3730, 0.0
        %v3763 = vmax.f32 %v3731, 0.0
        %v3764 = vmax.f32 %v3732, 0.0
        %v3765 = vmax.f32 %v3733, 0.0
        %v3766 = vmax.f32 %v3734, 0.0
        %v3767 = vmax.f32 %v3735, 0.0
        %v3768 = vmax.f32 %v3736, 0.0
        %v3769 = vmax.f32 %v3737, 0.0
        %v3770 = vmax.f32 %v3738, 0.0
        %v3771 = vmax.f32 %v3739, 0.0
        %v3772 = vmax.f32 %v3740, 0.0
        %v3773 = vmax.f32 %v3741, 0.0
        %v3774 = vmax.f32 %v3742, 0.0
        %v3775 = vmax.f32 %v3743, 0.0
        %v3776 = vmax.f32 %v3744, 0.0
        %v3777 = vmax.f32 %v3745, 0.0
        %v3778 = vmax.f32 %v3746, 0.0
        %v3779 = vmax.f32 %v3747, 0.0
        %v3780 = vmax.f32 %v3748, 0.0
        %v3781 = vmax.f32 %v3749, 0.0
        %3782 = vst [vmem:[%s325] sm:$0xff] %v3750
        %3783 = vst [vmem:[%s325 + $0x8] sm:$0xff] %v3751
        %3784 = vst [vmem:[%s325 + $0x10] sm:$0xff] %v3752
        %3785 = vst [vmem:[%s325 + $0x18] sm:$0xff] %v3753
        %3786 = vst [vmem:[%s325 + $0x20] sm:$0xff] %v3754
        %3787 = vst [vmem:[%s325 + $0x28] sm:$0xff] %v3755
        %3788 = vst [vmem:[%s325 + $0x30] sm:$0xff] %v3756
        %3789 = vst [vmem:[%s325 + $0x38] sm:$0xff] %v3757
        %3790 = vst [vmem:[%s325 + $0x40] sm:$0xff] %v3758
        %3791 = vst [vmem:[%s325 + $0x48] sm:$0xff] %v3759
        %3792 = vst [vmem:[%s325 + $0x50] sm:$0xff] %v3760
        %3793 = vst [vmem:[%s325 + $0x58] sm:$0xff] %v3761
        %3794 = vst [vmem:[%s325 + $0x60] sm:$0xff] %v3762
        %3795 = vst [vmem:[%s325 + $0x68] sm:$0xff] %v3763
        %3796 = vst [vmem:[%s325 + $0x70] sm:$0xff] %v3764
        %3797 = vst [vmem:[%s325 + $0x78] sm:$0xff] %v3765
        %3798 = vst [vmem:[%s325 + $0x80] sm:$0xff] %v3766
        %3799 = vst [vmem:[%s325 + $0x88] sm:$0xff] %v3767
        %3800 = vst [vmem:[%s325 + $0x90] sm:$0xff] %v3768
        %3801 = vst [vmem:[%s325 + $0x98] sm:$0xff] %v3769
        %3802 = vst [vmem:[%s325 + $0xa0] sm:$0xff] %v3770
        %3803 = vst [vmem:[%s325 + $0xa8] sm:$0xff] %v3771
        %3804 = vst [vmem:[%s325 + $0xb0] sm:$0xff] %v3772
        %3805 = vst [vmem:[%s325 + $0xb8] sm:$0xff] %v3773
        %3806 = vst [vmem:[%s325 + $0xc0] sm:$0xff] %v3774
        %3807 = vst [vmem:[%s325 + $0xc8] sm:$0xff] %v3775
        %3808 = vst [vmem:[%s325 + $0xd0] sm:$0xff] %v3776
        %3809 = vst [vmem:[%s325 + $0xd8] sm:$0xff] %v3777
        %3810 = vst [vmem:[%s325 + $0xe0] sm:$0xff] %v3778
        %3811 = vst [vmem:[%s325 + $0xe8] sm:$0xff] %v3779
        %3812 = vst [vmem:[%s325 + $0xf0] sm:$0xff] %v3780
        %3813 = vst [vmem:[%s325 + $0xf8] sm:$0xff] %v3781
        %s3814 = sand.u32 %s225, 1
        %s3815 = scalar_lea.sflag [#allocation3], %s3814
        %s3816 = sand.u32 %s225, 1
        %s3817 = smul.addr %s3816, 256
        %s3818 = scalar_lea.vmem [#allocation2], %s3817
        // Predicated region
        $region57: #{bottleneck_forward.1} parent=55 // pred_check
          %p3819 = pneg %p235
        $region58: #{bottleneck_forward.1} parent=55 // pred_check_branch
          %3821 = sbr.rel (%p3819) target = $region60
        $region59: #{bottleneck_forward.1} parent=55 // pred_region
          %s3823 = ssub.s32 4096, 4096
          %3824 = vsyncadd %s3815, %s3823
          %s3825 = smul.addr %s23, 32
          %s3826 = smul.addr %s3825, 128
          %s3827 = scalar_lea.hbm %s9, %s3826
          %s3828 = sshll.u32 %s3818, 4
          %s3829 = int_to_ptr.vmem [resolvable:$true] %s3828
          %3834 = dma.vmem_to_hbm [thread:$0]  %s3829, 4096, %s3827, %s3815, 128, 128, 8
        $region60: #{bottleneck_forward.1} parent=55 // pred_fallthru
          _
      $region56: #{bottleneck_forward.1} parent=5 // pred_fallthru
        _
      %p3835 = scmp.le.s32.totalorder 2, %s18
      // Predicated region
      $region61: #{bottleneck_forward.1} parent=5 // pred_check
        %p3836 = pneg %p3835
      $region62: #{bottleneck_forward.1} parent=5 // pred_check_branch
        %3838 = sbr.rel (%p3836) target = $region64
      $region63: #{bottleneck_forward.1} parent=5 // pred_region
        %s3839 = ssub.s32 %s18, 2
        // Predicated region
        $region65: #{bottleneck_forward.1} parent=63 // pred_check
          %p3840 = pneg %p241
        $region66: #{bottleneck_forward.1} parent=63 // pred_check_branch
          %3842 = sbr.rel (%p3840) target = $region68
        $region67: #{bottleneck_forward.1} parent=63 // pred_region
          %s3843 = sand.u32 %s226, 1
          %s3844 = scalar_lea.sflag [#allocation3], %s3843
          %s3845 = sand.u32 %s226, 1
          %s3846 = smul.addr %s3845, 256
          %s3847 = scalar_lea.vmem [#allocation2], %s3846
          %3848 = dma.done %s3844, 4096
        $region68: #{bottleneck_forward.1} parent=63 // pred_fallthru
          _
      $region64: #{bottleneck_forward.1} parent=5 // pred_fallthru
        _
    $region6: #{bottleneck_forward.1} parent=1 // loop_footer
      %s22 = sadd.s32 1, %s18
    $region7: #{bottleneck_forward.1} parent=1 // loop_footer_branch
      %17 = sbr.rel target = $region3
    $region8: #{bottleneck_forward.1} parent=1 // loop_exit
      _
    %3849 = vsyncpa [#allocation3], 1
    %s3850 = scalar_lea.sflag [#allocation3], 1
    %3851 = vsyncpa %s3850, 1

</llo_original>
